<compile_context>
chip_gen: v5e
topology: v5e:2x2
jax: 0.10.0
libtpu: 0.0.40
codegen_flags: <defaults>
</compile_context>

<pallas_src>
import functools

import jax
import jax.numpy as jnp
from jax.experimental import pallas as pl
from jax.experimental.pallas import tpu as pltpu

NEG_SLOPE = 0.01  # nn.LeakyReLU() default
BN_EPS = 1e-5


def _leaky(y):
    return jnp.where(y > 0, y, y * NEG_SLOPE)


# ---------------------------------------------------------------------------
# Fused kernel: 1x1 -> 3x3 -> 1x1 -> 3x3 -> 1x1, all intermediates in VMEM.
#
# One grid step computes TH output rows of one batch element.
#   x_ref : (1, H+4, W, Cin)     whole (row-padded) image for this batch element
#   w1/w3/w5 : (Cin', Cout)      folded 1x1 weights
#   w2/w4    : (3, 3*C, 2C)      folded 3x3 weights, kx taps merged into K
#   b*       : (1, Cout)         folded BN bias
#   o_ref : (1, TH, W, C)
#   a1_ref: VMEM (TH+4, W+2, C)  layer-1 output slab, zero-padded borders
#   a3_ref: VMEM (TH+2, W+2, C)  layer-3 output slab, zero-padded borders
# ---------------------------------------------------------------------------
def _fused_fpn_kernel(H, W, TH,
                      x_ref, w1_ref, b1_ref, w2_ref, b2_ref, w3_ref, b3_ref,
                      w4_ref, b4_ref, w5_ref, b5_ref,
                      o_ref, a1_ref, a3_ref):
    Cin = x_ref.shape[-1]
    C = w1_ref.shape[1]
    C2 = w2_ref.shape[2]

    r0 = pl.multiple_of(pl.program_id(1) * TH, TH)  # first output row of this tile

    # ---- layer 1: 1x1 conv Cin->C on a (TH+4)-row halo slab -------------------
    R1 = TH + 4
    x_slab = x_ref[0, pl.ds(r0, R1), :, :]                       # (R1, W, Cin)
    y1 = jnp.dot(x_slab.reshape(R1 * W, Cin), w1_ref[...],
                 preferred_element_type=jnp.float32)
    a1 = _leaky(y1 + b1_ref[...]).reshape(R1, W, C)
    # zero halo rows outside the image => implements pad=1 for the first 3x3
    g1 = jax.lax.broadcasted_iota(jnp.int32, (R1, 1, 1), 0) + (r0 - 2)
    a1 = jnp.where((g1 >= 0) & (g1 < H), a1, 0.0)
    # stage into zero-column-padded VMEM scratch
    zc1 = jnp.zeros((R1, 1, C), jnp.float32)
    a1_ref[:, 0:1, :] = zc1
    a1_ref[:, W + 1:W + 2, :] = zc1
    a1_ref[:, 1:W + 1, :] = a1

    # ---- layer 2: 3x3 conv C->2C over TH+2 rows (kx taps merged, K = 3C) ------
    R2 = TH + 2
    acc2 = jnp.zeros((R2 * W, C2), jnp.float32)
    for ky in range(3):
        xk = jnp.concatenate(
            [a1_ref[ky:ky + R2, 0:W, :],
             a1_ref[ky:ky + R2, 1:W + 1, :],
             a1_ref[ky:ky + R2, 2:W + 2, :]], axis=-1).reshape(R2 * W, 3 * C)
        acc2 = acc2 + jnp.dot(xk, w2_ref[ky], preferred_element_type=jnp.float32)
    a2 = _leaky(acc2 + b2_ref[...])                              # (R2*W, 2C)

    # ---- layer 3: 1x1 conv 2C->C ----------------------------------------------
    y3 = jnp.dot(a2, w3_ref[...], preferred_element_type=jnp.float32)
    a3 = _leaky(y3 + b3_ref[...]).reshape(R2, W, C)
    g3 = jax.lax.broadcasted_iota(jnp.int32, (R2, 1, 1), 0) + (r0 - 1)
    a3 = jnp.where((g3 >= 0) & (g3 < H), a3, 0.0)
    zc3 = jnp.zeros((R2, 1, C), jnp.float32)
    a3_ref[:, 0:1, :] = zc3
    a3_ref[:, W + 1:W + 2, :] = zc3
    a3_ref[:, 1:W + 1, :] = a3

    # ---- layer 4: 3x3 conv C->2C over TH rows ----------------------------------
    acc4 = jnp.zeros((TH * W, C2), jnp.float32)
    for ky in range(3):
        xk = jnp.concatenate(
            [a3_ref[ky:ky + TH, 0:W, :],
             a3_ref[ky:ky + TH, 1:W + 1, :],
             a3_ref[ky:ky + TH, 2:W + 2, :]], axis=-1).reshape(TH * W, 3 * C)
        acc4 = acc4 + jnp.dot(xk, w4_ref[ky], preferred_element_type=jnp.float32)
    a4 = _leaky(acc4 + b4_ref[...])                              # (TH*W, 2C)

    # ---- layer 5: 1x1 conv 2C->C -----------------------------------------------
    y5 = jnp.dot(a4, w5_ref[...], preferred_element_type=jnp.float32)
    out = _leaky(y5 + b5_ref[...])                               # (TH*W, C)
    o_ref[0] = out.reshape(TH, W, C).astype(o_ref.dtype)


def fpn_downsample_fused(x_nhwc, params, tile_h):
    """x_nhwc: (N,H,W,Cin) -> (N,H,W,C), whole 5-layer chain in one pallas_call."""
    N, H, W, Cin = x_nhwc.shape
    C = params["w1"].shape[1]
    C2 = params["w2"].shape[2]
    TH = tile_h if H % tile_h == 0 else H        # static fallback
    n_tiles = H // TH
    dt = x_nhwc.dtype

    # tiny 2-row halo pad on the raw input only (the cheapest tensor in the chain);
    # all intermediate padding is done in VMEM inside the kernel.
    x_pad = jnp.pad(x_nhwc, ((0, 0), (2, 2), (0, 0), (0, 0)))

    kernel = functools.partial(_fused_fpn_kernel, H, W, TH)

    # explicit VMEM budget (double-buffered blocks + scratch + headroom); keeps the
    # kernel portable to v7x's 64 MiB VMEM when realistic tile sizes are used.
    itemsize = jnp.dtype(dt).itemsize
    x_blk = (H + 4) * W * Cin * itemsize
    o_blk = TH * W * C * itemsize
    w_bytes = sum(int(p.size) * jnp.dtype(p.dtype).itemsize for p in params.values())
    scratch = ((TH + 4) + (TH + 2)) * (W + 2) * C * 4
    vmem_limit = int(2 * (x_blk + o_blk + w_bytes) + scratch + (8 << 20))
    vmem_limit = max(32 << 20, min(vmem_limit, 48 << 20))

    out = pl.pallas_call(
        kernel,
        out_shape=jax.ShapeDtypeStruct((N, H, W, C), dt),
        grid_spec=pltpu.PrefetchScalarGridSpec(
            num_scalar_prefetch=0,
            grid=(N, n_tiles),
            in_specs=[
                pl.BlockSpec((1, H + 4, W, Cin), lambda n, t: (n, 0, 0, 0)),
                pl.BlockSpec((Cin, C), lambda n, t: (0, 0)),
                pl.BlockSpec((1, C), lambda n, t: (0, 0)),
                pl.BlockSpec((3, 3 * C, C2), lambda n, t: (0, 0, 0)),
                pl.BlockSpec((1, C2), lambda n, t: (0, 0)),
                pl.BlockSpec((C2, C), lambda n, t: (0, 0)),
                pl.BlockSpec((1, C), lambda n, t: (0, 0)),
                pl.BlockSpec((3, 3 * C, C2), lambda n, t: (0, 0, 0)),
                pl.BlockSpec((1, C2), lambda n, t: (0, 0)),
                pl.BlockSpec((C2, C), lambda n, t: (0, 0)),
                pl.BlockSpec((1, C), lambda n, t: (0, 0)),
            ],
            out_specs=pl.BlockSpec((1, TH, W, C), lambda n, t: (n, t, 0, 0)),
            scratch_shapes=[
                pltpu.VMEM((TH + 4, W + 2, C), jnp.float32),
                pltpu.VMEM((TH + 2, W + 2, C), jnp.float32),
            ]),
        compiler_params=pltpu.CompilerParams(
            dimension_semantics=("parallel", "parallel"),
            vmem_limit_bytes=vmem_limit),
    )(x_pad, params["w1"], params["b1"], params["w2"], params["b2"],
      params["w3"], params["b3"], params["w4"], params["b4"],
      params["w5"], params["b5"])
    return out


@functools.partial(jax.jit, static_argnames=("tile_h",))
def fpn_downsample_forward(x_nchw, params, tile_h=8):
    # TODO(synk): in a real pipeline keep activations NHWC-resident across layers
    # so these entry/exit transposes (done by XLA, not the kernel) disappear.
    x = jnp.transpose(x_nchw, (0, 2, 3, 1))          # NCHW -> NHWC
    y = fpn_downsample_fused(x, params, tile_h)
    return jnp.transpose(y, (0, 3, 1, 2))            # NHWC -> NCHW


# ---------------------------------------------------------------------------
# Parameter construction: synthetic conv + BN stats, BN folded into (weights, bias)
# ---------------------------------------------------------------------------
def make_params(key, in_channels, out_channels):
    c = out_channels
    defs = [("1", 1, in_channels, c), ("2", 3, c, 2 * c), ("3", 1, 2 * c, c),
            ("4", 3, c, 2 * c), ("5", 1, 2 * c, c)]
    params = {}
    for (idx, k, cin, cout) in defs:
        key, kw, kg, kb, km, kv = jax.random.split(key, 6)
        if k == 1:
            w = jax.random.normal(kw, (cin, cout), jnp.float32) * 0.1
        else:
            w = jax.random.normal(kw, (3, 3, cin, cout), jnp.float32) * 0.1
        gamma = 1.0 + 0.1 * jax.random.normal(kg, (cout,), jnp.float32)
        beta = 0.1 * jax.random.normal(kb, (cout,), jnp.float32)
        mean = 0.1 * jax.random.normal(km, (cout,), jnp.float32)
        var = 1.0 + jax.nn.softplus(jax.random.normal(kv, (cout,), jnp.float32))
        scale = gamma / jnp.sqrt(var + BN_EPS)
        bias = (beta - mean * scale).reshape(1, cout)
        wf = w * scale                                # fold BN scale into weights
        if k == 3:
            wf = wf.reshape(3, 3 * cin, cout)         # merge kx taps into K
        params["w" + idx] = wf
        params["b" + idx] = bias
    return params


# ---------------------------------------------------------------------------
# Pure-JAX reference of the same folded math (for a correctness check)
# ---------------------------------------------------------------------------
def ref_forward(x_nchw, params):
    x = jnp.transpose(x_nchw, (0, 2, 3, 1))

    def conv1x1(x, w, b):
        return _leaky(jnp.einsum("nhwc,cd->nhwd", x, w) + b.reshape(-1))

    def conv3x3(x, w, b):
        cin, cout = w.shape[1] // 3, w.shape[2]
        w4 = w.reshape(3, 3, cin, cout)
        y = jax.lax.conv_general_dilated(
            x, w4, window_strides=(1, 1), padding="SAME",
            dimension_numbers=("NHWC", "HWIO", "NHWC"))
        return _leaky(y + b.reshape(-1))

    x = conv1x1(x, params["w1"], params["b1"])
    x = conv3x3(x, params["w2"], params["b2"])
    x = conv1x1(x, params["w3"], params["b3"])
    x = conv3x3(x, params["w4"], params["b4"])
    x = conv1x1(x, params["w5"], params["b5"])
    return jnp.transpose(x, (0, 3, 1, 2))


if __name__ == "__main__":
    key = jax.random.PRNGKey(0)
    k_x, k_p = jax.random.split(key)

    N, Cin, H, W = 2, 4, 16, 16
    out_channels = 8

    x = jax.random.normal(k_x, (N, Cin, H, W), jnp.float32)
    params = make_params(k_p, Cin, out_channels)

    y = fpn_downsample_forward(x, params, tile_h=8)
    y = jax.block_until_ready(y)

    assert y.shape == (N, out_channels, H, W), y.shape
    assert bool(jnp.all(jnp.isfinite(y)))

    y_ref = jax.block_until_ready(ref_forward(x, params))
    max_err = float(jnp.max(jnp.abs(y - y_ref)))
    assert max_err < 1e-4, f"mismatch vs reference: max abs err {max_err}"

    print("KERNEL_OK")
</pallas_src>

<mosaic_0001>
module attributes {stable_mosaic.version = 11 : i64} {
  func.func @_fused_fpn_kernel(%arg0: i32, %arg1: i32, %arg2: memref<1x20x16x4xf32, #tpu.memory_space<vmem>>, %arg3: memref<4x8xf32, #tpu.memory_space<vmem>>, %arg4: memref<1x8xf32, #tpu.memory_space<vmem>>, %arg5: memref<3x24x16xf32, #tpu.memory_space<vmem>>, %arg6: memref<1x16xf32, #tpu.memory_space<vmem>>, %arg7: memref<16x8xf32, #tpu.memory_space<vmem>>, %arg8: memref<1x8xf32, #tpu.memory_space<vmem>>, %arg9: memref<3x24x16xf32, #tpu.memory_space<vmem>>, %arg10: memref<1x16xf32, #tpu.memory_space<vmem>>, %arg11: memref<16x8xf32, #tpu.memory_space<vmem>>, %arg12: memref<1x8xf32, #tpu.memory_space<vmem>>, %arg13: memref<1x8x16x8xf32, #tpu.memory_space<vmem>>, %arg14: memref<12x18x8xf32, #tpu.memory_space<vmem>>, %arg15: memref<10x18x8xf32, #tpu.memory_space<vmem>>) attributes {dimension_semantics = [#tpu.dimension_semantics<parallel>, #tpu.dimension_semantics<parallel>], iteration_bounds = array<i64: 2, 2>, scalar_prefetch = 0 : i64, scratch_operands = 2 : i64, tpu.core_type = #tpu.core_type<tc>, window_params = [{transform_indices = @transform_0, window_bounds = array<i64: 1, 20, 16, 4>}, {pipeline_mode = #tpu.pipeline_mode<synchronous>, transform_indices = @transform_1, window_bounds = array<i64: 4, 8>}, {pipeline_mode = #tpu.pipeline_mode<synchronous>, transform_indices = @transform_2, window_bounds = array<i64: 1, 8>}, {pipeline_mode = #tpu.pipeline_mode<synchronous>, transform_indices = @transform_3, window_bounds = array<i64: 3, 24, 16>}, {pipeline_mode = #tpu.pipeline_mode<synchronous>, transform_indices = @transform_4, window_bounds = array<i64: 1, 16>}, {pipeline_mode = #tpu.pipeline_mode<synchronous>, transform_indices = @transform_5, window_bounds = array<i64: 16, 8>}, {pipeline_mode = #tpu.pipeline_mode<synchronous>, transform_indices = @transform_6, window_bounds = array<i64: 1, 8>}, {pipeline_mode = #tpu.pipeline_mode<synchronous>, transform_indices = @transform_7, window_bounds = array<i64: 3, 24, 16>}, {pipeline_mode = #tpu.pipeline_mode<synchronous>, transform_indices = @transform_8, window_bounds = array<i64: 1, 16>}, {pipeline_mode = #tpu.pipeline_mode<synchronous>, transform_indices = @transform_9, window_bounds = array<i64: 16, 8>}, {pipeline_mode = #tpu.pipeline_mode<synchronous>, transform_indices = @transform_10, window_bounds = array<i64: 1, 8>}, {transform_indices = @transform_11, window_bounds = array<i64: 1, 8, 16, 8>}]} {
    %c8_i32 = arith.constant 8 : i32
    %0 = arith.muli %arg1, %c8_i32 : i32
    %1 = tpu.assume_multiple %0, 8 : i32
    %c0 = arith.constant 0 : index
    %2 = arith.index_cast %1 : i32 to index
    %c0_0 = arith.constant 0 : index
    %c0_1 = arith.constant 0 : index
    %3 = vector.load %arg2[%c0, %2, %c0_0, %c0_1] : memref<1x20x16x4xf32, #tpu.memory_space<vmem>>, vector<1x12x16x4xf32>
    %4 = vector.shape_cast %3 : vector<1x12x16x4xf32> to vector<12x16x4xf32>
    %5 = vector.shape_cast %4 : vector<12x16x4xf32> to vector<192x4xf32>
    %c0_2 = arith.constant 0 : index
    %c0_3 = arith.constant 0 : index
    %6 = vector.load %arg3[%c0_2, %c0_3] : memref<4x8xf32, #tpu.memory_space<vmem>>, vector<4x8xf32>
    %cst = arith.constant dense<0.000000e+00> : vector<192x8xf32>
    %7 = tpu.matmul %5, %6, %cst {dimension_numbers = #tpu.dot_dimension_numbers<[1], [0], [0], [1], [0, 0, 1, 1], [], []>} : vector<192x4xf32>, vector<4x8xf32>, vector<192x8xf32> -> vector<192x8xf32>
    %c0_4 = arith.constant 0 : index
    %c0_5 = arith.constant 0 : index
    %8 = vector.load %arg4[%c0_4, %c0_5] : memref<1x8xf32, #tpu.memory_space<vmem>>, vector<1x8xf32>
    %9 = vector.broadcast %8 : vector<1x8xf32> to vector<192x8xf32>
    %10 = arith.addf %7, %9 : vector<192x8xf32>
    %cst_6 = arith.constant 0.000000e+00 : f32
    %11 = vector.broadcast %cst_6 : f32 to vector<192x8xf32>
    %12 = arith.cmpf ogt, %10, %11 : vector<192x8xf32>
    %cst_7 = arith.constant 0.00999999977 : f32
    %13 = vector.broadcast %cst_7 : f32 to vector<192x8xf32>
    %14 = arith.mulf %10, %13 : vector<192x8xf32>
    %15 = arith.select %12, %10, %14 : vector<192x8xi1>, vector<192x8xf32>
    %16 = vector.shape_cast %15 : vector<192x8xf32> to vector<12x16x8xf32>
    %17 = tpu.iota {dimensions = array<i32: 0>} : vector<12x1x1xi32>
    %c2_i32 = arith.constant 2 : i32
    %18 = arith.subi %1, %c2_i32 : i32
    %19 = vector.broadcast %18 : i32 to vector<12x1x1xi32>
    %20 = arith.addi %17, %19 : vector<12x1x1xi32>
    %c0_i32 = arith.constant 0 : i32
    %21 = vector.broadcast %c0_i32 : i32 to vector<12x1x1xi32>
    %22 = arith.cmpi sge, %20, %21 : vector<12x1x1xi32>
    %c16_i32 = arith.constant 16 : i32
    %23 = vector.broadcast %c16_i32 : i32 to vector<12x1x1xi32>
    %24 = arith.cmpi slt, %20, %23 : vector<12x1x1xi32>
    %25 = arith.andi %22, %24 : vector<12x1x1xi1>
    %cst_8 = arith.constant 0.000000e+00 : f32
    %26 = vector.shape_cast %25 : vector<12x1x1xi1> to vector<12x1x1xi1>
    %27 = vector.broadcast %26 : vector<12x1x1xi1> to vector<12x16x8xi1>
    %28 = vector.broadcast %cst_8 : f32 to vector<12x16x8xf32>
    %29 = arith.select %27, %16, %28 : vector<12x16x8xi1>, vector<12x16x8xf32>
    %cst_9 = arith.constant 0.000000e+00 : f32
    %30 = vector.broadcast %cst_9 : f32 to vector<12x1x8xf32>
    %c0_10 = arith.constant 0 : index
    %c0_11 = arith.constant 0 : index
    %c0_12 = arith.constant 0 : index
    %31 = vector.load %arg14[%c0_10, %c0_11, %c0_12] : memref<12x18x8xf32, #tpu.memory_space<vmem>>, vector<12x1x8xf32>
    tpu.vector_store %arg14[%c0_10, %c0_11, %c0_12], %30 {strides = array<i32>} : memref<12x18x8xf32, #tpu.memory_space<vmem>>, vector<12x1x8xf32>,
    %c0_13 = arith.constant 0 : index
    %c17 = arith.constant 17 : index
    %c0_14 = arith.constant 0 : index
    %32 = vector.load %arg14[%c0_13, %c17, %c0_14] : memref<12x18x8xf32, #tpu.memory_space<vmem>>, vector<12x1x8xf32>
    tpu.vector_store %arg14[%c0_13, %c17, %c0_14], %30 {strides = array<i32>} : memref<12x18x8xf32, #tpu.memory_space<vmem>>, vector<12x1x8xf32>,
    %c0_15 = arith.constant 0 : index
    %c1 = arith.constant 1 : index
    %c0_16 = arith.constant 0 : index
    %33 = vector.load %arg14[%c0_15, %c1, %c0_16] : memref<12x18x8xf32, #tpu.memory_space<vmem>>, vector<12x16x8xf32>
    tpu.vector_store %arg14[%c0_15, %c1, %c0_16], %29 {strides = array<i32>} : memref<12x18x8xf32, #tpu.memory_space<vmem>>, vector<12x16x8xf32>,
    %cst_17 = arith.constant 0.000000e+00 : f32
    %34 = vector.broadcast %cst_17 : f32 to vector<160x16xf32>
    %c0_18 = arith.constant 0 : index
    %c0_19 = arith.constant 0 : index
    %c0_20 = arith.constant 0 : index
    %35 = vector.load %arg14[%c0_18, %c0_19, %c0_20] : memref<12x18x8xf32, #tpu.memory_space<vmem>>, vector<10x16x8xf32>
    %c0_21 = arith.constant 0 : index
    %c1_22 = arith.constant 1 : index
    %c0_23 = arith.constant 0 : index
    %36 = vector.load %arg14[%c0_21, %c1_22, %c0_23] : memref<12x18x8xf32, #tpu.memory_space<vmem>>, vector<10x16x8xf32>
    %c0_24 = arith.constant 0 : index
    %c2 = arith.constant 2 : index
    %c0_25 = arith.constant 0 : index
    %37 = vector.load %arg14[%c0_24, %c2, %c0_25] : memref<12x18x8xf32, #tpu.memory_space<vmem>>, vector<10x16x8xf32>
    %38 = tpu.concatenate %35, %36, %37 in 2 : vector<10x16x8xf32>, vector<10x16x8xf32>, vector<10x16x8xf32> -> vector<10x16x24xf32>
    %39 = vector.shape_cast %38 : vector<10x16x24xf32> to vector<160x24xf32>
    %c0_26 = arith.constant 0 : index
    %c0_27 = arith.constant 0 : index
    %c0_28 = arith.constant 0 : index
    %40 = vector.load %arg5[%c0_26, %c0_27, %c0_28] : memref<3x24x16xf32, #tpu.memory_space<vmem>>, vector<1x24x16xf32>
    %41 = vector.shape_cast %40 : vector<1x24x16xf32> to vector<24x16xf32>
    %cst_29 = arith.constant dense<0.000000e+00> : vector<160x16xf32>
    %42 = tpu.matmul %39, %41, %cst_29 {dimension_numbers = #tpu.dot_dimension_numbers<[1], [0], [0], [1], [0, 0, 1, 1], [], []>} : vector<160x24xf32>, vector<24x16xf32>, vector<160x16xf32> -> vector<160x16xf32>
    %43 = arith.addf %34, %42 : vector<160x16xf32>
    %c1_30 = arith.constant 1 : index
    %c0_31 = arith.constant 0 : index
    %c0_32 = arith.constant 0 : index
    %44 = vector.load %arg14[%c1_30, %c0_31, %c0_32] : memref<12x18x8xf32, #tpu.memory_space<vmem>>, vector<10x16x8xf32>
    %c1_33 = arith.constant 1 : index
    %c1_34 = arith.constant 1 : index
    %c0_35 = arith.constant 0 : index
    %45 = vector.load %arg14[%c1_33, %c1_34, %c0_35] : memref<12x18x8xf32, #tpu.memory_space<vmem>>, vector<10x16x8xf32>
    %c1_36 = arith.constant 1 : index
    %c2_37 = arith.constant 2 : index
    %c0_38 = arith.constant 0 : index
    %46 = vector.load %arg14[%c1_36, %c2_37, %c0_38] : memref<12x18x8xf32, #tpu.memory_space<vmem>>, vector<10x16x8xf32>
    %47 = tpu.concatenate %44, %45, %46 in 2 : vector<10x16x8xf32>, vector<10x16x8xf32>, vector<10x16x8xf32> -> vector<10x16x24xf32>
    %48 = vector.shape_cast %47 : vector<10x16x24xf32> to vector<160x24xf32>
    %c1_39 = arith.constant 1 : index
    %c0_40 = arith.constant 0 : index
    %c0_41 = arith.constant 0 : index
    %49 = vector.load %arg5[%c1_39, %c0_40, %c0_41] : memref<3x24x16xf32, #tpu.memory_space<vmem>>, vector<1x24x16xf32>
    %50 = vector.shape_cast %49 : vector<1x24x16xf32> to vector<24x16xf32>
    %cst_42 = arith.constant dense<0.000000e+00> : vector<160x16xf32>
    %51 = tpu.matmul %48, %50, %cst_42 {dimension_numbers = #tpu.dot_dimension_numbers<[1], [0], [0], [1], [0, 0, 1, 1], [], []>} : vector<160x24xf32>, vector<24x16xf32>, vector<160x16xf32> -> vector<160x16xf32>
    %52 = arith.addf %43, %51 : vector<160x16xf32>
    %c2_43 = arith.constant 2 : index
    %c0_44 = arith.constant 0 : index
    %c0_45 = arith.constant 0 : index
    %53 = vector.load %arg14[%c2_43, %c0_44, %c0_45] : memref<12x18x8xf32, #tpu.memory_space<vmem>>, vector<10x16x8xf32>
    %c2_46 = arith.constant 2 : index
    %c1_47 = arith.constant 1 : index
    %c0_48 = arith.constant 0 : index
    %54 = vector.load %arg14[%c2_46, %c1_47, %c0_48] : memref<12x18x8xf32, #tpu.memory_space<vmem>>, vector<10x16x8xf32>
    %c2_49 = arith.constant 2 : index
    %c2_50 = arith.constant 2 : index
    %c0_51 = arith.constant 0 : index
    %55 = vector.load %arg14[%c2_49, %c2_50, %c0_51] : memref<12x18x8xf32, #tpu.memory_space<vmem>>, vector<10x16x8xf32>
    %56 = tpu.concatenate %53, %54, %55 in 2 : vector<10x16x8xf32>, vector<10x16x8xf32>, vector<10x16x8xf32> -> vector<10x16x24xf32>
    %57 = vector.shape_cast %56 : vector<10x16x24xf32> to vector<160x24xf32>
    %c2_52 = arith.constant 2 : index
    %c0_53 = arith.constant 0 : index
    %c0_54 = arith.constant 0 : index
    %58 = vector.load %arg5[%c2_52, %c0_53, %c0_54] : memref<3x24x16xf32, #tpu.memory_space<vmem>>, vector<1x24x16xf32>
    %59 = vector.shape_cast %58 : vector<1x24x16xf32> to vector<24x16xf32>
    %cst_55 = arith.constant dense<0.000000e+00> : vector<160x16xf32>
    %60 = tpu.matmul %57, %59, %cst_55 {dimension_numbers = #tpu.dot_dimension_numbers<[1], [0], [0], [1], [0, 0, 1, 1], [], []>} : vector<160x24xf32>, vector<24x16xf32>, vector<160x16xf32> -> vector<160x16xf32>
    %61 = arith.addf %52, %60 : vector<160x16xf32>
    %c0_56 = arith.constant 0 : index
    %c0_57 = arith.constant 0 : index
    %62 = vector.load %arg6[%c0_56, %c0_57] : memref<1x16xf32, #tpu.memory_space<vmem>>, vector<1x16xf32>
    %63 = vector.broadcast %62 : vector<1x16xf32> to vector<160x16xf32>
    %64 = arith.addf %61, %63 : vector<160x16xf32>
    %cst_58 = arith.constant 0.000000e+00 : f32
    %65 = vector.broadcast %cst_58 : f32 to vector<160x16xf32>
    %66 = arith.cmpf ogt, %64, %65 : vector<160x16xf32>
    %cst_59 = arith.constant 0.00999999977 : f32
    %67 = vector.broadcast %cst_59 : f32 to vector<160x16xf32>
    %68 = arith.mulf %64, %67 : vector<160x16xf32>
    %69 = arith.select %66, %64, %68 : vector<160x16xi1>, vector<160x16xf32>
    %c0_60 = arith.constant 0 : index
    %c0_61 = arith.constant 0 : index
    %70 = vector.load %arg7[%c0_60, %c0_61] : memref<16x8xf32, #tpu.memory_space<vmem>>, vector<16x8xf32>
    %cst_62 = arith.constant dense<0.000000e+00> : vector<160x8xf32>
    %71 = tpu.matmul %69, %70, %cst_62 {dimension_numbers = #tpu.dot_dimension_numbers<[1], [0], [0], [1], [0, 0, 1, 1], [], []>} : vector<160x16xf32>, vector<16x8xf32>, vector<160x8xf32> -> vector<160x8xf32>
    %c0_63 = arith.constant 0 : index
    %c0_64 = arith.constant 0 : index
    %72 = vector.load %arg8[%c0_63, %c0_64] : memref<1x8xf32, #tpu.memory_space<vmem>>, vector<1x8xf32>
    %73 = vector.broadcast %72 : vector<1x8xf32> to vector<160x8xf32>
    %74 = arith.addf %71, %73 : vector<160x8xf32>
    %cst_65 = arith.constant 0.000000e+00 : f32
    %75 = vector.broadcast %cst_65 : f32 to vector<160x8xf32>
    %76 = arith.cmpf ogt, %74, %75 : vector<160x8xf32>
    %cst_66 = arith.constant 0.00999999977 : f32
    %77 = vector.broadcast %cst_66 : f32 to vector<160x8xf32>
    %78 = arith.mulf %74, %77 : vector<160x8xf32>
    %79 = arith.select %76, %74, %78 : vector<160x8xi1>, vector<160x8xf32>
    %80 = vector.shape_cast %79 : vector<160x8xf32> to vector<10x16x8xf32>
    %81 = tpu.iota {dimensions = array<i32: 0>} : vector<10x1x1xi32>
    %c1_i32 = arith.constant 1 : i32
    %82 = arith.subi %1, %c1_i32 : i32
    %83 = vector.broadcast %82 : i32 to vector<10x1x1xi32>
    %84 = arith.addi %81, %83 : vector<10x1x1xi32>
    %c0_i32_67 = arith.constant 0 : i32
    %85 = vector.broadcast %c0_i32_67 : i32 to vector<10x1x1xi32>
    %86 = arith.cmpi sge, %84, %85 : vector<10x1x1xi32>
    %c16_i32_68 = arith.constant 16 : i32
    %87 = vector.broadcast %c16_i32_68 : i32 to vector<10x1x1xi32>
    %88 = arith.cmpi slt, %84, %87 : vector<10x1x1xi32>
    %89 = arith.andi %86, %88 : vector<10x1x1xi1>
    %cst_69 = arith.constant 0.000000e+00 : f32
    %90 = vector.shape_cast %89 : vector<10x1x1xi1> to vector<10x1x1xi1>
    %91 = vector.broadcast %90 : vector<10x1x1xi1> to vector<10x16x8xi1>
    %92 = vector.broadcast %cst_69 : f32 to vector<10x16x8xf32>
    %93 = arith.select %91, %80, %92 : vector<10x16x8xi1>, vector<10x16x8xf32>
    %cst_70 = arith.constant 0.000000e+00 : f32
    %94 = vector.broadcast %cst_70 : f32 to vector<10x1x8xf32>
    %c0_71 = arith.constant 0 : index
    %c0_72 = arith.constant 0 : index
    %c0_73 = arith.constant 0 : index
    %95 = vector.load %arg15[%c0_71, %c0_72, %c0_73] : memref<10x18x8xf32, #tpu.memory_space<vmem>>, vector<10x1x8xf32>
    tpu.vector_store %arg15[%c0_71, %c0_72, %c0_73], %94 {strides = array<i32>} : memref<10x18x8xf32, #tpu.memory_space<vmem>>, vector<10x1x8xf32>,
    %c0_74 = arith.constant 0 : index
    %c17_75 = arith.constant 17 : index
    %c0_76 = arith.constant 0 : index
    %96 = vector.load %arg15[%c0_74, %c17_75, %c0_76] : memref<10x18x8xf32, #tpu.memory_space<vmem>>, vector<10x1x8xf32>
    tpu.vector_store %arg15[%c0_74, %c17_75, %c0_76], %94 {strides = array<i32>} : memref<10x18x8xf32, #tpu.memory_space<vmem>>, vector<10x1x8xf32>,
    %c0_77 = arith.constant 0 : index
    %c1_78 = arith.constant 1 : index
    %c0_79 = arith.constant 0 : index
    %97 = vector.load %arg15[%c0_77, %c1_78, %c0_79] : memref<10x18x8xf32, #tpu.memory_space<vmem>>, vector<10x16x8xf32>
    tpu.vector_store %arg15[%c0_77, %c1_78, %c0_79], %93 {strides = array<i32>} : memref<10x18x8xf32, #tpu.memory_space<vmem>>, vector<10x16x8xf32>,
    %cst_80 = arith.constant 0.000000e+00 : f32
    %98 = vector.broadcast %cst_80 : f32 to vector<128x16xf32>
    %c0_81 = arith.constant 0 : index
    %c0_82 = arith.constant 0 : index
    %c0_83 = arith.constant 0 : index
    %99 = vector.load %arg15[%c0_81, %c0_82, %c0_83] : memref<10x18x8xf32, #tpu.memory_space<vmem>>, vector<8x16x8xf32>
    %c0_84 = arith.constant 0 : index
    %c1_85 = arith.constant 1 : index
    %c0_86 = arith.constant 0 : index
    %100 = vector.load %arg15[%c0_84, %c1_85, %c0_86] : memref<10x18x8xf32, #tpu.memory_space<vmem>>, vector<8x16x8xf32>
    %c0_87 = arith.constant 0 : index
    %c2_88 = arith.constant 2 : index
    %c0_89 = arith.constant 0 : index
    %101 = vector.load %arg15[%c0_87, %c2_88, %c0_89] : memref<10x18x8xf32, #tpu.memory_space<vmem>>, vector<8x16x8xf32>
    %102 = tpu.concatenate %99, %100, %101 in 2 : vector<8x16x8xf32>, vector<8x16x8xf32>, vector<8x16x8xf32> -> vector<8x16x24xf32>
    %103 = vector.shape_cast %102 : vector<8x16x24xf32> to vector<128x24xf32>
    %c0_90 = arith.constant 0 : index
    %c0_91 = arith.constant 0 : index
    %c0_92 = arith.constant 0 : index
    %104 = vector.load %arg9[%c0_90, %c0_91, %c0_92] : memref<3x24x16xf32, #tpu.memory_space<vmem>>, vector<1x24x16xf32>
    %105 = vector.shape_cast %104 : vector<1x24x16xf32> to vector<24x16xf32>
    %cst_93 = arith.constant dense<0.000000e+00> : vector<128x16xf32>
    %106 = tpu.matmul %103, %105, %cst_93 {dimension_numbers = #tpu.dot_dimension_numbers<[1], [0], [0], [1], [0, 0, 1, 1], [], []>} : vector<128x24xf32>, vector<24x16xf32>, vector<128x16xf32> -> vector<128x16xf32>
    %107 = arith.addf %98, %106 : vector<128x16xf32>
    %c1_94 = arith.constant 1 : index
    %c0_95 = arith.constant 0 : index
    %c0_96 = arith.constant 0 : index
    %108 = vector.load %arg15[%c1_94, %c0_95, %c0_96] : memref<10x18x8xf32, #tpu.memory_space<vmem>>, vector<8x16x8xf32>
    %c1_97 = arith.constant 1 : index
    %c1_98 = arith.constant 1 : index
    %c0_99 = arith.constant 0 : index
    %109 = vector.load %arg15[%c1_97, %c1_98, %c0_99] : memref<10x18x8xf32, #tpu.memory_space<vmem>>, vector<8x16x8xf32>
    %c1_100 = arith.constant 1 : index
    %c2_101 = arith.constant 2 : index
    %c0_102 = arith.constant 0 : index
    %110 = vector.load %arg15[%c1_100, %c2_101, %c0_102] : memref<10x18x8xf32, #tpu.memory_space<vmem>>, vector<8x16x8xf32>
    %111 = tpu.concatenate %108, %109, %110 in 2 : vector<8x16x8xf32>, vector<8x16x8xf32>, vector<8x16x8xf32> -> vector<8x16x24xf32>
    %112 = vector.shape_cast %111 : vector<8x16x24xf32> to vector<128x24xf32>
    %c1_103 = arith.constant 1 : index
    %c0_104 = arith.constant 0 : index
    %c0_105 = arith.constant 0 : index
    %113 = vector.load %arg9[%c1_103, %c0_104, %c0_105] : memref<3x24x16xf32, #tpu.memory_space<vmem>>, vector<1x24x16xf32>
    %114 = vector.shape_cast %113 : vector<1x24x16xf32> to vector<24x16xf32>
    %cst_106 = arith.constant dense<0.000000e+00> : vector<128x16xf32>
    %115 = tpu.matmul %112, %114, %cst_106 {dimension_numbers = #tpu.dot_dimension_numbers<[1], [0], [0], [1], [0, 0, 1, 1], [], []>} : vector<128x24xf32>, vector<24x16xf32>, vector<128x16xf32> -> vector<128x16xf32>
    %116 = arith.addf %107, %115 : vector<128x16xf32>
    %c2_107 = arith.constant 2 : index
    %c0_108 = arith.constant 0 : index
    %c0_109 = arith.constant 0 : index
    %117 = vector.load %arg15[%c2_107, %c0_108, %c0_109] : memref<10x18x8xf32, #tpu.memory_space<vmem>>, vector<8x16x8xf32>
    %c2_110 = arith.constant 2 : index
    %c1_111 = arith.constant 1 : index
    %c0_112 = arith.constant 0 : index
    %118 = vector.load %arg15[%c2_110, %c1_111, %c0_112] : memref<10x18x8xf32, #tpu.memory_space<vmem>>, vector<8x16x8xf32>
    %c2_113 = arith.constant 2 : index
    %c2_114 = arith.constant 2 : index
    %c0_115 = arith.constant 0 : index
    %119 = vector.load %arg15[%c2_113, %c2_114, %c0_115] : memref<10x18x8xf32, #tpu.memory_space<vmem>>, vector<8x16x8xf32>
    %120 = tpu.concatenate %117, %118, %119 in 2 : vector<8x16x8xf32>, vector<8x16x8xf32>, vector<8x16x8xf32> -> vector<8x16x24xf32>
    %121 = vector.shape_cast %120 : vector<8x16x24xf32> to vector<128x24xf32>
    %c2_116 = arith.constant 2 : index
    %c0_117 = arith.constant 0 : index
    %c0_118 = arith.constant 0 : index
    %122 = vector.load %arg9[%c2_116, %c0_117, %c0_118] : memref<3x24x16xf32, #tpu.memory_space<vmem>>, vector<1x24x16xf32>
    %123 = vector.shape_cast %122 : vector<1x24x16xf32> to vector<24x16xf32>
    %cst_119 = arith.constant dense<0.000000e+00> : vector<128x16xf32>
    %124 = tpu.matmul %121, %123, %cst_119 {dimension_numbers = #tpu.dot_dimension_numbers<[1], [0], [0], [1], [0, 0, 1, 1], [], []>} : vector<128x24xf32>, vector<24x16xf32>, vector<128x16xf32> -> vector<128x16xf32>
    %125 = arith.addf %116, %124 : vector<128x16xf32>
    %c0_120 = arith.constant 0 : index
    %c0_121 = arith.constant 0 : index
    %126 = vector.load %arg10[%c0_120, %c0_121] : memref<1x16xf32, #tpu.memory_space<vmem>>, vector<1x16xf32>
    %127 = vector.broadcast %126 : vector<1x16xf32> to vector<128x16xf32>
    %128 = arith.addf %125, %127 : vector<128x16xf32>
    %cst_122 = arith.constant 0.000000e+00 : f32
    %129 = vector.broadcast %cst_122 : f32 to vector<128x16xf32>
    %130 = arith.cmpf ogt, %128, %129 : vector<128x16xf32>
    %cst_123 = arith.constant 0.00999999977 : f32
    %131 = vector.broadcast %cst_123 : f32 to vector<128x16xf32>
    %132 = arith.mulf %128, %131 : vector<128x16xf32>
    %133 = arith.select %130, %128, %132 : vector<128x16xi1>, vector<128x16xf32>
    %c0_124 = arith.constant 0 : index
    %c0_125 = arith.constant 0 : index
    %134 = vector.load %arg11[%c0_124, %c0_125] : memref<16x8xf32, #tpu.memory_space<vmem>>, vector<16x8xf32>
    %cst_126 = arith.constant dense<0.000000e+00> : vector<128x8xf32>
    %135 = tpu.matmul %133, %134, %cst_126 {dimension_numbers = #tpu.dot_dimension_numbers<[1], [0], [0], [1], [0, 0, 1, 1], [], []>} : vector<128x16xf32>, vector<16x8xf32>, vector<128x8xf32> -> vector<128x8xf32>
    %c0_127 = arith.constant 0 : index
    %c0_128 = arith.constant 0 : index
    %136 = vector.load %arg12[%c0_127, %c0_128] : memref<1x8xf32, #tpu.memory_space<vmem>>, vector<1x8xf32>
    %137 = vector.broadcast %136 : vector<1x8xf32> to vector<128x8xf32>
    %138 = arith.addf %135, %137 : vector<128x8xf32>
    %cst_129 = arith.constant 0.000000e+00 : f32
    %139 = vector.broadcast %cst_129 : f32 to vector<128x8xf32>
    %140 = arith.cmpf ogt, %138, %139 : vector<128x8xf32>
    %cst_130 = arith.constant 0.00999999977 : f32
    %141 = vector.broadcast %cst_130 : f32 to vector<128x8xf32>
    %142 = arith.mulf %138, %141 : vector<128x8xf32>
    %143 = arith.select %140, %138, %142 : vector<128x8xi1>, vector<128x8xf32>
    %144 = vector.shape_cast %143 : vector<128x8xf32> to vector<8x16x8xf32>
    %c0_131 = arith.constant 0 : index
    %c0_132 = arith.constant 0 : index
    %c0_133 = arith.constant 0 : index
    %c0_134 = arith.constant 0 : index
    %145 = vector.load %arg13[%c0_131, %c0_132, %c0_133, %c0_134] : memref<1x8x16x8xf32, #tpu.memory_space<vmem>>, vector<1x8x16x8xf32>
    %146 = vector.shape_cast %145 : vector<1x8x16x8xf32> to vector<8x16x8xf32>
    %147 = vector.shape_cast %144 : vector<8x16x8xf32> to vector<1x8x16x8xf32>
    tpu.vector_store %arg13[%c0_131, %c0_132, %c0_133, %c0_134], %147 {strides = array<i32>} : memref<1x8x16x8xf32, #tpu.memory_space<vmem>>, vector<1x8x16x8xf32>,
    return
  }
  func.func @transform_0(%arg0: i32, %arg1: i32) -> (i32, i32, i32, i32) {
    %c0_i32 = arith.constant 0 : i32
    %c0_i32_0 = arith.constant 0 : i32
    %c0_i32_1 = arith.constant 0 : i32
    %c0_i32_2 = arith.constant 0 : i32
    return %arg0, %c0_i32, %c0_i32_0, %c0_i32_1 : i32, i32, i32, i32
  }
  func.func @transform_1(%arg0: i32, %arg1: i32) -> (i32, i32) {
    %c0_i32 = arith.constant 0 : i32
    %c0_i32_0 = arith.constant 0 : i32
    %c0_i32_1 = arith.constant 0 : i32
    return %c0_i32, %c0_i32_0 : i32, i32
  }
  func.func @transform_2(%arg0: i32, %arg1: i32) -> (i32, i32) {
    %c0_i32 = arith.constant 0 : i32
    %c0_i32_0 = arith.constant 0 : i32
    %c0_i32_1 = arith.constant 0 : i32
    return %c0_i32, %c0_i32_0 : i32, i32
  }
  func.func @transform_3(%arg0: i32, %arg1: i32) -> (i32, i32, i32) {
    %c0_i32 = arith.constant 0 : i32
    %c0_i32_0 = arith.constant 0 : i32
    %c0_i32_1 = arith.constant 0 : i32
    %c0_i32_2 = arith.constant 0 : i32
    return %c0_i32, %c0_i32_0, %c0_i32_1 : i32, i32, i32
  }
  func.func @transform_4(%arg0: i32, %arg1: i32) -> (i32, i32) {
    %c0_i32 = arith.constant 0 : i32
    %c0_i32_0 = arith.constant 0 : i32
    %c0_i32_1 = arith.constant 0 : i32
    return %c0_i32, %c0_i32_0 : i32, i32
  }
  func.func @transform_5(%arg0: i32, %arg1: i32) -> (i32, i32) {
    %c0_i32 = arith.constant 0 : i32
    %c0_i32_0 = arith.constant 0 : i32
    %c0_i32_1 = arith.constant 0 : i32
    return %c0_i32, %c0_i32_0 : i32, i32
  }
  func.func @transform_6(%arg0: i32, %arg1: i32) -> (i32, i32) {
    %c0_i32 = arith.constant 0 : i32
    %c0_i32_0 = arith.constant 0 : i32
    %c0_i32_1 = arith.constant 0 : i32
    return %c0_i32, %c0_i32_0 : i32, i32
  }
  func.func @transform_7(%arg0: i32, %arg1: i32) -> (i32, i32, i32) {
    %c0_i32 = arith.constant 0 : i32
    %c0_i32_0 = arith.constant 0 : i32
    %c0_i32_1 = arith.constant 0 : i32
    %c0_i32_2 = arith.constant 0 : i32
    return %c0_i32, %c0_i32_0, %c0_i32_1 : i32, i32, i32
  }
  func.func @transform_8(%arg0: i32, %arg1: i32) -> (i32, i32) {
    %c0_i32 = arith.constant 0 : i32
    %c0_i32_0 = arith.constant 0 : i32
    %c0_i32_1 = arith.constant 0 : i32
    return %c0_i32, %c0_i32_0 : i32, i32
  }
  func.func @transform_9(%arg0: i32, %arg1: i32) -> (i32, i32) {
    %c0_i32 = arith.constant 0 : i32
    %c0_i32_0 = arith.constant 0 : i32
    %c0_i32_1 = arith.constant 0 : i32
    return %c0_i32, %c0_i32_0 : i32, i32
  }
  func.func @transform_10(%arg0: i32, %arg1: i32) -> (i32, i32) {
    %c0_i32 = arith.constant 0 : i32
    %c0_i32_0 = arith.constant 0 : i32
    %c0_i32_1 = arith.constant 0 : i32
    return %c0_i32, %c0_i32_0 : i32, i32
  }
  func.func @transform_11(%arg0: i32, %arg1: i32) -> (i32, i32, i32, i32) {
    %c0_i32 = arith.constant 0 : i32
    %c0_i32_0 = arith.constant 0 : i32
    %c0_i32_1 = arith.constant 0 : i32
    return %arg0, %arg1, %c0_i32, %c0_i32_0 : i32, i32, i32, i32
  }
}

</mosaic_0001>

<llo_original>
// kernel: fpn_downsample_forward.1
$region0: #{fpn_downsample_forward.1}
  #allocation0 [shape = 'u32[]', space=smem, size = 0x4, offset = 0x4, fixed_abs, tag = 'smem constant byte address 0x4 - core index']
  #allocation1 [shape = 'u32[72,128]{1,0:T(1,128)}', space=vmem, size = 0x9000, scoped, tag = 'internal scratch']
  #allocation2 [shape = 'f32[12,18,8]{2,1,0:T(8,128)}', space=vmem, size = 0x24000, scoped, tag = 'scratch operand']
  #allocation3 [shape = 'f32[10,18,8]{2,1,0:T(8,128)}', space=vmem, size = 0x1e000, scoped, tag = 'scratch operand']
  %s0 = inlined_call_operand.vmem [shape: f32[2,20,16,4], index: 0, kind: input, shape index: {}]
  %s1 = inlined_call_operand.vmem [shape: f32[4,8], index: 1, kind: input, shape index: {}]
  %s2 = inlined_call_operand.vmem [shape: f32[1,8], index: 2, kind: input, shape index: {}]
  %s3 = inlined_call_operand.vmem [shape: f32[3,24,16], index: 3, kind: input, shape index: {}]
  %s4 = inlined_call_operand.vmem [shape: f32[1,16], index: 4, kind: input, shape index: {}]
  %s5 = inlined_call_operand.vmem [shape: f32[16,8], index: 5, kind: input, shape index: {}]
  %s6 = inlined_call_operand.vmem [shape: f32[1,8], index: 6, kind: input, shape index: {}]
  %s7 = inlined_call_operand.vmem [shape: f32[3,24,16], index: 7, kind: input, shape index: {}]
  %s8 = inlined_call_operand.vmem [shape: f32[1,16], index: 8, kind: input, shape index: {}]
  %s9 = inlined_call_operand.vmem [shape: f32[16,8], index: 9, kind: input, shape index: {}]
  %s10 = inlined_call_operand.vmem [shape: f32[1,8], index: 10, kind: input, shape index: {}]
  %s11 = inlined_call_operand.vmem [shape: f32[2,16,16,8], index: 11, kind: output, shape index: {}]
  %s12 = sld [smem:[#allocation0]]
  $region77: #{fpn_downsample_forward.1} parent=0
    _
  %s14 = ssub.s32 1, %s12
  %s15 = scalar_select 0, %s14, %s12
  loop: start=0, step=1, limit=6
  $region2: #{fpn_downsample_forward.1} parent=0 // loop_pre_header
    _
  $region3: #{fpn_downsample_forward.1} parent=0 // loop_header
    %s17 = sphi 0, %s21
    %p18 = scmp.ge.s32.totalorder %s17, 6
    %s24 = sphi 0, %s36
    %s25 = sphi 0, %s32
    %s26 = sphi 0, %s24
    %s27 = sphi 0, %s25
    %s28 = sphi 0, %s26
    %s29 = sphi 0, %s27
    %s39 = sphi 0, %s41
    %s42 = sphi 0, %s39
    %s43 = sphi 0, %s42
    %s59 = sphi 0, %s43
    %s63 = sphi 0, %s63
    %s65 = sphi 0, %s63
    %s66 = sphi 0, %s65
    %s80 = sphi 0, %s66
    %s84 = sphi 0, %s84
    %s86 = sphi 0, %s84
    %s87 = sphi 0, %s86
    %s101 = sphi 0, %s87
    %s105 = sphi 0, %s105
    %s107 = sphi 0, %s105
    %s108 = sphi 0, %s107
    %s122 = sphi 0, %s108
    %s126 = sphi 0, %s126
    %s128 = sphi 0, %s126
    %s129 = sphi 0, %s128
    %s143 = sphi 0, %s129
    %s147 = sphi 0, %s147
    %s149 = sphi 0, %s147
    %s150 = sphi 0, %s149
    %s164 = sphi 0, %s150
    %s168 = sphi 0, %s168
    %s170 = sphi 0, %s168
    %s171 = sphi 0, %s170
    %s185 = sphi 0, %s171
    %s189 = sphi 0, %s189
    %s191 = sphi 0, %s189
    %s192 = sphi 0, %s191
    %s206 = sphi 0, %s192
    %s210 = sphi 0, %s210
    %s212 = sphi 0, %s210
    %s213 = sphi 0, %s212
    %s227 = sphi 0, %s213
    %s231 = sphi 0, %s231
    %s233 = sphi 0, %s231
    %s234 = sphi 0, %s233
    %s248 = sphi 0, %s234
    %s252 = sphi 0, %s252
    %s254 = sphi 0, %s252
    %s255 = sphi 0, %s254
    %s269 = sphi 0, %s255
    %s277 = sphi 0, %s279
    %s280 = sphi 0, %s277
    %s281 = sphi 0, %s280
    %s297 = sphi 0, %s281
  $region4: #{fpn_downsample_forward.1} parent=0 // loop_header_branch
    %20 = sbr.rel (%p18) target = $region8
  $region5: #{fpn_downsample_forward.1} parent=0 // loop_body
    %s22 = ssub.s32 %s17, 1
    %s23 = ssub.s32 %s17, 2
    %s30 = sadd.s32 1, %s25
    %p31 = scmp.ge.s32.totalorder %s30, 2
    %s32 = scalar_select %p31, 0, %s30
    %s33 = sadd.s32 1, %s24
    %s34 = scalar_select %p31, %s33, %s24
    %p35 = scmp.ge.s32.totalorder %s34, 2
    %s36 = scalar_select %p35, 0, %s34
    %s37 = ssub.s32 %s24, %s36
    %p38 = scmp.eq.s32.totalorder %s37, 0
    %s40 = sadd.s32 %s39, 1
    %s41 = scalar_select %p38, %s39, %s40
    %p44 = pneg %p38
    %p45 = scmp.eq.s32.totalorder %s17, 3
    %p46 = por %p44, %p45
    %p47 = scmp.ne.s32.totalorder %s39, %s42
    %p48 = scmp.eq.s32.totalorder %s17, 0
    %p49 = por %p47, %p48
    %p50 = scmp.ne.s32.totalorder %s39, %s42
    %p51 = scmp.eq.s32.totalorder %s22, 3
    %p52 = por %p50, %p51
    %p53 = scmp.ne.s32.totalorder %s42, %s43
    %p54 = scmp.eq.s32.totalorder %s22, 0
    %p55 = por %p53, %p54
    %p56 = scmp.ne.s32.totalorder %s42, %s43
    %p57 = scmp.eq.s32.totalorder %s23, 3
    %p58 = por %p56, %p57
    %p60 = scmp.ne.s32.totalorder %s43, %s59
    %p61 = scmp.eq.s32.totalorder %s23, 0
    %p62 = por %p60, %p61
    %s64 = sadd.s32 %s63, 1
    %p67 = scmp.eq.s32.totalorder %s17, 3
    %p68 = scmp.ne.s32.totalorder %s63, %s65
    %p69 = scmp.eq.s32.totalorder %s17, 0
    %p70 = por %p68, %p69
    %p71 = scmp.ne.s32.totalorder %s63, %s65
    %p72 = scmp.eq.s32.totalorder %s22, 3
    %p73 = por %p71, %p72
    %p74 = scmp.ne.s32.totalorder %s65, %s66
    %p75 = scmp.eq.s32.totalorder %s22, 0
    %p76 = por %p74, %p75
    %p77 = scmp.ne.s32.totalorder %s65, %s66
    %p78 = scmp.eq.s32.totalorder %s23, 3
    %p79 = por %p77, %p78
    %p81 = scmp.ne.s32.totalorder %s66, %s80
    %p82 = scmp.eq.s32.totalorder %s23, 0
    %p83 = por %p81, %p82
    %s85 = sadd.s32 %s84, 1
    %p88 = scmp.eq.s32.totalorder %s17, 3
    %p89 = scmp.ne.s32.totalorder %s84, %s86
    %p90 = scmp.eq.s32.totalorder %s17, 0
    %p91 = por %p89, %p90
    %p92 = scmp.ne.s32.totalorder %s84, %s86
    %p93 = scmp.eq.s32.totalorder %s22, 3
    %p94 = por %p92, %p93
    %p95 = scmp.ne.s32.totalorder %s86, %s87
    %p96 = scmp.eq.s32.totalorder %s22, 0
    %p97 = por %p95, %p96
    %p98 = scmp.ne.s32.totalorder %s86, %s87
    %p99 = scmp.eq.s32.totalorder %s23, 3
    %p100 = por %p98, %p99
    %p102 = scmp.ne.s32.totalorder %s87, %s101
    %p103 = scmp.eq.s32.totalorder %s23, 0
    %p104 = por %p102, %p103
    %s106 = sadd.s32 %s105, 1
    %p109 = scmp.eq.s32.totalorder %s17, 3
    %p110 = scmp.ne.s32.totalorder %s105, %s107
    %p111 = scmp.eq.s32.totalorder %s17, 0
    %p112 = por %p110, %p111
    %p113 = scmp.ne.s32.totalorder %s105, %s107
    %p114 = scmp.eq.s32.totalorder %s22, 3
    %p115 = por %p113, %p114
    %p116 = scmp.ne.s32.totalorder %s107, %s108
    %p117 = scmp.eq.s32.totalorder %s22, 0
    %p118 = por %p116, %p117
    %p119 = scmp.ne.s32.totalorder %s107, %s108
    %p120 = scmp.eq.s32.totalorder %s23, 3
    %p121 = por %p119, %p120
    %p123 = scmp.ne.s32.totalorder %s108, %s122
    %p124 = scmp.eq.s32.totalorder %s23, 0
    %p125 = por %p123, %p124
    %s127 = sadd.s32 %s126, 1
    %p130 = scmp.eq.s32.totalorder %s17, 3
    %p131 = scmp.ne.s32.totalorder %s126, %s128
    %p132 = scmp.eq.s32.totalorder %s17, 0
    %p133 = por %p131, %p132
    %p134 = scmp.ne.s32.totalorder %s126, %s128
    %p135 = scmp.eq.s32.totalorder %s22, 3
    %p136 = por %p134, %p135
    %p137 = scmp.ne.s32.totalorder %s128, %s129
    %p138 = scmp.eq.s32.totalorder %s22, 0
    %p139 = por %p137, %p138
    %p140 = scmp.ne.s32.totalorder %s128, %s129
    %p141 = scmp.eq.s32.totalorder %s23, 3
    %p142 = por %p140, %p141
    %p144 = scmp.ne.s32.totalorder %s129, %s143
    %p145 = scmp.eq.s32.totalorder %s23, 0
    %p146 = por %p144, %p145
    %s148 = sadd.s32 %s147, 1
    %p151 = scmp.eq.s32.totalorder %s17, 3
    %p152 = scmp.ne.s32.totalorder %s147, %s149
    %p153 = scmp.eq.s32.totalorder %s17, 0
    %p154 = por %p152, %p153
    %p155 = scmp.ne.s32.totalorder %s147, %s149
    %p156 = scmp.eq.s32.totalorder %s22, 3
    %p157 = por %p155, %p156
    %p158 = scmp.ne.s32.totalorder %s149, %s150
    %p159 = scmp.eq.s32.totalorder %s22, 0
    %p160 = por %p158, %p159
    %p161 = scmp.ne.s32.totalorder %s149, %s150
    %p162 = scmp.eq.s32.totalorder %s23, 3
    %p163 = por %p161, %p162
    %p165 = scmp.ne.s32.totalorder %s150, %s164
    %p166 = scmp.eq.s32.totalorder %s23, 0
    %p167 = por %p165, %p166
    %s169 = sadd.s32 %s168, 1
    %p172 = scmp.eq.s32.totalorder %s17, 3
    %p173 = scmp.ne.s32.totalorder %s168, %s170
    %p174 = scmp.eq.s32.totalorder %s17, 0
    %p175 = por %p173, %p174
    %p176 = scmp.ne.s32.totalorder %s168, %s170
    %p177 = scmp.eq.s32.totalorder %s22, 3
    %p178 = por %p176, %p177
    %p179 = scmp.ne.s32.totalorder %s170, %s171
    %p180 = scmp.eq.s32.totalorder %s22, 0
    %p181 = por %p179, %p180
    %p182 = scmp.ne.s32.totalorder %s170, %s171
    %p183 = scmp.eq.s32.totalorder %s23, 3
    %p184 = por %p182, %p183
    %p186 = scmp.ne.s32.totalorder %s171, %s185
    %p187 = scmp.eq.s32.totalorder %s23, 0
    %p188 = por %p186, %p187
    %s190 = sadd.s32 %s189, 1
    %p193 = scmp.eq.s32.totalorder %s17, 3
    %p194 = scmp.ne.s32.totalorder %s189, %s191
    %p195 = scmp.eq.s32.totalorder %s17, 0
    %p196 = por %p194, %p195
    %p197 = scmp.ne.s32.totalorder %s189, %s191
    %p198 = scmp.eq.s32.totalorder %s22, 3
    %p199 = por %p197, %p198
    %p200 = scmp.ne.s32.totalorder %s191, %s192
    %p201 = scmp.eq.s32.totalorder %s22, 0
    %p202 = por %p200, %p201
    %p203 = scmp.ne.s32.totalorder %s191, %s192
    %p204 = scmp.eq.s32.totalorder %s23, 3
    %p205 = por %p203, %p204
    %p207 = scmp.ne.s32.totalorder %s192, %s206
    %p208 = scmp.eq.s32.totalorder %s23, 0
    %p209 = por %p207, %p208
    %s211 = sadd.s32 %s210, 1
    %p214 = scmp.eq.s32.totalorder %s17, 3
    %p215 = scmp.ne.s32.totalorder %s210, %s212
    %p216 = scmp.eq.s32.totalorder %s17, 0
    %p217 = por %p215, %p216
    %p218 = scmp.ne.s32.totalorder %s210, %s212
    %p219 = scmp.eq.s32.totalorder %s22, 3
    %p220 = por %p218, %p219
    %p221 = scmp.ne.s32.totalorder %s212, %s213
    %p222 = scmp.eq.s32.totalorder %s22, 0
    %p223 = por %p221, %p222
    %p224 = scmp.ne.s32.totalorder %s212, %s213
    %p225 = scmp.eq.s32.totalorder %s23, 3
    %p226 = por %p224, %p225
    %p228 = scmp.ne.s32.totalorder %s213, %s227
    %p229 = scmp.eq.s32.totalorder %s23, 0
    %p230 = por %p228, %p229
    %s232 = sadd.s32 %s231, 1
    %p235 = scmp.eq.s32.totalorder %s17, 3
    %p236 = scmp.ne.s32.totalorder %s231, %s233
    %p237 = scmp.eq.s32.totalorder %s17, 0
    %p238 = por %p236, %p237
    %p239 = scmp.ne.s32.totalorder %s231, %s233
    %p240 = scmp.eq.s32.totalorder %s22, 3
    %p241 = por %p239, %p240
    %p242 = scmp.ne.s32.totalorder %s233, %s234
    %p243 = scmp.eq.s32.totalorder %s22, 0
    %p244 = por %p242, %p243
    %p245 = scmp.ne.s32.totalorder %s233, %s234
    %p246 = scmp.eq.s32.totalorder %s23, 3
    %p247 = por %p245, %p246
    %p249 = scmp.ne.s32.totalorder %s234, %s248
    %p250 = scmp.eq.s32.totalorder %s23, 0
    %p251 = por %p249, %p250
    %s253 = sadd.s32 %s252, 1
    %p256 = scmp.eq.s32.totalorder %s17, 3
    %p257 = scmp.ne.s32.totalorder %s252, %s254
    %p258 = scmp.eq.s32.totalorder %s17, 0
    %p259 = por %p257, %p258
    %p260 = scmp.ne.s32.totalorder %s252, %s254
    %p261 = scmp.eq.s32.totalorder %s22, 3
    %p262 = por %p260, %p261
    %p263 = scmp.ne.s32.totalorder %s254, %s255
    %p264 = scmp.eq.s32.totalorder %s22, 0
    %p265 = por %p263, %p264
    %p266 = scmp.ne.s32.totalorder %s254, %s255
    %p267 = scmp.eq.s32.totalorder %s23, 3
    %p268 = por %p266, %p267
    %p270 = scmp.ne.s32.totalorder %s255, %s269
    %p271 = scmp.eq.s32.totalorder %s23, 0
    %p272 = por %p270, %p271
    %s273 = ssub.s32 %s24, %s36
    %s274 = ssub.s32 %s25, %s32
    %s275 = sor.u32 %s273, %s274
    %p276 = scmp.eq.s32.totalorder %s275, 0
    %s278 = sadd.s32 %s277, 1
    %s279 = scalar_select %p276, %s277, %s278
    %p282 = pneg %p276
    %p283 = scmp.eq.s32.totalorder %s17, 3
    %p284 = por %p282, %p283
    %p285 = scmp.ne.s32.totalorder %s277, %s280
    %p286 = scmp.eq.s32.totalorder %s17, 0
    %p287 = por %p285, %p286
    %p288 = scmp.ne.s32.totalorder %s277, %s280
    %p289 = scmp.eq.s32.totalorder %s22, 3
    %p290 = por %p288, %p289
    %p291 = scmp.ne.s32.totalorder %s280, %s281
    %p292 = scmp.eq.s32.totalorder %s22, 0
    %p293 = por %p291, %p292
    %p294 = scmp.ne.s32.totalorder %s280, %s281
    %p295 = scmp.eq.s32.totalorder %s23, 3
    %p296 = por %p294, %p295
    %p298 = scmp.ne.s32.totalorder %s281, %s297
    %p299 = scmp.eq.s32.totalorder %s23, 0
    %p300 = por %p298, %p299
    %p301 = scmp.le.s32.totalorder 1, %s17
    %p302 = scmp.lt.s32.totalorder %s17, 5
    %p303 = pnand %p301, %p302
    %p304 = pneg %p303
    // Predicated region
    $region9: #{fpn_downsample_forward.1} parent=5 // pred_check
      _
    $region10: #{fpn_downsample_forward.1} parent=5 // pred_check_branch
      %306 = sbr.rel (%p303) target = $region12
    $region11: #{fpn_downsample_forward.1} parent=5 // pred_region
      %s307 = ssub.s32 %s17, 1
      // Predicated region
      $region13: #{fpn_downsample_forward.1} parent=11 // pred_check
        %p308 = pneg %p76
      $region14: #{fpn_downsample_forward.1} parent=11 // pred_check_branch
        %310 = sbr.rel (%p308) target = $region16
      $region15: #{fpn_downsample_forward.1} parent=11 // pred_region
        _
      $region16: #{fpn_downsample_forward.1} parent=11 // pred_fallthru
        _
      // Predicated region
      $region17: #{fpn_downsample_forward.1} parent=11 // pred_check
        %p311 = pneg %p97
      $region18: #{fpn_downsample_forward.1} parent=11 // pred_check_branch
        %313 = sbr.rel (%p311) target = $region20
      $region19: #{fpn_downsample_forward.1} parent=11 // pred_region
        _
      $region20: #{fpn_downsample_forward.1} parent=11 // pred_fallthru
        _
      // Predicated region
      $region21: #{fpn_downsample_forward.1} parent=11 // pred_check
        %p314 = pneg %p118
      $region22: #{fpn_downsample_forward.1} parent=11 // pred_check_branch
        %316 = sbr.rel (%p314) target = $region24
      $region23: #{fpn_downsample_forward.1} parent=11 // pred_region
        _
      $region24: #{fpn_downsample_forward.1} parent=11 // pred_fallthru
        _
      // Predicated region
      $region25: #{fpn_downsample_forward.1} parent=11 // pred_check
        %p317 = pneg %p139
      $region26: #{fpn_downsample_forward.1} parent=11 // pred_check_branch
        %319 = sbr.rel (%p317) target = $region28
      $region27: #{fpn_downsample_forward.1} parent=11 // pred_region
        _
      $region28: #{fpn_downsample_forward.1} parent=11 // pred_fallthru
        _
      // Predicated region
      $region29: #{fpn_downsample_forward.1} parent=11 // pred_check
        %p320 = pneg %p160
      $region30: #{fpn_downsample_forward.1} parent=11 // pred_check_branch
        %322 = sbr.rel (%p320) target = $region32
      $region31: #{fpn_downsample_forward.1} parent=11 // pred_region
        _
      $region32: #{fpn_downsample_forward.1} parent=11 // pred_fallthru
        _
      // Predicated region
      $region33: #{fpn_downsample_forward.1} parent=11 // pred_check
        %p323 = pneg %p181
      $region34: #{fpn_downsample_forward.1} parent=11 // pred_check_branch
        %325 = sbr.rel (%p323) target = $region36
      $region35: #{fpn_downsample_forward.1} parent=11 // pred_region
        _
      $region36: #{fpn_downsample_forward.1} parent=11 // pred_fallthru
        _
      // Predicated region
      $region37: #{fpn_downsample_forward.1} parent=11 // pred_check
        %p326 = pneg %p202
      $region38: #{fpn_downsample_forward.1} parent=11 // pred_check_branch
        %328 = sbr.rel (%p326) target = $region40
      $region39: #{fpn_downsample_forward.1} parent=11 // pred_region
        _
      $region40: #{fpn_downsample_forward.1} parent=11 // pred_fallthru
        _
      // Predicated region
      $region41: #{fpn_downsample_forward.1} parent=11 // pred_check
        %p329 = pneg %p223
      $region42: #{fpn_downsample_forward.1} parent=11 // pred_check_branch
        %331 = sbr.rel (%p329) target = $region44
      $region43: #{fpn_downsample_forward.1} parent=11 // pred_region
        _
      $region44: #{fpn_downsample_forward.1} parent=11 // pred_fallthru
        _
      // Predicated region
      $region45: #{fpn_downsample_forward.1} parent=11 // pred_check
        %p332 = pneg %p244
      $region46: #{fpn_downsample_forward.1} parent=11 // pred_check_branch
        %334 = sbr.rel (%p332) target = $region48
      $region47: #{fpn_downsample_forward.1} parent=11 // pred_region
        _
      $region48: #{fpn_downsample_forward.1} parent=11 // pred_fallthru
        _
      // Predicated region
      $region49: #{fpn_downsample_forward.1} parent=11 // pred_check
        %p335 = pneg %p265
      $region50: #{fpn_downsample_forward.1} parent=11 // pred_check_branch
        %337 = sbr.rel (%p335) target = $region52
      $region51: #{fpn_downsample_forward.1} parent=11 // pred_region
        _
      $region52: #{fpn_downsample_forward.1} parent=11 // pred_fallthru
        _
    $region12: #{fpn_downsample_forward.1} parent=5 // pred_fallthru
      _
    %p338 = scmp.lt.s32.totalorder %s17, 4
    // Predicated region
    $region53: #{fpn_downsample_forward.1} parent=5 // pred_check
      %p339 = pneg %p338
    $region54: #{fpn_downsample_forward.1} parent=5 // pred_check_branch
      %341 = sbr.rel (%p339) target = $region56
    $region55: #{fpn_downsample_forward.1} parent=5 // pred_region
      // Predicated region
      $region57: #{fpn_downsample_forward.1} parent=55 // pred_check
        %p342 = pneg %p49
      $region58: #{fpn_downsample_forward.1} parent=55 // pred_check_branch
        %344 = sbr.rel (%p342) target = $region60
      $region59: #{fpn_downsample_forward.1} parent=55 // pred_region
        %p345 = scmp.lt.s32.totalorder %s24, 1
        %s346 = scalar_select %p345, %s24, 1
        %s347 = smul.addr %s346, 40
        %s348 = smul.addr %s347, 8
        %s349 = scalar_lea.vmem %s0, %s348
      $region60: #{fpn_downsample_forward.1} parent=55 // pred_fallthru
        _
    $region56: #{fpn_downsample_forward.1} parent=5 // pred_fallthru
      _
    %p350 = scmp.le.s32.totalorder 1, %s17
    %p351 = scmp.lt.s32.totalorder %s17, 5
    %p352 = pnand %p350, %p351
    %p353 = pneg %p352
    // Predicated region
    $region61: #{fpn_downsample_forward.1} parent=5 // pred_check
      _
    $region62: #{fpn_downsample_forward.1} parent=5 // pred_check_branch
      %355 = sbr.rel (%p352) target = $region64
    $region63: #{fpn_downsample_forward.1} parent=5 // pred_region
      %s356 = ssub.s32 %s17, 1
      %p357 = scmp.lt.s32.totalorder %s26, 1
      %s358 = scalar_select %p357, %s26, 1
      %s359 = smul.addr %s358, 40
      %s360 = smul.addr %s359, 8
      %s361 = scalar_lea.vmem %s0, %s360
      %p362 = pneg %p55
      %p363 = pneg %p52
      %p364 = pneg %p76
      %p365 = pneg %p73
      %p366 = pneg %p97
      %p367 = pneg %p94
      %p368 = pneg %p118
      %p369 = pneg %p115
      %p370 = pneg %p139
      %p371 = pneg %p136
      %p372 = pneg %p160
      %p373 = pneg %p157
      %p374 = pneg %p181
      %p375 = pneg %p178
      %p376 = pneg %p202
      %p377 = pneg %p199
      %p378 = pneg %p223
      %p379 = pneg %p220
      %p380 = pneg %p244
      %p381 = pneg %p241
      %p382 = pneg %p265
      %p383 = pneg %p262
      %p384 = pneg %p293
      %p385 = pneg %p290
      %s386 = smul.u32 8, %s27
      %p387 = scmp.lt.s32.totalorder %s26, 1
      %s388 = scalar_select %p387, %s26, 1
      %p389 = scmp.lt.s32.totalorder %s386, 15
      %s390 = scalar_select %p389, %s386, 15
      %s391 = smul.addr %s390, 2
      %s392 = smul.addr %s388, 32
      %s393 = sadd.s32 %s391, %s392
      %s394 = smul.addr %s393, 8
      %s395 = scalar_lea.vmem %s11, %s394
      %p396 = scmp.lt.s32.totalorder %s26, 1
      %s397 = scalar_select %p396, %s26, 1
      %s398 = smul.addr %s397, 40
      %s399 = smul.addr %s398, 8
      %s400 = scalar_lea.vmem %s0, %s399
      %s401 = smul.u32 8, %s27
      %p402 = scmp.lt.s32.totalorder %s26, 1
      %s403 = scalar_select %p402, %s26, 1
      %p404 = scmp.lt.s32.totalorder %s401, 15
      %s405 = scalar_select %p404, %s401, 15
      %s406 = smul.addr %s405, 2
      %s407 = smul.addr %s403, 32
      %s408 = sadd.s32 %s406, %s407
      %s409 = smul.addr %s408, 8
      %s410 = scalar_lea.vmem %s11, %s409
      %s411 = smul.u32 8, %s27
      %s412 = smul.u32 %s27, 8
      %s413 = smul.u32 %s412, 16
      %s414 = scalar_lea.vmem %s400, %s413
      %v415 = vld [vmem:[%s414] sm:$0xff]
      %v416 = vld [vmem:[%s414 + $0x8] sm:$0xff]
      %v417 = vld [vmem:[%s414 + $0x10] sm:$0xff]
      %v418 = vld [vmem:[%s414 + $0x18] sm:$0xff]
      %v419 = vld [vmem:[%s414 + $0x20] sm:$0xff]
      %v420 = vld [vmem:[%s414 + $0x28] sm:$0xff]
      %v421 = vld [vmem:[%s414 + $0x30] sm:$0xff]
      %v422 = vld [vmem:[%s414 + $0x38] sm:$0xff]
      %v423 = vld [vmem:[%s414 + $0x40] sm:$0xff]
      %v424 = vld [vmem:[%s414 + $0x48] sm:$0xff]
      %v425 = vld [vmem:[%s414 + $0x50] sm:$0xff]
      %v426 = vld [vmem:[%s414 + $0x58] sm:$0xff]
      %v427 = vld [vmem:[%s414 + $0x60] sm:$0xff]
      %v428 = vld [vmem:[%s414 + $0x68] sm:$0xff]
      %v429 = vld [vmem:[%s414 + $0x70] sm:$0xff]
      %v430 = vld [vmem:[%s414 + $0x78] sm:$0xff]
      %v431 = vld [vmem:[%s414 + $0x80] sm:$0xff]
      %v432 = vld [vmem:[%s414 + $0x88] sm:$0xff]
      %v433 = vld [vmem:[%s414 + $0x90] sm:$0xff]
      %v434 = vld [vmem:[%s414 + $0x98] sm:$0xff]
      %v435 = vld [vmem:[%s414 + $0xa0] sm:$0xff]
      %v436 = vld [vmem:[%s414 + $0xa8] sm:$0xff]
      %v437 = vld [vmem:[%s414 + $0xb0] sm:$0xff]
      %v438 = vld [vmem:[%s414 + $0xb8] sm:$0xff]
      %v439 = vld [vmem:[%s1] sm:$0xf]
      %v440 = vld [vmem:[%s2] sm:$0x1]
      %v442 = vperm.slane %v440, 0
      %vm444 = vcmask 31744
      %v446 = vsel %vm444, %v415, 0
      %v449 = vsel %vm444, %v416, 0
      %v452 = vsel %vm444, %v417, 0
      %v455 = vsel %vm444, %v418, 0
      %v458 = vsel %vm444, %v419, 0
      %v461 = vsel %vm444, %v420, 0
      %v464 = vsel %vm444, %v421, 0
      %v467 = vsel %vm444, %v422, 0
      %v470 = vsel %vm444, %v423, 0
      %v473 = vsel %vm444, %v424, 0
      %v476 = vsel %vm444, %v425, 0
      %v479 = vsel %vm444, %v426, 0
      %v482 = vsel %vm444, %v427, 0
      %v485 = vsel %vm444, %v428, 0
      %v488 = vsel %vm444, %v429, 0
      %v491 = vsel %vm444, %v430, 0
      %v494 = vsel %vm444, %v431, 0
      %v497 = vsel %vm444, %v432, 0
      %v500 = vsel %vm444, %v433, 0
      %v503 = vsel %vm444, %v434, 0
      %v506 = vsel %vm444, %v435, 0
      %v509 = vsel %vm444, %v436, 0
      %v512 = vsel %vm444, %v437, 0
      %v515 = vsel %vm444, %v438, 0
      %vm517 = vcmask 1043456
      %v519 = vsel %vm517, %v439, 0
      %521 = vmatpush.msra.mxu0 0.0
      %522 = vmatpush.msra.mxu0 0.0
      %523 = vmatpush.msra.mxu0 0.0
      %524 = vmatpush.msra.mxu0 0.0
      %525 = vmatpush.msra.mxu0 0.0
      %526 = vmatpush.msra.mxu0 0.0
      %527 = vmatpush.msra.mxu0 0.0
      %528 = vmatpush.msra.mxu0 0.0
      %529 = vmatpush.msra.mxu0 0.0
      %530 = vmatpush.msra.mxu0 0.0
      %531 = vmatpush.msra.mxu0 0.0
      %532 = vmatpush.msra.mxu0 0.0
      %533 = vmatpush.msra.mxu0 0.0
      %534 = vmatpush.msra.mxu0 0.0
      %535 = vmatpush.msra.mxu0 0.0
      %536 = vmatpush.msra.mxu0 %v519
      %537 = vmatmul.f32.gmra.mxu0 %v446
      %v538 = vpop.f32.mrf.mxu0
      %v539 = vadd.f32 %v442, %v538
      %540 = vmatmul.f32.gmra.mxu0 %v449
      %v541 = vpop.f32.mrf.mxu0
      %v542 = vadd.f32 %v442, %v541
      %543 = vmatmul.f32.gmra.mxu0 %v452
      %v544 = vpop.f32.mrf.mxu0
      %v545 = vadd.f32 %v442, %v544
      %546 = vmatmul.f32.gmra.mxu0 %v455
      %v547 = vpop.f32.mrf.mxu0
      %v548 = vadd.f32 %v442, %v547
      %549 = vmatmul.f32.gmra.mxu0 %v458
      %v550 = vpop.f32.mrf.mxu0
      %v551 = vadd.f32 %v442, %v550
      %552 = vmatmul.f32.gmra.mxu0 %v461
      %v553 = vpop.f32.mrf.mxu0
      %v554 = vadd.f32 %v442, %v553
      %555 = vmatmul.f32.gmra.mxu0 %v464
      %v556 = vpop.f32.mrf.mxu0
      %v557 = vadd.f32 %v442, %v556
      %558 = vmatmul.f32.gmra.mxu0 %v467
      %v559 = vpop.f32.mrf.mxu0
      %v560 = vadd.f32 %v442, %v559
      %561 = vmatmul.f32.gmra.mxu0 %v470
      %v562 = vpop.f32.mrf.mxu0
      %v563 = vadd.f32 %v442, %v562
      %564 = vmatmul.f32.gmra.mxu0 %v473
      %v565 = vpop.f32.mrf.mxu0
      %v566 = vadd.f32 %v442, %v565
      %567 = vmatmul.f32.gmra.mxu0 %v476
      %v568 = vpop.f32.mrf.mxu0
      %v569 = vadd.f32 %v442, %v568
      %570 = vmatmul.f32.gmra.mxu0 %v479
      %v571 = vpop.f32.mrf.mxu0
      %v572 = vadd.f32 %v442, %v571
      %573 = vmatmul.f32.gmra.mxu0 %v482
      %v574 = vpop.f32.mrf.mxu0
      %v575 = vadd.f32 %v442, %v574
      %576 = vmatmul.f32.gmra.mxu0 %v485
      %v577 = vpop.f32.mrf.mxu0
      %v578 = vadd.f32 %v442, %v577
      %579 = vmatmul.f32.gmra.mxu0 %v488
      %v580 = vpop.f32.mrf.mxu0
      %v581 = vadd.f32 %v442, %v580
      %582 = vmatmul.f32.gmra.mxu0 %v491
      %v583 = vpop.f32.mrf.mxu0
      %v584 = vadd.f32 %v442, %v583
      %585 = vmatmul.f32.gmra.mxu0 %v494
      %v586 = vpop.f32.mrf.mxu0
      %v587 = vadd.f32 %v442, %v586
      %588 = vmatmul.f32.gmra.mxu0 %v497
      %v589 = vpop.f32.mrf.mxu0
      %v590 = vadd.f32 %v442, %v589
      %591 = vmatmul.f32.gmra.mxu0 %v500
      %v592 = vpop.f32.mrf.mxu0
      %v593 = vadd.f32 %v442, %v592
      %594 = vmatmul.f32.gmra.mxu0 %v503
      %v595 = vpop.f32.mrf.mxu0
      %v596 = vadd.f32 %v442, %v595
      %597 = vmatmul.f32.gmra.mxu0 %v506
      %v598 = vpop.f32.mrf.mxu0
      %v599 = vadd.f32 %v442, %v598
      %600 = vmatmul.f32.gmra.mxu0 %v509
      %v601 = vpop.f32.mrf.mxu0
      %v602 = vadd.f32 %v442, %v601
      %603 = vmatmul.f32.gmra.mxu0 %v512
      %v604 = vpop.f32.mrf.mxu0
      %v605 = vadd.f32 %v442, %v604
      %606 = vmatmul.f32.gmra.mxu0 %v515
      %v607 = vpop.f32.mrf.mxu0
      %v608 = vadd.f32 %v442, %v607
      %609 = vdwg.mxu0
      %vm610 = vcmp.gt.f32.partialorder %v539, 0.0
      %vm611 = vcmp.gt.f32.partialorder %v542, 0.0
      %vm612 = vcmp.gt.f32.partialorder %v545, 0.0
      %vm613 = vcmp.gt.f32.partialorder %v548, 0.0
      %vm614 = vcmp.gt.f32.partialorder %v551, 0.0
      %vm615 = vcmp.gt.f32.partialorder %v554, 0.0
      %vm616 = vcmp.gt.f32.partialorder %v557, 0.0
      %vm617 = vcmp.gt.f32.partialorder %v560, 0.0
      %vm618 = vcmp.gt.f32.partialorder %v563, 0.0
      %vm619 = vcmp.gt.f32.partialorder %v566, 0.0
      %vm620 = vcmp.gt.f32.partialorder %v569, 0.0
      %vm621 = vcmp.gt.f32.partialorder %v572, 0.0
      %vm622 = vcmp.gt.f32.partialorder %v575, 0.0
      %vm623 = vcmp.gt.f32.partialorder %v578, 0.0
      %vm624 = vcmp.gt.f32.partialorder %v581, 0.0
      %vm625 = vcmp.gt.f32.partialorder %v584, 0.0
      %vm626 = vcmp.gt.f32.partialorder %v587, 0.0
      %vm627 = vcmp.gt.f32.partialorder %v590, 0.0
      %vm628 = vcmp.gt.f32.partialorder %v593, 0.0
      %vm629 = vcmp.gt.f32.partialorder %v596, 0.0
      %vm630 = vcmp.gt.f32.partialorder %v599, 0.0
      %vm631 = vcmp.gt.f32.partialorder %v602, 0.0
      %vm632 = vcmp.gt.f32.partialorder %v605, 0.0
      %vm633 = vcmp.gt.f32.partialorder %v608, 0.0
      %v634 = vmul.f32 %v539, 0.01
      %v635 = vmul.f32 %v542, 0.01
      %v636 = vmul.f32 %v545, 0.01
      %v637 = vmul.f32 %v548, 0.01
      %v638 = vmul.f32 %v551, 0.01
      %v639 = vmul.f32 %v554, 0.01
      %v640 = vmul.f32 %v557, 0.01
      %v641 = vmul.f32 %v560, 0.01
      %v642 = vmul.f32 %v563, 0.01
      %v643 = vmul.f32 %v566, 0.01
      %v644 = vmul.f32 %v569, 0.01
      %v645 = vmul.f32 %v572, 0.01
      %v646 = vmul.f32 %v575, 0.01
      %v647 = vmul.f32 %v578, 0.01
      %v648 = vmul.f32 %v581, 0.01
      %v649 = vmul.f32 %v584, 0.01
      %v650 = vmul.f32 %v587, 0.01
      %v651 = vmul.f32 %v590, 0.01
      %v652 = vmul.f32 %v593, 0.01
      %v653 = vmul.f32 %v596, 0.01
      %v654 = vmul.f32 %v599, 0.01
      %v655 = vmul.f32 %v602, 0.01
      %v656 = vmul.f32 %v605, 0.01
      %v657 = vmul.f32 %v608, 0.01
      %v658 = vsel %vm610, %v539, %v634
      %v659 = vsel %vm611, %v542, %v635
      %v660 = vsel %vm612, %v545, %v636
      %v661 = vsel %vm613, %v548, %v637
      %v662 = vsel %vm614, %v551, %v638
      %v663 = vsel %vm615, %v554, %v639
      %v664 = vsel %vm616, %v557, %v640
      %v665 = vsel %vm617, %v560, %v641
      %v666 = vsel %vm618, %v563, %v642
      %v667 = vsel %vm619, %v566, %v643
      %v668 = vsel %vm620, %v569, %v644
      %v669 = vsel %vm621, %v572, %v645
      %v670 = vsel %vm622, %v575, %v646
      %v671 = vsel %vm623, %v578, %v647
      %v672 = vsel %vm624, %v581, %v648
      %v673 = vsel %vm625, %v584, %v649
      %v674 = vsel %vm626, %v587, %v650
      %v675 = vsel %vm627, %v590, %v651
      %v676 = vsel %vm628, %v593, %v652
      %v677 = vsel %vm629, %v596, %v653
      %v678 = vsel %vm630, %v599, %v654
      %v679 = vsel %vm631, %v602, %v655
      %v680 = vsel %vm632, %v605, %v656
      %v681 = vsel %vm633, %v608, %v657
      %s682 = ssub.s32 %s412, 2
      %v683 = vstv %s682
      %v684 = vadd.s32 %v683, 1
      %v685 = vadd.s32 %v683, 2
      %v686 = vadd.s32 %v683, 3
      %v687 = vadd.s32 %v683, 4
      %v688 = vadd.s32 %v683, 5
      %v689 = vadd.s32 %v683, 6
      %v690 = vadd.s32 %v683, 7
      %v691 = vadd.s32 %v683, 8
      %v692 = vadd.s32 %v683, 9
      %v693 = vadd.s32 %v683, 10
      %v694 = vadd.s32 %v683, 11
      %vm695 = vcmp.ge.s32.totalorder %v683, 0
      %vm696 = vcmp.ge.s32.totalorder %v684, 0
      %vm697 = vcmp.ge.s32.totalorder %v685, 0
      %vm698 = vcmp.ge.s32.totalorder %v686, 0
      %vm699 = vcmp.ge.s32.totalorder %v687, 0
      %vm700 = vcmp.ge.s32.totalorder %v688, 0
      %vm701 = vcmp.ge.s32.totalorder %v689, 0
      %vm702 = vcmp.ge.s32.totalorder %v690, 0
      %vm703 = vcmp.ge.s32.totalorder %v691, 0
      %vm704 = vcmp.ge.s32.totalorder %v692, 0
      %vm705 = vcmp.ge.s32.totalorder %v693, 0
      %vm706 = vcmp.ge.s32.totalorder %v694, 0
      %vm707 = vcmp.lt.s32.totalorder %v683, 16
      %vm708 = vcmp.lt.s32.totalorder %v684, 16
      %vm709 = vcmp.lt.s32.totalorder %v685, 16
      %vm710 = vcmp.lt.s32.totalorder %v686, 16
      %vm711 = vcmp.lt.s32.totalorder %v687, 16
      %vm712 = vcmp.lt.s32.totalorder %v688, 16
      %vm713 = vcmp.lt.s32.totalorder %v689, 16
      %vm714 = vcmp.lt.s32.totalorder %v690, 16
      %vm715 = vcmp.lt.s32.totalorder %v691, 16
      %vm716 = vcmp.lt.s32.totalorder %v692, 16
      %vm717 = vcmp.lt.s32.totalorder %v693, 16
      %vm718 = vcmp.lt.s32.totalorder %v694, 16
      %vm719 = vmand %vm695, %vm707
      %vm720 = vmand %vm696, %vm708
      %vm721 = vmand %vm697, %vm709
      %vm722 = vmand %vm698, %vm710
      %vm723 = vmand %vm699, %vm711
      %vm724 = vmand %vm700, %vm712
      %vm725 = vmand %vm701, %vm713
      %vm726 = vmand %vm702, %vm714
      %vm727 = vmand %vm703, %vm715
      %vm728 = vmand %vm704, %vm716
      %vm729 = vmand %vm705, %vm717
      %vm730 = vmand %vm706, %vm718
      %v731 = vsel %vm719, 1, 0
      %v732 = vsel %vm720, 1, 0
      %v733 = vsel %vm721, 1, 0
      %v734 = vsel %vm722, 1, 0
      %v735 = vsel %vm723, 1, 0
      %v736 = vsel %vm724, 1, 0
      %v737 = vsel %vm725, 1, 0
      %v738 = vsel %vm726, 1, 0
      %v739 = vsel %vm727, 1, 0
      %v740 = vsel %vm728, 1, 0
      %v741 = vsel %vm729, 1, 0
      %v742 = vsel %vm730, 1, 0
      %vm743 = vcmp.eq.s32.totalorder %v731, 1
      %vm744 = vcmp.eq.s32.totalorder %v732, 1
      %vm745 = vcmp.eq.s32.totalorder %v733, 1
      %vm746 = vcmp.eq.s32.totalorder %v734, 1
      %vm747 = vcmp.eq.s32.totalorder %v735, 1
      %vm748 = vcmp.eq.s32.totalorder %v736, 1
      %vm749 = vcmp.eq.s32.totalorder %v737, 1
      %vm750 = vcmp.eq.s32.totalorder %v738, 1
      %vm751 = vcmp.eq.s32.totalorder %v739, 1
      %vm752 = vcmp.eq.s32.totalorder %v740, 1
      %vm753 = vcmp.eq.s32.totalorder %v741, 1
      %vm754 = vcmp.eq.s32.totalorder %v742, 1
      %v755 = vsel %vm743, %v658, 0.0
      %v756 = vsel %vm743, %v659, 0.0
      %v757 = vsel %vm744, %v660, 0.0
      %v758 = vsel %vm744, %v661, 0.0
      %v759 = vsel %vm745, %v662, 0.0
      %v760 = vsel %vm745, %v663, 0.0
      %v761 = vsel %vm746, %v664, 0.0
      %v762 = vsel %vm746, %v665, 0.0
      %v763 = vsel %vm747, %v666, 0.0
      %v764 = vsel %vm747, %v667, 0.0
      %v765 = vsel %vm748, %v668, 0.0
      %v766 = vsel %vm748, %v669, 0.0
      %v767 = vsel %vm749, %v670, 0.0
      %v768 = vsel %vm749, %v671, 0.0
      %v769 = vsel %vm750, %v672, 0.0
      %v770 = vsel %vm750, %v673, 0.0
      %v771 = vsel %vm751, %v674, 0.0
      %v772 = vsel %vm751, %v675, 0.0
      %v773 = vsel %vm752, %v676, 0.0
      %v774 = vsel %vm752, %v677, 0.0
      %v775 = vsel %vm753, %v678, 0.0
      %v776 = vsel %vm753, %v679, 0.0
      %v777 = vsel %vm754, %v680, 0.0
      %v778 = vsel %vm754, %v681, 0.0
      %vm779 = vcmask 57344
      %780 = vst.msk [vmem:[#allocation2] sm:$0x1] %vm779, 0.0
      %781 = vst.msk [vmem:[#allocation2 + $0x18] sm:$0x1] %vm779, 0.0
      %782 = vst.msk [vmem:[#allocation2 + $0x30] sm:$0x1] %vm779, 0.0
      %783 = vst.msk [vmem:[#allocation2 + $0x48] sm:$0x1] %vm779, 0.0
      %784 = vst.msk [vmem:[#allocation2 + $0x60] sm:$0x1] %vm779, 0.0
      %785 = vst.msk [vmem:[#allocation2 + $0x78] sm:$0x1] %vm779, 0.0
      %786 = vst.msk [vmem:[#allocation2 + $0x90] sm:$0x1] %vm779, 0.0
      %787 = vst.msk [vmem:[#allocation2 + $0xa8] sm:$0x1] %vm779, 0.0
      %788 = vst.msk [vmem:[#allocation2 + $0xc0] sm:$0x1] %vm779, 0.0
      %789 = vst.msk [vmem:[#allocation2 + $0xd8] sm:$0x1] %vm779, 0.0
      %790 = vst.msk [vmem:[#allocation2 + $0xf0] sm:$0x1] %vm779, 0.0
      %791 = vst.msk [vmem:[#allocation2 + $0x108] sm:$0x1] %vm779, 0.0
      %792 = vst.msk [vmem:[#allocation2 + $0x11] sm:$0x1] %vm779, 0.0
      %793 = vst.msk [vmem:[#allocation2 + $0x29] sm:$0x1] %vm779, 0.0
      %794 = vst.msk [vmem:[#allocation2 + $0x41] sm:$0x1] %vm779, 0.0
      %795 = vst.msk [vmem:[#allocation2 + $0x59] sm:$0x1] %vm779, 0.0
      %796 = vst.msk [vmem:[#allocation2 + $0x71] sm:$0x1] %vm779, 0.0
      %797 = vst.msk [vmem:[#allocation2 + $0x89] sm:$0x1] %vm779, 0.0
      %798 = vst.msk [vmem:[#allocation2 + $0xa1] sm:$0x1] %vm779, 0.0
      %799 = vst.msk [vmem:[#allocation2 + $0xb9] sm:$0x1] %vm779, 0.0
      %800 = vst.msk [vmem:[#allocation2 + $0xd1] sm:$0x1] %vm779, 0.0
      %801 = vst.msk [vmem:[#allocation2 + $0xe9] sm:$0x1] %vm779, 0.0
      %802 = vst.msk [vmem:[#allocation2 + $0x101] sm:$0x1] %vm779, 0.0
      %803 = vst.msk [vmem:[#allocation2 + $0x119] sm:$0x1] %vm779, 0.0
      %vm804 = vcmask 64512
      %805 = vst.msk [vmem:[#allocation2 + $0x1] sm:$0xff] %vm804, %v755
      %806 = vst.msk [vmem:[#allocation2 + $0x9] sm:$0xff] %vm804, %v756
      %807 = vst.msk [vmem:[#allocation2 + $0x19] sm:$0xff] %vm804, %v757
      %808 = vst.msk [vmem:[#allocation2 + $0x21] sm:$0xff] %vm804, %v758
      %809 = vst.msk [vmem:[#allocation2 + $0x31] sm:$0xff] %vm804, %v759
      %810 = vst.msk [vmem:[#allocation2 + $0x39] sm:$0xff] %vm804, %v760
      %811 = vst.msk [vmem:[#allocation2 + $0x49] sm:$0xff] %vm804, %v761
      %812 = vst.msk [vmem:[#allocation2 + $0x51] sm:$0xff] %vm804, %v762
      %813 = vst.msk [vmem:[#allocation2 + $0x61] sm:$0xff] %vm804, %v763
      %814 = vst.msk [vmem:[#allocation2 + $0x69] sm:$0xff] %vm804, %v764
      %815 = vst.msk [vmem:[#allocation2 + $0x79] sm:$0xff] %vm804, %v765
      %816 = vst.msk [vmem:[#allocation2 + $0x81] sm:$0xff] %vm804, %v766
      %817 = vst.msk [vmem:[#allocation2 + $0x91] sm:$0xff] %vm804, %v767
      %818 = vst.msk [vmem:[#allocation2 + $0x99] sm:$0xff] %vm804, %v768
      %819 = vst.msk [vmem:[#allocation2 + $0xa9] sm:$0xff] %vm804, %v769
      %820 = vst.msk [vmem:[#allocation2 + $0xb1] sm:$0xff] %vm804, %v770
      %821 = vst.msk [vmem:[#allocation2 + $0xc1] sm:$0xff] %vm804, %v771
      %822 = vst.msk [vmem:[#allocation2 + $0xc9] sm:$0xff] %vm804, %v772
      %823 = vst.msk [vmem:[#allocation2 + $0xd9] sm:$0xff] %vm804, %v773
      %824 = vst.msk [vmem:[#allocation2 + $0xe1] sm:$0xff] %vm804, %v774
      %825 = vst.msk [vmem:[#allocation2 + $0xf1] sm:$0xff] %vm804, %v775
      %826 = vst.msk [vmem:[#allocation2 + $0xf9] sm:$0xff] %vm804, %v776
      %827 = vst.msk [vmem:[#allocation2 + $0x109] sm:$0xff] %vm804, %v777
      %828 = vst.msk [vmem:[#allocation2 + $0x111] sm:$0xff] %vm804, %v778
      %v829 = vld [vmem:[#allocation2] sm:$0xff]
      %v830 = vld [vmem:[#allocation2 + $0x8] sm:$0xff]
      %v831 = vld [vmem:[#allocation2 + $0x18] sm:$0xff]
      %v832 = vld [vmem:[#allocation2 + $0x20] sm:$0xff]
      %v833 = vld [vmem:[#allocation2 + $0x30] sm:$0xff]
      %v834 = vld [vmem:[#allocation2 + $0x38] sm:$0xff]
      %v835 = vld [vmem:[#allocation2 + $0x48] sm:$0xff]
      %v836 = vld [vmem:[#allocation2 + $0x50] sm:$0xff]
      %v837 = vld [vmem:[#allocation2 + $0x60] sm:$0xff]
      %v838 = vld [vmem:[#allocation2 + $0x68] sm:$0xff]
      %v839 = vld [vmem:[#allocation2 + $0x78] sm:$0xff]
      %v840 = vld [vmem:[#allocation2 + $0x80] sm:$0xff]
      %v841 = vld [vmem:[#allocation2 + $0x90] sm:$0xff]
      %v842 = vld [vmem:[#allocation2 + $0x98] sm:$0xff]
      %v843 = vld [vmem:[#allocation2 + $0xa8] sm:$0xff]
      %v844 = vld [vmem:[#allocation2 + $0xb0] sm:$0xff]
      %v845 = vld [vmem:[#allocation2 + $0xc0] sm:$0xff]
      %v846 = vld [vmem:[#allocation2 + $0xc8] sm:$0xff]
      %v847 = vld [vmem:[#allocation2 + $0xd8] sm:$0xff]
      %v848 = vld [vmem:[#allocation2 + $0xe0] sm:$0xff]
      %v849 = vld [vmem:[#allocation2 + $0x1] sm:$0xff]
      %v850 = vld [vmem:[#allocation2 + $0x9] sm:$0xff]
      %v851 = vld [vmem:[#allocation2 + $0x19] sm:$0xff]
      %v852 = vld [vmem:[#allocation2 + $0x21] sm:$0xff]
      %v853 = vld [vmem:[#allocation2 + $0x31] sm:$0xff]
      %v854 = vld [vmem:[#allocation2 + $0x39] sm:$0xff]
      %v855 = vld [vmem:[#allocation2 + $0x49] sm:$0xff]
      %v856 = vld [vmem:[#allocation2 + $0x51] sm:$0xff]
      %v857 = vld [vmem:[#allocation2 + $0x61] sm:$0xff]
      %v858 = vld [vmem:[#allocation2 + $0x69] sm:$0xff]
      %v859 = vld [vmem:[#allocation2 + $0x79] sm:$0xff]
      %v860 = vld [vmem:[#allocation2 + $0x81] sm:$0xff]
      %v861 = vld [vmem:[#allocation2 + $0x91] sm:$0xff]
      %v862 = vld [vmem:[#allocation2 + $0x99] sm:$0xff]
      %v863 = vld [vmem:[#allocation2 + $0xa9] sm:$0xff]
      %v864 = vld [vmem:[#allocation2 + $0xb1] sm:$0xff]
      %v865 = vld [vmem:[#allocation2 + $0xc1] sm:$0xff]
      %v866 = vld [vmem:[#allocation2 + $0xc9] sm:$0xff]
      %v867 = vld [vmem:[#allocation2 + $0xd9] sm:$0xff]
      %v868 = vld [vmem:[#allocation2 + $0xe1] sm:$0xff]
      %v869 = vld [vmem:[#allocation2 + $0x2] sm:$0xff]
      %v870 = vld [vmem:[#allocation2 + $0xa] sm:$0xff]
      %v871 = vld [vmem:[#allocation2 + $0x1a] sm:$0xff]
      %v872 = vld [vmem:[#allocation2 + $0x22] sm:$0xff]
      %v873 = vld [vmem:[#allocation2 + $0x32] sm:$0xff]
      %v874 = vld [vmem:[#allocation2 + $0x3a] sm:$0xff]
      %v875 = vld [vmem:[#allocation2 + $0x4a] sm:$0xff]
      %v876 = vld [vmem:[#allocation2 + $0x52] sm:$0xff]
      %v877 = vld [vmem:[#allocation2 + $0x62] sm:$0xff]
      %v878 = vld [vmem:[#allocation2 + $0x6a] sm:$0xff]
      %v879 = vld [vmem:[#allocation2 + $0x7a] sm:$0xff]
      %v880 = vld [vmem:[#allocation2 + $0x82] sm:$0xff]
      %v881 = vld [vmem:[#allocation2 + $0x92] sm:$0xff]
      %v882 = vld [vmem:[#allocation2 + $0x9a] sm:$0xff]
      %v883 = vld [vmem:[#allocation2 + $0xaa] sm:$0xff]
      %v884 = vld [vmem:[#allocation2 + $0xb2] sm:$0xff]
      %v885 = vld [vmem:[#allocation2 + $0xc2] sm:$0xff]
      %v886 = vld [vmem:[#allocation2 + $0xca] sm:$0xff]
      %v887 = vld [vmem:[#allocation2 + $0xda] sm:$0xff]
      %v888 = vld [vmem:[#allocation2 + $0xe2] sm:$0xff]
      %909 = vrot.lane.b32.xlu0 %v849, 8
      %v910 = vpop.permute.xlu0 %909
      %911 = vrot.lane.b32.xlu0 %v850, 8
      %v912 = vpop.permute.xlu0 %911
      %913 = vrot.lane.b32.xlu0 %v851, 8
      %v914 = vpop.permute.xlu0 %913
      %915 = vrot.lane.b32.xlu0 %v852, 8
      %v916 = vpop.permute.xlu0 %915
      %917 = vrot.lane.b32.xlu0 %v853, 8
      %v918 = vpop.permute.xlu0 %917
      %919 = vrot.lane.b32.xlu0 %v854, 8
      %v920 = vpop.permute.xlu0 %919
      %921 = vrot.lane.b32.xlu0 %v855, 8
      %v922 = vpop.permute.xlu0 %921
      %923 = vrot.lane.b32.xlu0 %v856, 8
      %v924 = vpop.permute.xlu0 %923
      %925 = vrot.lane.b32.xlu0 %v857, 8
      %v926 = vpop.permute.xlu0 %925
      %927 = vrot.lane.b32.xlu0 %v858, 8
      %v928 = vpop.permute.xlu0 %927
      %929 = vrot.lane.b32.xlu0 %v859, 8
      %v930 = vpop.permute.xlu0 %929
      %931 = vrot.lane.b32.xlu0 %v860, 8
      %v932 = vpop.permute.xlu0 %931
      %933 = vrot.lane.b32.xlu0 %v861, 8
      %v934 = vpop.permute.xlu0 %933
      %935 = vrot.lane.b32.xlu0 %v862, 8
      %v936 = vpop.permute.xlu0 %935
      %937 = vrot.lane.b32.xlu0 %v863, 8
      %v938 = vpop.permute.xlu0 %937
      %939 = vrot.lane.b32.xlu0 %v864, 8
      %v940 = vpop.permute.xlu0 %939
      %941 = vrot.lane.b32.xlu0 %v865, 8
      %v942 = vpop.permute.xlu0 %941
      %943 = vrot.lane.b32.xlu0 %v866, 8
      %v944 = vpop.permute.xlu0 %943
      %945 = vrot.lane.b32.xlu0 %v867, 8
      %v946 = vpop.permute.xlu0 %945
      %947 = vrot.lane.b32.xlu0 %v868, 8
      %v948 = vpop.permute.xlu0 %947
      %989 = vrot.lane.b32.xlu0 %v869, 16
      %v990 = vpop.permute.xlu0 %989
      %991 = vrot.lane.b32.xlu0 %v870, 16
      %v992 = vpop.permute.xlu0 %991
      %993 = vrot.lane.b32.xlu0 %v871, 16
      %v994 = vpop.permute.xlu0 %993
      %995 = vrot.lane.b32.xlu0 %v872, 16
      %v996 = vpop.permute.xlu0 %995
      %997 = vrot.lane.b32.xlu0 %v873, 16
      %v998 = vpop.permute.xlu0 %997
      %999 = vrot.lane.b32.xlu0 %v874, 16
      %v1000 = vpop.permute.xlu0 %999
      %1001 = vrot.lane.b32.xlu0 %v875, 16
      %v1002 = vpop.permute.xlu0 %1001
      %1003 = vrot.lane.b32.xlu0 %v876, 16
      %v1004 = vpop.permute.xlu0 %1003
      %1005 = vrot.lane.b32.xlu0 %v877, 16
      %v1006 = vpop.permute.xlu0 %1005
      %1007 = vrot.lane.b32.xlu0 %v878, 16
      %v1008 = vpop.permute.xlu0 %1007
      %1009 = vrot.lane.b32.xlu0 %v879, 16
      %v1010 = vpop.permute.xlu0 %1009
      %1011 = vrot.lane.b32.xlu0 %v880, 16
      %v1012 = vpop.permute.xlu0 %1011
      %1013 = vrot.lane.b32.xlu0 %v881, 16
      %v1014 = vpop.permute.xlu0 %1013
      %1015 = vrot.lane.b32.xlu0 %v882, 16
      %v1016 = vpop.permute.xlu0 %1015
      %1017 = vrot.lane.b32.xlu0 %v883, 16
      %v1018 = vpop.permute.xlu0 %1017
      %1019 = vrot.lane.b32.xlu0 %v884, 16
      %v1020 = vpop.permute.xlu0 %1019
      %1021 = vrot.lane.b32.xlu0 %v885, 16
      %v1022 = vpop.permute.xlu0 %1021
      %1023 = vrot.lane.b32.xlu0 %v886, 16
      %v1024 = vpop.permute.xlu0 %1023
      %1025 = vrot.lane.b32.xlu0 %v887, 16
      %v1026 = vpop.permute.xlu0 %1025
      %1027 = vrot.lane.b32.xlu0 %v888, 16
      %v1028 = vpop.permute.xlu0 %1027
      %v1049 = vsel %vm804, %v829, %v910
      %v1050 = vsel %vm804, %v830, %v912
      %v1051 = vsel %vm804, %v831, %v914
      %v1052 = vsel %vm804, %v832, %v916
      %v1053 = vsel %vm804, %v833, %v918
      %v1054 = vsel %vm804, %v834, %v920
      %v1055 = vsel %vm804, %v835, %v922
      %v1056 = vsel %vm804, %v836, %v924
      %v1057 = vsel %vm804, %v837, %v926
      %v1058 = vsel %vm804, %v838, %v928
      %v1059 = vsel %vm804, %v839, %v930
      %v1060 = vsel %vm804, %v840, %v932
      %v1061 = vsel %vm804, %v841, %v934
      %v1062 = vsel %vm804, %v842, %v936
      %v1063 = vsel %vm804, %v843, %v938
      %v1064 = vsel %vm804, %v844, %v940
      %v1065 = vsel %vm804, %v845, %v942
      %v1066 = vsel %vm804, %v846, %v944
      %v1067 = vsel %vm804, %v847, %v946
      %v1068 = vsel %vm804, %v848, %v948
      %vm1069 = vcmask 130048
      %v1070 = vsel %vm1069, %v1049, %v990
      %v1071 = vsel %vm1069, %v1050, %v992
      %v1072 = vsel %vm1069, %v1051, %v994
      %v1073 = vsel %vm1069, %v1052, %v996
      %v1074 = vsel %vm1069, %v1053, %v998
      %v1075 = vsel %vm1069, %v1054, %v1000
      %v1076 = vsel %vm1069, %v1055, %v1002
      %v1077 = vsel %vm1069, %v1056, %v1004
      %v1078 = vsel %vm1069, %v1057, %v1006
      %v1079 = vsel %vm1069, %v1058, %v1008
      %v1080 = vsel %vm1069, %v1059, %v1010
      %v1081 = vsel %vm1069, %v1060, %v1012
      %v1082 = vsel %vm1069, %v1061, %v1014
      %v1083 = vsel %vm1069, %v1062, %v1016
      %v1084 = vsel %vm1069, %v1063, %v1018
      %v1085 = vsel %vm1069, %v1064, %v1020
      %v1086 = vsel %vm1069, %v1065, %v1022
      %v1087 = vsel %vm1069, %v1066, %v1024
      %v1088 = vsel %vm1069, %v1067, %v1026
      %v1089 = vsel %vm1069, %v1068, %v1028
      %v1090 = vld [vmem:[%s3] sm:$0xff]
      %v1091 = vld [vmem:[%s3 + $0x8] sm:$0xff]
      %v1092 = vld [vmem:[%s3 + $0x10] sm:$0xff]
      %s1093 = scalar_lea.vmem [#allocation2], 24
      %v1094 = vld [vmem:[%s1093] sm:$0xff]
      %v1095 = vld [vmem:[%s1093 + $0x8] sm:$0xff]
      %v1096 = vld [vmem:[%s1093 + $0x18] sm:$0xff]
      %v1097 = vld [vmem:[%s1093 + $0x20] sm:$0xff]
      %v1098 = vld [vmem:[%s1093 + $0x30] sm:$0xff]
      %v1099 = vld [vmem:[%s1093 + $0x38] sm:$0xff]
      %v1100 = vld [vmem:[%s1093 + $0x48] sm:$0xff]
      %v1101 = vld [vmem:[%s1093 + $0x50] sm:$0xff]
      %v1102 = vld [vmem:[%s1093 + $0x60] sm:$0xff]
      %v1103 = vld [vmem:[%s1093 + $0x68] sm:$0xff]
      %v1104 = vld [vmem:[%s1093 + $0x78] sm:$0xff]
      %v1105 = vld [vmem:[%s1093 + $0x80] sm:$0xff]
      %v1106 = vld [vmem:[%s1093 + $0x90] sm:$0xff]
      %v1107 = vld [vmem:[%s1093 + $0x98] sm:$0xff]
      %v1108 = vld [vmem:[%s1093 + $0xa8] sm:$0xff]
      %v1109 = vld [vmem:[%s1093 + $0xb0] sm:$0xff]
      %v1110 = vld [vmem:[%s1093 + $0xc0] sm:$0xff]
      %v1111 = vld [vmem:[%s1093 + $0xc8] sm:$0xff]
      %v1112 = vld [vmem:[%s1093 + $0xd8] sm:$0xff]
      %v1113 = vld [vmem:[%s1093 + $0xe0] sm:$0xff]
      %v1114 = vld [vmem:[%s1093 + $0x1] sm:$0xff]
      %v1115 = vld [vmem:[%s1093 + $0x9] sm:$0xff]
      %v1116 = vld [vmem:[%s1093 + $0x19] sm:$0xff]
      %v1117 = vld [vmem:[%s1093 + $0x21] sm:$0xff]
      %v1118 = vld [vmem:[%s1093 + $0x31] sm:$0xff]
      %v1119 = vld [vmem:[%s1093 + $0x39] sm:$0xff]
      %v1120 = vld [vmem:[%s1093 + $0x49] sm:$0xff]
      %v1121 = vld [vmem:[%s1093 + $0x51] sm:$0xff]
      %v1122 = vld [vmem:[%s1093 + $0x61] sm:$0xff]
      %v1123 = vld [vmem:[%s1093 + $0x69] sm:$0xff]
      %v1124 = vld [vmem:[%s1093 + $0x79] sm:$0xff]
      %v1125 = vld [vmem:[%s1093 + $0x81] sm:$0xff]
      %v1126 = vld [vmem:[%s1093 + $0x91] sm:$0xff]
      %v1127 = vld [vmem:[%s1093 + $0x99] sm:$0xff]
      %v1128 = vld [vmem:[%s1093 + $0xa9] sm:$0xff]
      %v1129 = vld [vmem:[%s1093 + $0xb1] sm:$0xff]
      %v1130 = vld [vmem:[%s1093 + $0xc1] sm:$0xff]
      %v1131 = vld [vmem:[%s1093 + $0xc9] sm:$0xff]
      %v1132 = vld [vmem:[%s1093 + $0xd9] sm:$0xff]
      %v1133 = vld [vmem:[%s1093 + $0xe1] sm:$0xff]
      %v1134 = vld [vmem:[%s1093 + $0x2] sm:$0xff]
      %v1135 = vld [vmem:[%s1093 + $0xa] sm:$0xff]
      %v1136 = vld [vmem:[%s1093 + $0x1a] sm:$0xff]
      %v1137 = vld [vmem:[%s1093 + $0x22] sm:$0xff]
      %v1138 = vld [vmem:[%s1093 + $0x32] sm:$0xff]
      %v1139 = vld [vmem:[%s1093 + $0x3a] sm:$0xff]
      %v1140 = vld [vmem:[%s1093 + $0x4a] sm:$0xff]
      %v1141 = vld [vmem:[%s1093 + $0x52] sm:$0xff]
      %v1142 = vld [vmem:[%s1093 + $0x62] sm:$0xff]
      %v1143 = vld [vmem:[%s1093 + $0x6a] sm:$0xff]
      %v1144 = vld [vmem:[%s1093 + $0x7a] sm:$0xff]
      %v1145 = vld [vmem:[%s1093 + $0x82] sm:$0xff]
      %v1146 = vld [vmem:[%s1093 + $0x92] sm:$0xff]
      %v1147 = vld [vmem:[%s1093 + $0x9a] sm:$0xff]
      %v1148 = vld [vmem:[%s1093 + $0xaa] sm:$0xff]
      %v1149 = vld [vmem:[%s1093 + $0xb2] sm:$0xff]
      %v1150 = vld [vmem:[%s1093 + $0xc2] sm:$0xff]
      %v1151 = vld [vmem:[%s1093 + $0xca] sm:$0xff]
      %v1152 = vld [vmem:[%s1093 + $0xda] sm:$0xff]
      %v1153 = vld [vmem:[%s1093 + $0xe2] sm:$0xff]
      %1174 = vrot.lane.b32.xlu0 %v1114, 8
      %v1175 = vpop.permute.xlu0 %1174
      %1176 = vrot.lane.b32.xlu0 %v1115, 8
      %v1177 = vpop.permute.xlu0 %1176
      %1178 = vrot.lane.b32.xlu0 %v1116, 8
      %v1179 = vpop.permute.xlu0 %1178
      %1180 = vrot.lane.b32.xlu0 %v1117, 8
      %v1181 = vpop.permute.xlu0 %1180
      %1182 = vrot.lane.b32.xlu0 %v1118, 8
      %v1183 = vpop.permute.xlu0 %1182
      %1184 = vrot.lane.b32.xlu0 %v1119, 8
      %v1185 = vpop.permute.xlu0 %1184
      %1186 = vrot.lane.b32.xlu0 %v1120, 8
      %v1187 = vpop.permute.xlu0 %1186
      %1188 = vrot.lane.b32.xlu0 %v1121, 8
      %v1189 = vpop.permute.xlu0 %1188
      %1190 = vrot.lane.b32.xlu0 %v1122, 8
      %v1191 = vpop.permute.xlu0 %1190
      %1192 = vrot.lane.b32.xlu0 %v1123, 8
      %v1193 = vpop.permute.xlu0 %1192
      %1194 = vrot.lane.b32.xlu0 %v1124, 8
      %v1195 = vpop.permute.xlu0 %1194
      %1196 = vrot.lane.b32.xlu0 %v1125, 8
      %v1197 = vpop.permute.xlu0 %1196
      %1198 = vrot.lane.b32.xlu0 %v1126, 8
      %v1199 = vpop.permute.xlu0 %1198
      %1200 = vrot.lane.b32.xlu0 %v1127, 8
      %v1201 = vpop.permute.xlu0 %1200
      %1202 = vrot.lane.b32.xlu0 %v1128, 8
      %v1203 = vpop.permute.xlu0 %1202
      %1204 = vrot.lane.b32.xlu0 %v1129, 8
      %v1205 = vpop.permute.xlu0 %1204
      %1206 = vrot.lane.b32.xlu0 %v1130, 8
      %v1207 = vpop.permute.xlu0 %1206
      %1208 = vrot.lane.b32.xlu0 %v1131, 8
      %v1209 = vpop.permute.xlu0 %1208
      %1210 = vrot.lane.b32.xlu0 %v1132, 8
      %v1211 = vpop.permute.xlu0 %1210
      %1212 = vrot.lane.b32.xlu0 %v1133, 8
      %v1213 = vpop.permute.xlu0 %1212
      %1254 = vrot.lane.b32.xlu0 %v1134, 16
      %v1255 = vpop.permute.xlu0 %1254
      %1256 = vrot.lane.b32.xlu0 %v1135, 16
      %v1257 = vpop.permute.xlu0 %1256
      %1258 = vrot.lane.b32.xlu0 %v1136, 16
      %v1259 = vpop.permute.xlu0 %1258
      %1260 = vrot.lane.b32.xlu0 %v1137, 16
      %v1261 = vpop.permute.xlu0 %1260
      %1262 = vrot.lane.b32.xlu0 %v1138, 16
      %v1263 = vpop.permute.xlu0 %1262
      %1264 = vrot.lane.b32.xlu0 %v1139, 16
      %v1265 = vpop.permute.xlu0 %1264
      %1266 = vrot.lane.b32.xlu0 %v1140, 16
      %v1267 = vpop.permute.xlu0 %1266
      %1268 = vrot.lane.b32.xlu0 %v1141, 16
      %v1269 = vpop.permute.xlu0 %1268
      %1270 = vrot.lane.b32.xlu0 %v1142, 16
      %v1271 = vpop.permute.xlu0 %1270
      %1272 = vrot.lane.b32.xlu0 %v1143, 16
      %v1273 = vpop.permute.xlu0 %1272
      %1274 = vrot.lane.b32.xlu0 %v1144, 16
      %v1275 = vpop.permute.xlu0 %1274
      %1276 = vrot.lane.b32.xlu0 %v1145, 16
      %v1277 = vpop.permute.xlu0 %1276
      %1278 = vrot.lane.b32.xlu0 %v1146, 16
      %v1279 = vpop.permute.xlu0 %1278
      %1280 = vrot.lane.b32.xlu0 %v1147, 16
      %v1281 = vpop.permute.xlu0 %1280
      %1282 = vrot.lane.b32.xlu0 %v1148, 16
      %v1283 = vpop.permute.xlu0 %1282
      %1284 = vrot.lane.b32.xlu0 %v1149, 16
      %v1285 = vpop.permute.xlu0 %1284
      %1286 = vrot.lane.b32.xlu0 %v1150, 16
      %v1287 = vpop.permute.xlu0 %1286
      %1288 = vrot.lane.b32.xlu0 %v1151, 16
      %v1289 = vpop.permute.xlu0 %1288
      %1290 = vrot.lane.b32.xlu0 %v1152, 16
      %v1291 = vpop.permute.xlu0 %1290
      %1292 = vrot.lane.b32.xlu0 %v1153, 16
      %v1293 = vpop.permute.xlu0 %1292
      %v1314 = vsel %vm804, %v1094, %v1175
      %v1315 = vsel %vm804, %v1095, %v1177
      %v1316 = vsel %vm804, %v1096, %v1179
      %v1317 = vsel %vm804, %v1097, %v1181
      %v1318 = vsel %vm804, %v1098, %v1183
      %v1319 = vsel %vm804, %v1099, %v1185
      %v1320 = vsel %vm804, %v1100, %v1187
      %v1321 = vsel %vm804, %v1101, %v1189
      %v1322 = vsel %vm804, %v1102, %v1191
      %v1323 = vsel %vm804, %v1103, %v1193
      %v1324 = vsel %vm804, %v1104, %v1195
      %v1325 = vsel %vm804, %v1105, %v1197
      %v1326 = vsel %vm804, %v1106, %v1199
      %v1327 = vsel %vm804, %v1107, %v1201
      %v1328 = vsel %vm804, %v1108, %v1203
      %v1329 = vsel %vm804, %v1109, %v1205
      %v1330 = vsel %vm804, %v1110, %v1207
      %v1331 = vsel %vm804, %v1111, %v1209
      %v1332 = vsel %vm804, %v1112, %v1211
      %v1333 = vsel %vm804, %v1113, %v1213
      %v1334 = vsel %vm1069, %v1314, %v1255
      %v1335 = vsel %vm1069, %v1315, %v1257
      %v1336 = vsel %vm1069, %v1316, %v1259
      %v1337 = vsel %vm1069, %v1317, %v1261
      %v1338 = vsel %vm1069, %v1318, %v1263
      %v1339 = vsel %vm1069, %v1319, %v1265
      %v1340 = vsel %vm1069, %v1320, %v1267
      %v1341 = vsel %vm1069, %v1321, %v1269
      %v1342 = vsel %vm1069, %v1322, %v1271
      %v1343 = vsel %vm1069, %v1323, %v1273
      %v1344 = vsel %vm1069, %v1324, %v1275
      %v1345 = vsel %vm1069, %v1325, %v1277
      %v1346 = vsel %vm1069, %v1326, %v1279
      %v1347 = vsel %vm1069, %v1327, %v1281
      %v1348 = vsel %vm1069, %v1328, %v1283
      %v1349 = vsel %vm1069, %v1329, %v1285
      %v1350 = vsel %vm1069, %v1330, %v1287
      %v1351 = vsel %vm1069, %v1331, %v1289
      %v1352 = vsel %vm1069, %v1332, %v1291
      %v1353 = vsel %vm1069, %v1333, %v1293
      %s1354 = scalar_lea.vmem %s3, 24
      %v1355 = vld [vmem:[%s1354] sm:$0xff]
      %v1356 = vld [vmem:[%s1354 + $0x8] sm:$0xff]
      %v1357 = vld [vmem:[%s1354 + $0x10] sm:$0xff]
      %vm1358 = vcmask 195584
      %v1360 = vsel %vm1358, %v1334, 0
      %v1363 = vsel %vm1358, %v1335, 0
      %v1366 = vsel %vm1358, %v1336, 0
      %v1369 = vsel %vm1358, %v1337, 0
      %v1372 = vsel %vm1358, %v1338, 0
      %v1375 = vsel %vm1358, %v1339, 0
      %v1378 = vsel %vm1358, %v1340, 0
      %v1381 = vsel %vm1358, %v1341, 0
      %v1384 = vsel %vm1358, %v1342, 0
      %v1387 = vsel %vm1358, %v1343, 0
      %v1390 = vsel %vm1358, %v1344, 0
      %v1393 = vsel %vm1358, %v1345, 0
      %v1396 = vsel %vm1358, %v1346, 0
      %v1399 = vsel %vm1358, %v1347, 0
      %v1402 = vsel %vm1358, %v1348, 0
      %v1405 = vsel %vm1358, %v1349, 0
      %v1408 = vsel %vm1358, %v1350, 0
      %v1411 = vsel %vm1358, %v1351, 0
      %v1414 = vsel %vm1358, %v1352, 0
      %v1417 = vsel %vm1358, %v1353, 0
      %1419 = vmatpush.msra.mxu0 0.0
      %1420 = vmatpush.msra.mxu0 0.0
      %1421 = vmatpush.msra.mxu0 0.0
      %1422 = vmatpush.msra.mxu0 0.0
      %1423 = vmatpush.msra.mxu0 0.0
      %1424 = vmatpush.msra.mxu0 0.0
      %1425 = vmatpush.msra.mxu0 0.0
      %1426 = vmatpush.msra.mxu0 0.0
      %1427 = vmatpush.msra.mxu0 0.0
      %1428 = vmatpush.msra.mxu0 0.0
      %1429 = vmatpush.msra.mxu0 0.0
      %1430 = vmatpush.msra.mxu0 0.0
      %1431 = vmatpush.msra.mxu0 0.0
      %1432 = vmatpush.msra.mxu0 %v1357
      %1433 = vmatpush.msra.mxu0 %v1356
      %1434 = vmatpush.msra.mxu0 %v1355
      %1435 = vmatmul.f32.gmra.mxu0 %v1360
      %v1436 = vpop.f32.mrf.mxu0
      %v1437 = vadd.f32 0.0, %v1436
      %1438 = vmatmul.f32.gmra.mxu0 %v1363
      %v1439 = vpop.f32.mrf.mxu0
      %v1440 = vadd.f32 0.0, %v1439
      %1441 = vmatmul.f32.gmra.mxu0 %v1366
      %v1442 = vpop.f32.mrf.mxu0
      %v1443 = vadd.f32 0.0, %v1442
      %1444 = vmatmul.f32.gmra.mxu0 %v1369
      %v1445 = vpop.f32.mrf.mxu0
      %v1446 = vadd.f32 0.0, %v1445
      %1447 = vmatmul.f32.gmra.mxu0 %v1372
      %v1448 = vpop.f32.mrf.mxu0
      %v1449 = vadd.f32 0.0, %v1448
      %1450 = vmatmul.f32.gmra.mxu0 %v1375
      %v1451 = vpop.f32.mrf.mxu0
      %v1452 = vadd.f32 0.0, %v1451
      %1453 = vmatmul.f32.gmra.mxu0 %v1378
      %v1454 = vpop.f32.mrf.mxu0
      %v1455 = vadd.f32 0.0, %v1454
      %1456 = vmatmul.f32.gmra.mxu0 %v1381
      %v1457 = vpop.f32.mrf.mxu0
      %v1458 = vadd.f32 0.0, %v1457
      %1459 = vmatmul.f32.gmra.mxu0 %v1384
      %v1460 = vpop.f32.mrf.mxu0
      %v1461 = vadd.f32 0.0, %v1460
      %1462 = vmatmul.f32.gmra.mxu0 %v1387
      %v1463 = vpop.f32.mrf.mxu0
      %v1464 = vadd.f32 0.0, %v1463
      %1465 = vmatmul.f32.gmra.mxu0 %v1390
      %v1466 = vpop.f32.mrf.mxu0
      %v1467 = vadd.f32 0.0, %v1466
      %1468 = vmatmul.f32.gmra.mxu0 %v1393
      %v1469 = vpop.f32.mrf.mxu0
      %v1470 = vadd.f32 0.0, %v1469
      %1471 = vmatmul.f32.gmra.mxu0 %v1396
      %v1472 = vpop.f32.mrf.mxu0
      %v1473 = vadd.f32 0.0, %v1472
      %1474 = vmatmul.f32.gmra.mxu0 %v1399
      %v1475 = vpop.f32.mrf.mxu0
      %v1476 = vadd.f32 0.0, %v1475
      %1477 = vmatmul.f32.gmra.mxu0 %v1402
      %v1478 = vpop.f32.mrf.mxu0
      %v1479 = vadd.f32 0.0, %v1478
      %1480 = vmatmul.f32.gmra.mxu0 %v1405
      %v1481 = vpop.f32.mrf.mxu0
      %v1482 = vadd.f32 0.0, %v1481
      %1483 = vmatmul.f32.gmra.mxu0 %v1408
      %v1484 = vpop.f32.mrf.mxu0
      %v1485 = vadd.f32 0.0, %v1484
      %1486 = vmatmul.f32.gmra.mxu0 %v1411
      %v1487 = vpop.f32.mrf.mxu0
      %v1488 = vadd.f32 0.0, %v1487
      %1489 = vmatmul.f32.gmra.mxu0 %v1414
      %v1490 = vpop.f32.mrf.mxu0
      %v1491 = vadd.f32 0.0, %v1490
      %1492 = vmatmul.f32.gmra.mxu0 %v1417
      %v1493 = vpop.f32.mrf.mxu0
      %v1494 = vadd.f32 0.0, %v1493
      %1495 = vdwg.mxu0
      %v1497 = vsel %vm1358, %v1070, 0
      %v1500 = vsel %vm1358, %v1071, 0
      %v1503 = vsel %vm1358, %v1072, 0
      %v1506 = vsel %vm1358, %v1073, 0
      %v1509 = vsel %vm1358, %v1074, 0
      %v1512 = vsel %vm1358, %v1075, 0
      %v1515 = vsel %vm1358, %v1076, 0
      %v1518 = vsel %vm1358, %v1077, 0
      %v1521 = vsel %vm1358, %v1078, 0
      %v1524 = vsel %vm1358, %v1079, 0
      %v1527 = vsel %vm1358, %v1080, 0
      %v1530 = vsel %vm1358, %v1081, 0
      %v1533 = vsel %vm1358, %v1082, 0
      %v1536 = vsel %vm1358, %v1083, 0
      %v1539 = vsel %vm1358, %v1084, 0
      %v1542 = vsel %vm1358, %v1085, 0
      %v1545 = vsel %vm1358, %v1086, 0
      %v1548 = vsel %vm1358, %v1087, 0
      %v1551 = vsel %vm1358, %v1088, 0
      %v1554 = vsel %vm1358, %v1089, 0
      %1556 = vmatpush.msra.mxu0 0.0
      %1557 = vmatpush.msra.mxu0 0.0
      %1558 = vmatpush.msra.mxu0 0.0
      %1559 = vmatpush.msra.mxu0 0.0
      %1560 = vmatpush.msra.mxu0 0.0
      %1561 = vmatpush.msra.mxu0 0.0
      %1562 = vmatpush.msra.mxu0 0.0
      %1563 = vmatpush.msra.mxu0 0.0
      %1564 = vmatpush.msra.mxu0 0.0
      %1565 = vmatpush.msra.mxu0 0.0
      %1566 = vmatpush.msra.mxu0 0.0
      %1567 = vmatpush.msra.mxu0 0.0
      %1568 = vmatpush.msra.mxu0 0.0
      %1569 = vmatpush.msra.mxu0 %v1092
      %1570 = vmatpush.msra.mxu0 %v1091
      %1571 = vmatpush.msra.mxu0 %v1090
      %1572 = vmatmul.f32.gmra.mxu0 %v1497
      %v1573 = vpop.f32.mrf.mxu0
      %v1574 = vadd.f32 %v1437, %v1573
      %1575 = vmatmul.f32.gmra.mxu0 %v1500
      %v1576 = vpop.f32.mrf.mxu0
      %v1577 = vadd.f32 %v1440, %v1576
      %1578 = vmatmul.f32.gmra.mxu0 %v1503
      %v1579 = vpop.f32.mrf.mxu0
      %v1580 = vadd.f32 %v1443, %v1579
      %1581 = vmatmul.f32.gmra.mxu0 %v1506
      %v1582 = vpop.f32.mrf.mxu0
      %v1583 = vadd.f32 %v1446, %v1582
      %1584 = vmatmul.f32.gmra.mxu0 %v1509
      %v1585 = vpop.f32.mrf.mxu0
      %v1586 = vadd.f32 %v1449, %v1585
      %1587 = vmatmul.f32.gmra.mxu0 %v1512
      %v1588 = vpop.f32.mrf.mxu0
      %v1589 = vadd.f32 %v1452, %v1588
      %1590 = vmatmul.f32.gmra.mxu0 %v1515
      %v1591 = vpop.f32.mrf.mxu0
      %v1592 = vadd.f32 %v1455, %v1591
      %1593 = vmatmul.f32.gmra.mxu0 %v1518
      %v1594 = vpop.f32.mrf.mxu0
      %v1595 = vadd.f32 %v1458, %v1594
      %1596 = vmatmul.f32.gmra.mxu0 %v1521
      %v1597 = vpop.f32.mrf.mxu0
      %v1598 = vadd.f32 %v1461, %v1597
      %1599 = vmatmul.f32.gmra.mxu0 %v1524
      %v1600 = vpop.f32.mrf.mxu0
      %v1601 = vadd.f32 %v1464, %v1600
      %1602 = vmatmul.f32.gmra.mxu0 %v1527
      %v1603 = vpop.f32.mrf.mxu0
      %v1604 = vadd.f32 %v1467, %v1603
      %1605 = vmatmul.f32.gmra.mxu0 %v1530
      %v1606 = vpop.f32.mrf.mxu0
      %v1607 = vadd.f32 %v1470, %v1606
      %1608 = vmatmul.f32.gmra.mxu0 %v1533
      %v1609 = vpop.f32.mrf.mxu0
      %v1610 = vadd.f32 %v1473, %v1609
      %1611 = vmatmul.f32.gmra.mxu0 %v1536
      %v1612 = vpop.f32.mrf.mxu0
      %v1613 = vadd.f32 %v1476, %v1612
      %1614 = vmatmul.f32.gmra.mxu0 %v1539
      %v1615 = vpop.f32.mrf.mxu0
      %v1616 = vadd.f32 %v1479, %v1615
      %1617 = vmatmul.f32.gmra.mxu0 %v1542
      %v1618 = vpop.f32.mrf.mxu0
      %v1619 = vadd.f32 %v1482, %v1618
      %1620 = vmatmul.f32.gmra.mxu0 %v1545
      %v1621 = vpop.f32.mrf.mxu0
      %v1622 = vadd.f32 %v1485, %v1621
      %1623 = vmatmul.f32.gmra.mxu0 %v1548
      %v1624 = vpop.f32.mrf.mxu0
      %v1625 = vadd.f32 %v1488, %v1624
      %1626 = vmatmul.f32.gmra.mxu0 %v1551
      %v1627 = vpop.f32.mrf.mxu0
      %v1628 = vadd.f32 %v1491, %v1627
      %1629 = vmatmul.f32.gmra.mxu0 %v1554
      %v1630 = vpop.f32.mrf.mxu0
      %v1631 = vadd.f32 %v1494, %v1630
      %1632 = vdwg.mxu0
      %s1633 = scalar_lea.vmem [#allocation2], 48
      %v1634 = vld [vmem:[%s1633] sm:$0xff]
      %v1635 = vld [vmem:[%s1633 + $0x8] sm:$0xff]
      %v1636 = vld [vmem:[%s1633 + $0x18] sm:$0xff]
      %v1637 = vld [vmem:[%s1633 + $0x20] sm:$0xff]
      %v1638 = vld [vmem:[%s1633 + $0x30] sm:$0xff]
      %v1639 = vld [vmem:[%s1633 + $0x38] sm:$0xff]
      %v1640 = vld [vmem:[%s1633 + $0x48] sm:$0xff]
      %v1641 = vld [vmem:[%s1633 + $0x50] sm:$0xff]
      %v1642 = vld [vmem:[%s1633 + $0x60] sm:$0xff]
      %v1643 = vld [vmem:[%s1633 + $0x68] sm:$0xff]
      %v1644 = vld [vmem:[%s1633 + $0x78] sm:$0xff]
      %v1645 = vld [vmem:[%s1633 + $0x80] sm:$0xff]
      %v1646 = vld [vmem:[%s1633 + $0x90] sm:$0xff]
      %v1647 = vld [vmem:[%s1633 + $0x98] sm:$0xff]
      %v1648 = vld [vmem:[%s1633 + $0xa8] sm:$0xff]
      %v1649 = vld [vmem:[%s1633 + $0xb0] sm:$0xff]
      %v1650 = vld [vmem:[%s1633 + $0xc0] sm:$0xff]
      %v1651 = vld [vmem:[%s1633 + $0xc8] sm:$0xff]
      %v1652 = vld [vmem:[%s1633 + $0xd8] sm:$0xff]
      %v1653 = vld [vmem:[%s1633 + $0xe0] sm:$0xff]
      %v1654 = vld [vmem:[%s1633 + $0x1] sm:$0xff]
      %v1655 = vld [vmem:[%s1633 + $0x9] sm:$0xff]
      %v1656 = vld [vmem:[%s1633 + $0x19] sm:$0xff]
      %v1657 = vld [vmem:[%s1633 + $0x21] sm:$0xff]
      %v1658 = vld [vmem:[%s1633 + $0x31] sm:$0xff]
      %v1659 = vld [vmem:[%s1633 + $0x39] sm:$0xff]
      %v1660 = vld [vmem:[%s1633 + $0x49] sm:$0xff]
      %v1661 = vld [vmem:[%s1633 + $0x51] sm:$0xff]
      %v1662 = vld [vmem:[%s1633 + $0x61] sm:$0xff]
      %v1663 = vld [vmem:[%s1633 + $0x69] sm:$0xff]
      %v1664 = vld [vmem:[%s1633 + $0x79] sm:$0xff]
      %v1665 = vld [vmem:[%s1633 + $0x81] sm:$0xff]
      %v1666 = vld [vmem:[%s1633 + $0x91] sm:$0xff]
      %v1667 = vld [vmem:[%s1633 + $0x99] sm:$0xff]
      %v1668 = vld [vmem:[%s1633 + $0xa9] sm:$0xff]
      %v1669 = vld [vmem:[%s1633 + $0xb1] sm:$0xff]
      %v1670 = vld [vmem:[%s1633 + $0xc1] sm:$0xff]
      %v1671 = vld [vmem:[%s1633 + $0xc9] sm:$0xff]
      %v1672 = vld [vmem:[%s1633 + $0xd9] sm:$0xff]
      %v1673 = vld [vmem:[%s1633 + $0xe1] sm:$0xff]
      %v1674 = vld [vmem:[%s1633 + $0x2] sm:$0xff]
      %v1675 = vld [vmem:[%s1633 + $0xa] sm:$0xff]
      %v1676 = vld [vmem:[%s1633 + $0x1a] sm:$0xff]
      %v1677 = vld [vmem:[%s1633 + $0x22] sm:$0xff]
      %v1678 = vld [vmem:[%s1633 + $0x32] sm:$0xff]
      %v1679 = vld [vmem:[%s1633 + $0x3a] sm:$0xff]
      %v1680 = vld [vmem:[%s1633 + $0x4a] sm:$0xff]
      %v1681 = vld [vmem:[%s1633 + $0x52] sm:$0xff]
      %v1682 = vld [vmem:[%s1633 + $0x62] sm:$0xff]
      %v1683 = vld [vmem:[%s1633 + $0x6a] sm:$0xff]
      %v1684 = vld [vmem:[%s1633 + $0x7a] sm:$0xff]
      %v1685 = vld [vmem:[%s1633 + $0x82] sm:$0xff]
      %v1686 = vld [vmem:[%s1633 + $0x92] sm:$0xff]
      %v1687 = vld [vmem:[%s1633 + $0x9a] sm:$0xff]
      %v1688 = vld [vmem:[%s1633 + $0xaa] sm:$0xff]
      %v1689 = vld [vmem:[%s1633 + $0xb2] sm:$0xff]
      %v1690 = vld [vmem:[%s1633 + $0xc2] sm:$0xff]
      %v1691 = vld [vmem:[%s1633 + $0xca] sm:$0xff]
      %v1692 = vld [vmem:[%s1633 + $0xda] sm:$0xff]
      %v1693 = vld [vmem:[%s1633 + $0xe2] sm:$0xff]
      %1714 = vrot.lane.b32.xlu0 %v1654, 8
      %v1715 = vpop.permute.xlu0 %1714
      %1716 = vrot.lane.b32.xlu0 %v1655, 8
      %v1717 = vpop.permute.xlu0 %1716
      %1718 = vrot.lane.b32.xlu0 %v1656, 8
      %v1719 = vpop.permute.xlu0 %1718
      %1720 = vrot.lane.b32.xlu0 %v1657, 8
      %v1721 = vpop.permute.xlu0 %1720
      %1722 = vrot.lane.b32.xlu0 %v1658, 8
      %v1723 = vpop.permute.xlu0 %1722
      %1724 = vrot.lane.b32.xlu0 %v1659, 8
      %v1725 = vpop.permute.xlu0 %1724
      %1726 = vrot.lane.b32.xlu0 %v1660, 8
      %v1727 = vpop.permute.xlu0 %1726
      %1728 = vrot.lane.b32.xlu0 %v1661, 8
      %v1729 = vpop.permute.xlu0 %1728
      %1730 = vrot.lane.b32.xlu0 %v1662, 8
      %v1731 = vpop.permute.xlu0 %1730
      %1732 = vrot.lane.b32.xlu0 %v1663, 8
      %v1733 = vpop.permute.xlu0 %1732
      %1734 = vrot.lane.b32.xlu0 %v1664, 8
      %v1735 = vpop.permute.xlu0 %1734
      %1736 = vrot.lane.b32.xlu0 %v1665, 8
      %v1737 = vpop.permute.xlu0 %1736
      %1738 = vrot.lane.b32.xlu0 %v1666, 8
      %v1739 = vpop.permute.xlu0 %1738
      %1740 = vrot.lane.b32.xlu0 %v1667, 8
      %v1741 = vpop.permute.xlu0 %1740
      %1742 = vrot.lane.b32.xlu0 %v1668, 8
      %v1743 = vpop.permute.xlu0 %1742
      %1744 = vrot.lane.b32.xlu0 %v1669, 8
      %v1745 = vpop.permute.xlu0 %1744
      %1746 = vrot.lane.b32.xlu0 %v1670, 8
      %v1747 = vpop.permute.xlu0 %1746
      %1748 = vrot.lane.b32.xlu0 %v1671, 8
      %v1749 = vpop.permute.xlu0 %1748
      %1750 = vrot.lane.b32.xlu0 %v1672, 8
      %v1751 = vpop.permute.xlu0 %1750
      %1752 = vrot.lane.b32.xlu0 %v1673, 8
      %v1753 = vpop.permute.xlu0 %1752
      %1794 = vrot.lane.b32.xlu0 %v1674, 16
      %v1795 = vpop.permute.xlu0 %1794
      %1796 = vrot.lane.b32.xlu0 %v1675, 16
      %v1797 = vpop.permute.xlu0 %1796
      %1798 = vrot.lane.b32.xlu0 %v1676, 16
      %v1799 = vpop.permute.xlu0 %1798
      %1800 = vrot.lane.b32.xlu0 %v1677, 16
      %v1801 = vpop.permute.xlu0 %1800
      %1802 = vrot.lane.b32.xlu0 %v1678, 16
      %v1803 = vpop.permute.xlu0 %1802
      %1804 = vrot.lane.b32.xlu0 %v1679, 16
      %v1805 = vpop.permute.xlu0 %1804
      %1806 = vrot.lane.b32.xlu0 %v1680, 16
      %v1807 = vpop.permute.xlu0 %1806
      %1808 = vrot.lane.b32.xlu0 %v1681, 16
      %v1809 = vpop.permute.xlu0 %1808
      %1810 = vrot.lane.b32.xlu0 %v1682, 16
      %v1811 = vpop.permute.xlu0 %1810
      %1812 = vrot.lane.b32.xlu0 %v1683, 16
      %v1813 = vpop.permute.xlu0 %1812
      %1814 = vrot.lane.b32.xlu0 %v1684, 16
      %v1815 = vpop.permute.xlu0 %1814
      %1816 = vrot.lane.b32.xlu0 %v1685, 16
      %v1817 = vpop.permute.xlu0 %1816
      %1818 = vrot.lane.b32.xlu0 %v1686, 16
      %v1819 = vpop.permute.xlu0 %1818
      %1820 = vrot.lane.b32.xlu0 %v1687, 16
      %v1821 = vpop.permute.xlu0 %1820
      %1822 = vrot.lane.b32.xlu0 %v1688, 16
      %v1823 = vpop.permute.xlu0 %1822
      %1824 = vrot.lane.b32.xlu0 %v1689, 16
      %v1825 = vpop.permute.xlu0 %1824
      %1826 = vrot.lane.b32.xlu0 %v1690, 16
      %v1827 = vpop.permute.xlu0 %1826
      %1828 = vrot.lane.b32.xlu0 %v1691, 16
      %v1829 = vpop.permute.xlu0 %1828
      %1830 = vrot.lane.b32.xlu0 %v1692, 16
      %v1831 = vpop.permute.xlu0 %1830
      %1832 = vrot.lane.b32.xlu0 %v1693, 16
      %v1833 = vpop.permute.xlu0 %1832
      %v1854 = vsel %vm804, %v1634, %v1715
      %v1855 = vsel %vm804, %v1635, %v1717
      %v1856 = vsel %vm804, %v1636, %v1719
      %v1857 = vsel %vm804, %v1637, %v1721
      %v1858 = vsel %vm804, %v1638, %v1723
      %v1859 = vsel %vm804, %v1639, %v1725
      %v1860 = vsel %vm804, %v1640, %v1727
      %v1861 = vsel %vm804, %v1641, %v1729
      %v1862 = vsel %vm804, %v1642, %v1731
      %v1863 = vsel %vm804, %v1643, %v1733
      %v1864 = vsel %vm804, %v1644, %v1735
      %v1865 = vsel %vm804, %v1645, %v1737
      %v1866 = vsel %vm804, %v1646, %v1739
      %v1867 = vsel %vm804, %v1647, %v1741
      %v1868 = vsel %vm804, %v1648, %v1743
      %v1869 = vsel %vm804, %v1649, %v1745
      %v1870 = vsel %vm804, %v1650, %v1747
      %v1871 = vsel %vm804, %v1651, %v1749
      %v1872 = vsel %vm804, %v1652, %v1751
      %v1873 = vsel %vm804, %v1653, %v1753
      %v1874 = vsel %vm1069, %v1854, %v1795
      %v1875 = vsel %vm1069, %v1855, %v1797
      %v1876 = vsel %vm1069, %v1856, %v1799
      %v1877 = vsel %vm1069, %v1857, %v1801
      %v1878 = vsel %vm1069, %v1858, %v1803
      %v1879 = vsel %vm1069, %v1859, %v1805
      %v1880 = vsel %vm1069, %v1860, %v1807
      %v1881 = vsel %vm1069, %v1861, %v1809
      %v1882 = vsel %vm1069, %v1862, %v1811
      %v1883 = vsel %vm1069, %v1863, %v1813
      %v1884 = vsel %vm1069, %v1864, %v1815
      %v1885 = vsel %vm1069, %v1865, %v1817
      %v1886 = vsel %vm1069, %v1866, %v1819
      %v1887 = vsel %vm1069, %v1867, %v1821
      %v1888 = vsel %vm1069, %v1868, %v1823
      %v1889 = vsel %vm1069, %v1869, %v1825
      %v1890 = vsel %vm1069, %v1870, %v1827
      %v1891 = vsel %vm1069, %v1871, %v1829
      %v1892 = vsel %vm1069, %v1872, %v1831
      %v1893 = vsel %vm1069, %v1873, %v1833
      %s1894 = scalar_lea.vmem %s3, 48
      %v1895 = vld [vmem:[%s1894] sm:$0xff]
      %v1896 = vld [vmem:[%s1894 + $0x8] sm:$0xff]
      %v1897 = vld [vmem:[%s1894 + $0x10] sm:$0xff]
      %v1899 = vsel %vm1358, %v1874, 0
      %v1902 = vsel %vm1358, %v1875, 0
      %v1905 = vsel %vm1358, %v1876, 0
      %v1908 = vsel %vm1358, %v1877, 0
      %v1911 = vsel %vm1358, %v1878, 0
      %v1914 = vsel %vm1358, %v1879, 0
      %v1917 = vsel %vm1358, %v1880, 0
      %v1920 = vsel %vm1358, %v1881, 0
      %v1923 = vsel %vm1358, %v1882, 0
      %v1926 = vsel %vm1358, %v1883, 0
      %v1929 = vsel %vm1358, %v1884, 0
      %v1932 = vsel %vm1358, %v1885, 0
      %v1935 = vsel %vm1358, %v1886, 0
      %v1938 = vsel %vm1358, %v1887, 0
      %v1941 = vsel %vm1358, %v1888, 0
      %v1944 = vsel %vm1358, %v1889, 0
      %v1947 = vsel %vm1358, %v1890, 0
      %v1950 = vsel %vm1358, %v1891, 0
      %v1953 = vsel %vm1358, %v1892, 0
      %v1956 = vsel %vm1358, %v1893, 0
      %1958 = vmatpush.msra.mxu0 0.0
      %1959 = vmatpush.msra.mxu0 0.0
      %1960 = vmatpush.msra.mxu0 0.0
      %1961 = vmatpush.msra.mxu0 0.0
      %1962 = vmatpush.msra.mxu0 0.0
      %1963 = vmatpush.msra.mxu0 0.0
      %1964 = vmatpush.msra.mxu0 0.0
      %1965 = vmatpush.msra.mxu0 0.0
      %1966 = vmatpush.msra.mxu0 0.0
      %1967 = vmatpush.msra.mxu0 0.0
      %1968 = vmatpush.msra.mxu0 0.0
      %1969 = vmatpush.msra.mxu0 0.0
      %1970 = vmatpush.msra.mxu0 0.0
      %1971 = vmatpush.msra.mxu0 %v1897
      %1972 = vmatpush.msra.mxu0 %v1896
      %1973 = vmatpush.msra.mxu0 %v1895
      %1974 = vmatmul.f32.gmra.mxu0 %v1899
      %v1975 = vpop.f32.mrf.mxu0
      %v1976 = vadd.f32 0.0, %v1975
      %1977 = vmatmul.f32.gmra.mxu0 %v1902
      %v1978 = vpop.f32.mrf.mxu0
      %v1979 = vadd.f32 0.0, %v1978
      %1980 = vmatmul.f32.gmra.mxu0 %v1905
      %v1981 = vpop.f32.mrf.mxu0
      %v1982 = vadd.f32 0.0, %v1981
      %1983 = vmatmul.f32.gmra.mxu0 %v1908
      %v1984 = vpop.f32.mrf.mxu0
      %v1985 = vadd.f32 0.0, %v1984
      %1986 = vmatmul.f32.gmra.mxu0 %v1911
      %v1987 = vpop.f32.mrf.mxu0
      %v1988 = vadd.f32 0.0, %v1987
      %1989 = vmatmul.f32.gmra.mxu0 %v1914
      %v1990 = vpop.f32.mrf.mxu0
      %v1991 = vadd.f32 0.0, %v1990
      %1992 = vmatmul.f32.gmra.mxu0 %v1917
      %v1993 = vpop.f32.mrf.mxu0
      %v1994 = vadd.f32 0.0, %v1993
      %1995 = vmatmul.f32.gmra.mxu0 %v1920
      %v1996 = vpop.f32.mrf.mxu0
      %v1997 = vadd.f32 0.0, %v1996
      %1998 = vmatmul.f32.gmra.mxu0 %v1923
      %v1999 = vpop.f32.mrf.mxu0
      %v2000 = vadd.f32 0.0, %v1999
      %2001 = vmatmul.f32.gmra.mxu0 %v1926
      %v2002 = vpop.f32.mrf.mxu0
      %v2003 = vadd.f32 0.0, %v2002
      %2004 = vmatmul.f32.gmra.mxu0 %v1929
      %v2005 = vpop.f32.mrf.mxu0
      %v2006 = vadd.f32 0.0, %v2005
      %2007 = vmatmul.f32.gmra.mxu0 %v1932
      %v2008 = vpop.f32.mrf.mxu0
      %v2009 = vadd.f32 0.0, %v2008
      %2010 = vmatmul.f32.gmra.mxu0 %v1935
      %v2011 = vpop.f32.mrf.mxu0
      %v2012 = vadd.f32 0.0, %v2011
      %2013 = vmatmul.f32.gmra.mxu0 %v1938
      %v2014 = vpop.f32.mrf.mxu0
      %v2015 = vadd.f32 0.0, %v2014
      %2016 = vmatmul.f32.gmra.mxu0 %v1941
      %v2017 = vpop.f32.mrf.mxu0
      %v2018 = vadd.f32 0.0, %v2017
      %2019 = vmatmul.f32.gmra.mxu0 %v1944
      %v2020 = vpop.f32.mrf.mxu0
      %v2021 = vadd.f32 0.0, %v2020
      %2022 = vmatmul.f32.gmra.mxu0 %v1947
      %v2023 = vpop.f32.mrf.mxu0
      %v2024 = vadd.f32 0.0, %v2023
      %2025 = vmatmul.f32.gmra.mxu0 %v1950
      %v2026 = vpop.f32.mrf.mxu0
      %v2027 = vadd.f32 0.0, %v2026
      %2028 = vmatmul.f32.gmra.mxu0 %v1953
      %v2029 = vpop.f32.mrf.mxu0
      %v2030 = vadd.f32 0.0, %v2029
      %2031 = vmatmul.f32.gmra.mxu0 %v1956
      %v2032 = vpop.f32.mrf.mxu0
      %v2033 = vadd.f32 0.0, %v2032
      %2034 = vdwg.mxu0
      %v2035 = vadd.f32 %v1574, %v1976
      %v2036 = vadd.f32 %v1577, %v1979
      %v2037 = vadd.f32 %v1580, %v1982
      %v2038 = vadd.f32 %v1583, %v1985
      %v2039 = vadd.f32 %v1586, %v1988
      %v2040 = vadd.f32 %v1589, %v1991
      %v2041 = vadd.f32 %v1592, %v1994
      %v2042 = vadd.f32 %v1595, %v1997
      %v2043 = vadd.f32 %v1598, %v2000
      %v2044 = vadd.f32 %v1601, %v2003
      %v2045 = vadd.f32 %v1604, %v2006
      %v2046 = vadd.f32 %v1607, %v2009
      %v2047 = vadd.f32 %v1610, %v2012
      %v2048 = vadd.f32 %v1613, %v2015
      %v2049 = vadd.f32 %v1616, %v2018
      %v2050 = vadd.f32 %v1619, %v2021
      %v2051 = vadd.f32 %v1622, %v2024
      %v2052 = vadd.f32 %v1625, %v2027
      %v2053 = vadd.f32 %v1628, %v2030
      %v2054 = vadd.f32 %v1631, %v2033
      %v2055 = vld [vmem:[%s4] sm:$0x1]
      %v2057 = vperm.slane %v2055, 0
      %v2059 = vadd.f32 %v2035, %v2057
      %v2060 = vadd.f32 %v2036, %v2057
      %v2061 = vadd.f32 %v2037, %v2057
      %v2062 = vadd.f32 %v2038, %v2057
      %v2063 = vadd.f32 %v2039, %v2057
      %v2064 = vadd.f32 %v2040, %v2057
      %v2065 = vadd.f32 %v2041, %v2057
      %v2066 = vadd.f32 %v2042, %v2057
      %v2067 = vadd.f32 %v2043, %v2057
      %v2068 = vadd.f32 %v2044, %v2057
      %v2069 = vadd.f32 %v2045, %v2057
      %v2070 = vadd.f32 %v2046, %v2057
      %v2071 = vadd.f32 %v2047, %v2057
      %v2072 = vadd.f32 %v2048, %v2057
      %v2073 = vadd.f32 %v2049, %v2057
      %v2074 = vadd.f32 %v2050, %v2057
      %v2075 = vadd.f32 %v2051, %v2057
      %v2076 = vadd.f32 %v2052, %v2057
      %v2077 = vadd.f32 %v2053, %v2057
      %v2078 = vadd.f32 %v2054, %v2057
      %vm2079 = vcmp.gt.f32.partialorder %v2059, 0.0
      %vm2080 = vcmp.gt.f32.partialorder %v2060, 0.0
      %vm2081 = vcmp.gt.f32.partialorder %v2061, 0.0
      %vm2082 = vcmp.gt.f32.partialorder %v2062, 0.0
      %vm2083 = vcmp.gt.f32.partialorder %v2063, 0.0
      %vm2084 = vcmp.gt.f32.partialorder %v2064, 0.0
      %vm2085 = vcmp.gt.f32.partialorder %v2065, 0.0
      %vm2086 = vcmp.gt.f32.partialorder %v2066, 0.0
      %vm2087 = vcmp.gt.f32.partialorder %v2067, 0.0
      %vm2088 = vcmp.gt.f32.partialorder %v2068, 0.0
      %vm2089 = vcmp.gt.f32.partialorder %v2069, 0.0
      %vm2090 = vcmp.gt.f32.partialorder %v2070, 0.0
      %vm2091 = vcmp.gt.f32.partialorder %v2071, 0.0
      %vm2092 = vcmp.gt.f32.partialorder %v2072, 0.0
      %vm2093 = vcmp.gt.f32.partialorder %v2073, 0.0
      %vm2094 = vcmp.gt.f32.partialorder %v2074, 0.0
      %vm2095 = vcmp.gt.f32.partialorder %v2075, 0.0
      %vm2096 = vcmp.gt.f32.partialorder %v2076, 0.0
      %vm2097 = vcmp.gt.f32.partialorder %v2077, 0.0
      %vm2098 = vcmp.gt.f32.partialorder %v2078, 0.0
      %v2099 = vmul.f32 %v2059, 0.01
      %v2100 = vmul.f32 %v2060, 0.01
      %v2101 = vmul.f32 %v2061, 0.01
      %v2102 = vmul.f32 %v2062, 0.01
      %v2103 = vmul.f32 %v2063, 0.01
      %v2104 = vmul.f32 %v2064, 0.01
      %v2105 = vmul.f32 %v2065, 0.01
      %v2106 = vmul.f32 %v2066, 0.01
      %v2107 = vmul.f32 %v2067, 0.01
      %v2108 = vmul.f32 %v2068, 0.01
      %v2109 = vmul.f32 %v2069, 0.01
      %v2110 = vmul.f32 %v2070, 0.01
      %v2111 = vmul.f32 %v2071, 0.01
      %v2112 = vmul.f32 %v2072, 0.01
      %v2113 = vmul.f32 %v2073, 0.01
      %v2114 = vmul.f32 %v2074, 0.01
      %v2115 = vmul.f32 %v2075, 0.01
      %v2116 = vmul.f32 %v2076, 0.01
      %v2117 = vmul.f32 %v2077, 0.01
      %v2118 = vmul.f32 %v2078, 0.01
      %v2119 = vsel %vm2079, %v2059, %v2099
      %v2120 = vsel %vm2080, %v2060, %v2100
      %v2121 = vsel %vm2081, %v2061, %v2101
      %v2122 = vsel %vm2082, %v2062, %v2102
      %v2123 = vsel %vm2083, %v2063, %v2103
      %v2124 = vsel %vm2084, %v2064, %v2104
      %v2125 = vsel %vm2085, %v2065, %v2105
      %v2126 = vsel %vm2086, %v2066, %v2106
      %v2127 = vsel %vm2087, %v2067, %v2107
      %v2128 = vsel %vm2088, %v2068, %v2108
      %v2129 = vsel %vm2089, %v2069, %v2109
      %v2130 = vsel %vm2090, %v2070, %v2110
      %v2131 = vsel %vm2091, %v2071, %v2111
      %v2132 = vsel %vm2092, %v2072, %v2112
      %v2133 = vsel %vm2093, %v2073, %v2113
      %v2134 = vsel %vm2094, %v2074, %v2114
      %v2135 = vsel %vm2095, %v2075, %v2115
      %v2136 = vsel %vm2096, %v2076, %v2116
      %v2137 = vsel %vm2097, %v2077, %v2117
      %v2138 = vsel %vm2098, %v2078, %v2118
      %v2139 = vld [vmem:[%s5] sm:$0xff]
      %v2140 = vld [vmem:[%s5 + $0x8] sm:$0xff]
      %v2141 = vld [vmem:[%s6] sm:$0x1]
      %v2143 = vperm.slane %v2141, 0
      %v2146 = vsel %vm1069, %v2119, 0
      %v2149 = vsel %vm1069, %v2120, 0
      %v2152 = vsel %vm1069, %v2121, 0
      %v2155 = vsel %vm1069, %v2122, 0
      %v2158 = vsel %vm1069, %v2123, 0
      %v2161 = vsel %vm1069, %v2124, 0
      %v2164 = vsel %vm1069, %v2125, 0
      %v2167 = vsel %vm1069, %v2126, 0
      %v2170 = vsel %vm1069, %v2127, 0
      %v2173 = vsel %vm1069, %v2128, 0
      %v2176 = vsel %vm1069, %v2129, 0
      %v2179 = vsel %vm1069, %v2130, 0
      %v2182 = vsel %vm1069, %v2131, 0
      %v2185 = vsel %vm1069, %v2132, 0
      %v2188 = vsel %vm1069, %v2133, 0
      %v2191 = vsel %vm1069, %v2134, 0
      %v2194 = vsel %vm1069, %v2135, 0
      %v2197 = vsel %vm1069, %v2136, 0
      %v2200 = vsel %vm1069, %v2137, 0
      %v2203 = vsel %vm1069, %v2138, 0
      %2205 = vmatpush.msra.mxu0 0.0
      %2206 = vmatpush.msra.mxu0 0.0
      %2207 = vmatpush.msra.mxu0 0.0
      %2208 = vmatpush.msra.mxu0 0.0
      %2209 = vmatpush.msra.mxu0 0.0
      %2210 = vmatpush.msra.mxu0 0.0
      %2211 = vmatpush.msra.mxu0 0.0
      %2212 = vmatpush.msra.mxu0 0.0
      %2213 = vmatpush.msra.mxu0 0.0
      %2214 = vmatpush.msra.mxu0 0.0
      %2215 = vmatpush.msra.mxu0 0.0
      %2216 = vmatpush.msra.mxu0 0.0
      %2217 = vmatpush.msra.mxu0 0.0
      %2218 = vmatpush.msra.mxu0 0.0
      %2219 = vmatpush.msra.mxu0 %v2140
      %2220 = vmatpush.msra.mxu0 %v2139
      %2221 = vmatmul.f32.gmra.mxu0 %v2146
      %v2222 = vpop.f32.mrf.mxu0
      %v2223 = vadd.f32 %v2143, %v2222
      %2224 = vmatmul.f32.gmra.mxu0 %v2149
      %v2225 = vpop.f32.mrf.mxu0
      %v2226 = vadd.f32 %v2143, %v2225
      %2227 = vmatmul.f32.gmra.mxu0 %v2152
      %v2228 = vpop.f32.mrf.mxu0
      %v2229 = vadd.f32 %v2143, %v2228
      %2230 = vmatmul.f32.gmra.mxu0 %v2155
      %v2231 = vpop.f32.mrf.mxu0
      %v2232 = vadd.f32 %v2143, %v2231
      %2233 = vmatmul.f32.gmra.mxu0 %v2158
      %v2234 = vpop.f32.mrf.mxu0
      %v2235 = vadd.f32 %v2143, %v2234
      %2236 = vmatmul.f32.gmra.mxu0 %v2161
      %v2237 = vpop.f32.mrf.mxu0
      %v2238 = vadd.f32 %v2143, %v2237
      %2239 = vmatmul.f32.gmra.mxu0 %v2164
      %v2240 = vpop.f32.mrf.mxu0
      %v2241 = vadd.f32 %v2143, %v2240
      %2242 = vmatmul.f32.gmra.mxu0 %v2167
      %v2243 = vpop.f32.mrf.mxu0
      %v2244 = vadd.f32 %v2143, %v2243
      %2245 = vmatmul.f32.gmra.mxu0 %v2170
      %v2246 = vpop.f32.mrf.mxu0
      %v2247 = vadd.f32 %v2143, %v2246
      %2248 = vmatmul.f32.gmra.mxu0 %v2173
      %v2249 = vpop.f32.mrf.mxu0
      %v2250 = vadd.f32 %v2143, %v2249
      %2251 = vmatmul.f32.gmra.mxu0 %v2176
      %v2252 = vpop.f32.mrf.mxu0
      %v2253 = vadd.f32 %v2143, %v2252
      %2254 = vmatmul.f32.gmra.mxu0 %v2179
      %v2255 = vpop.f32.mrf.mxu0
      %v2256 = vadd.f32 %v2143, %v2255
      %2257 = vmatmul.f32.gmra.mxu0 %v2182
      %v2258 = vpop.f32.mrf.mxu0
      %v2259 = vadd.f32 %v2143, %v2258
      %2260 = vmatmul.f32.gmra.mxu0 %v2185
      %v2261 = vpop.f32.mrf.mxu0
      %v2262 = vadd.f32 %v2143, %v2261
      %2263 = vmatmul.f32.gmra.mxu0 %v2188
      %v2264 = vpop.f32.mrf.mxu0
      %v2265 = vadd.f32 %v2143, %v2264
      %2266 = vmatmul.f32.gmra.mxu0 %v2191
      %v2267 = vpop.f32.mrf.mxu0
      %v2268 = vadd.f32 %v2143, %v2267
      %2269 = vmatmul.f32.gmra.mxu0 %v2194
      %v2270 = vpop.f32.mrf.mxu0
      %v2271 = vadd.f32 %v2143, %v2270
      %2272 = vmatmul.f32.gmra.mxu0 %v2197
      %v2273 = vpop.f32.mrf.mxu0
      %v2274 = vadd.f32 %v2143, %v2273
      %2275 = vmatmul.f32.gmra.mxu0 %v2200
      %v2276 = vpop.f32.mrf.mxu0
      %v2277 = vadd.f32 %v2143, %v2276
      %2278 = vmatmul.f32.gmra.mxu0 %v2203
      %v2279 = vpop.f32.mrf.mxu0
      %v2280 = vadd.f32 %v2143, %v2279
      %2281 = vdwg.mxu0
      %vm2282 = vcmp.gt.f32.partialorder %v2223, 0.0
      %vm2283 = vcmp.gt.f32.partialorder %v2226, 0.0
      %vm2284 = vcmp.gt.f32.partialorder %v2229, 0.0
      %vm2285 = vcmp.gt.f32.partialorder %v2232, 0.0
      %vm2286 = vcmp.gt.f32.partialorder %v2235, 0.0
      %vm2287 = vcmp.gt.f32.partialorder %v2238, 0.0
      %vm2288 = vcmp.gt.f32.partialorder %v2241, 0.0
      %vm2289 = vcmp.gt.f32.partialorder %v2244, 0.0
      %vm2290 = vcmp.gt.f32.partialorder %v2247, 0.0
      %vm2291 = vcmp.gt.f32.partialorder %v2250, 0.0
      %vm2292 = vcmp.gt.f32.partialorder %v2253, 0.0
      %vm2293 = vcmp.gt.f32.partialorder %v2256, 0.0
      %vm2294 = vcmp.gt.f32.partialorder %v2259, 0.0
      %vm2295 = vcmp.gt.f32.partialorder %v2262, 0.0
      %vm2296 = vcmp.gt.f32.partialorder %v2265, 0.0
      %vm2297 = vcmp.gt.f32.partialorder %v2268, 0.0
      %vm2298 = vcmp.gt.f32.partialorder %v2271, 0.0
      %vm2299 = vcmp.gt.f32.partialorder %v2274, 0.0
      %vm2300 = vcmp.gt.f32.partialorder %v2277, 0.0
      %vm2301 = vcmp.gt.f32.partialorder %v2280, 0.0
      %v2302 = vmul.f32 %v2223, 0.01
      %v2303 = vmul.f32 %v2226, 0.01
      %v2304 = vmul.f32 %v2229, 0.01
      %v2305 = vmul.f32 %v2232, 0.01
      %v2306 = vmul.f32 %v2235, 0.01
      %v2307 = vmul.f32 %v2238, 0.01
      %v2308 = vmul.f32 %v2241, 0.01
      %v2309 = vmul.f32 %v2244, 0.01
      %v2310 = vmul.f32 %v2247, 0.01
      %v2311 = vmul.f32 %v2250, 0.01
      %v2312 = vmul.f32 %v2253, 0.01
      %v2313 = vmul.f32 %v2256, 0.01
      %v2314 = vmul.f32 %v2259, 0.01
      %v2315 = vmul.f32 %v2262, 0.01
      %v2316 = vmul.f32 %v2265, 0.01
      %v2317 = vmul.f32 %v2268, 0.01
      %v2318 = vmul.f32 %v2271, 0.01
      %v2319 = vmul.f32 %v2274, 0.01
      %v2320 = vmul.f32 %v2277, 0.01
      %v2321 = vmul.f32 %v2280, 0.01
      %v2322 = vsel %vm2282, %v2223, %v2302
      %v2323 = vsel %vm2283, %v2226, %v2303
      %v2324 = vsel %vm2284, %v2229, %v2304
      %v2325 = vsel %vm2285, %v2232, %v2305
      %v2326 = vsel %vm2286, %v2235, %v2306
      %v2327 = vsel %vm2287, %v2238, %v2307
      %v2328 = vsel %vm2288, %v2241, %v2308
      %v2329 = vsel %vm2289, %v2244, %v2309
      %v2330 = vsel %vm2290, %v2247, %v2310
      %v2331 = vsel %vm2291, %v2250, %v2311
      %v2332 = vsel %vm2292, %v2253, %v2312
      %v2333 = vsel %vm2293, %v2256, %v2313
      %v2334 = vsel %vm2294, %v2259, %v2314
      %v2335 = vsel %vm2295, %v2262, %v2315
      %v2336 = vsel %vm2296, %v2265, %v2316
      %v2337 = vsel %vm2297, %v2268, %v2317
      %v2338 = vsel %vm2298, %v2271, %v2318
      %v2339 = vsel %vm2299, %v2274, %v2319
      %v2340 = vsel %vm2300, %v2277, %v2320
      %v2341 = vsel %vm2301, %v2280, %v2321
      %s2342 = ssub.s32 %s412, 1
      %v2343 = vstv %s2342
      %v2344 = vadd.s32 %v2343, 1
      %v2345 = vadd.s32 %v2343, 2
      %v2346 = vadd.s32 %v2343, 3
      %v2347 = vadd.s32 %v2343, 4
      %v2348 = vadd.s32 %v2343, 5
      %v2349 = vadd.s32 %v2343, 6
      %v2350 = vadd.s32 %v2343, 7
      %v2351 = vadd.s32 %v2343, 8
      %v2352 = vadd.s32 %v2343, 9
      %vm2353 = vcmp.ge.s32.totalorder %v2343, 0
      %vm2354 = vcmp.ge.s32.totalorder %v2344, 0
      %vm2355 = vcmp.ge.s32.totalorder %v2345, 0
      %vm2356 = vcmp.ge.s32.totalorder %v2346, 0
      %vm2357 = vcmp.ge.s32.totalorder %v2347, 0
      %vm2358 = vcmp.ge.s32.totalorder %v2348, 0
      %vm2359 = vcmp.ge.s32.totalorder %v2349, 0
      %vm2360 = vcmp.ge.s32.totalorder %v2350, 0
      %vm2361 = vcmp.ge.s32.totalorder %v2351, 0
      %vm2362 = vcmp.ge.s32.totalorder %v2352, 0
      %vm2363 = vcmp.lt.s32.totalorder %v2343, 16
      %vm2364 = vcmp.lt.s32.totalorder %v2344, 16
      %vm2365 = vcmp.lt.s32.totalorder %v2345, 16
      %vm2366 = vcmp.lt.s32.totalorder %v2346, 16
      %vm2367 = vcmp.lt.s32.totalorder %v2347, 16
      %vm2368 = vcmp.lt.s32.totalorder %v2348, 16
      %vm2369 = vcmp.lt.s32.totalorder %v2349, 16
      %vm2370 = vcmp.lt.s32.totalorder %v2350, 16
      %vm2371 = vcmp.lt.s32.totalorder %v2351, 16
      %vm2372 = vcmp.lt.s32.totalorder %v2352, 16
      %vm2373 = vmand %vm2353, %vm2363
      %vm2374 = vmand %vm2354, %vm2364
      %vm2375 = vmand %vm2355, %vm2365
      %vm2376 = vmand %vm2356, %vm2366
      %vm2377 = vmand %vm2357, %vm2367
      %vm2378 = vmand %vm2358, %vm2368
      %vm2379 = vmand %vm2359, %vm2369
      %vm2380 = vmand %vm2360, %vm2370
      %vm2381 = vmand %vm2361, %vm2371
      %vm2382 = vmand %vm2362, %vm2372
      %v2383 = vsel %vm2373, 1, 0
      %v2384 = vsel %vm2374, 1, 0
      %v2385 = vsel %vm2375, 1, 0
      %v2386 = vsel %vm2376, 1, 0
      %v2387 = vsel %vm2377, 1, 0
      %v2388 = vsel %vm2378, 1, 0
      %v2389 = vsel %vm2379, 1, 0
      %v2390 = vsel %vm2380, 1, 0
      %v2391 = vsel %vm2381, 1, 0
      %v2392 = vsel %vm2382, 1, 0
      %vm2393 = vcmp.eq.s32.totalorder %v2383, 1
      %vm2394 = vcmp.eq.s32.totalorder %v2384, 1
      %vm2395 = vcmp.eq.s32.totalorder %v2385, 1
      %vm2396 = vcmp.eq.s32.totalorder %v2386, 1
      %vm2397 = vcmp.eq.s32.totalorder %v2387, 1
      %vm2398 = vcmp.eq.s32.totalorder %v2388, 1
      %vm2399 = vcmp.eq.s32.totalorder %v2389, 1
      %vm2400 = vcmp.eq.s32.totalorder %v2390, 1
      %vm2401 = vcmp.eq.s32.totalorder %v2391, 1
      %vm2402 = vcmp.eq.s32.totalorder %v2392, 1
      %v2403 = vsel %vm2393, %v2322, 0.0
      %v2404 = vsel %vm2393, %v2323, 0.0
      %v2405 = vsel %vm2394, %v2324, 0.0
      %v2406 = vsel %vm2394, %v2325, 0.0
      %v2407 = vsel %vm2395, %v2326, 0.0
      %v2408 = vsel %vm2395, %v2327, 0.0
      %v2409 = vsel %vm2396, %v2328, 0.0
      %v2410 = vsel %vm2396, %v2329, 0.0
      %v2411 = vsel %vm2397, %v2330, 0.0
      %v2412 = vsel %vm2397, %v2331, 0.0
      %v2413 = vsel %vm2398, %v2332, 0.0
      %v2414 = vsel %vm2398, %v2333, 0.0
      %v2415 = vsel %vm2399, %v2334, 0.0
      %v2416 = vsel %vm2399, %v2335, 0.0
      %v2417 = vsel %vm2400, %v2336, 0.0
      %v2418 = vsel %vm2400, %v2337, 0.0
      %v2419 = vsel %vm2401, %v2338, 0.0
      %v2420 = vsel %vm2401, %v2339, 0.0
      %v2421 = vsel %vm2402, %v2340, 0.0
      %v2422 = vsel %vm2402, %v2341, 0.0
      %2423 = vst.msk [vmem:[#allocation3] sm:$0x1] %vm779, 0.0
      %2424 = vst.msk [vmem:[#allocation3 + $0x18] sm:$0x1] %vm779, 0.0
      %2425 = vst.msk [vmem:[#allocation3 + $0x30] sm:$0x1] %vm779, 0.0
      %2426 = vst.msk [vmem:[#allocation3 + $0x48] sm:$0x1] %vm779, 0.0
      %2427 = vst.msk [vmem:[#allocation3 + $0x60] sm:$0x1] %vm779, 0.0
      %2428 = vst.msk [vmem:[#allocation3 + $0x78] sm:$0x1] %vm779, 0.0
      %2429 = vst.msk [vmem:[#allocation3 + $0x90] sm:$0x1] %vm779, 0.0
      %2430 = vst.msk [vmem:[#allocation3 + $0xa8] sm:$0x1] %vm779, 0.0
      %2431 = vst.msk [vmem:[#allocation3 + $0xc0] sm:$0x1] %vm779, 0.0
      %2432 = vst.msk [vmem:[#allocation3 + $0xd8] sm:$0x1] %vm779, 0.0
      %2433 = vst.msk [vmem:[#allocation3 + $0x11] sm:$0x1] %vm779, 0.0
      %2434 = vst.msk [vmem:[#allocation3 + $0x29] sm:$0x1] %vm779, 0.0
      %2435 = vst.msk [vmem:[#allocation3 + $0x41] sm:$0x1] %vm779, 0.0
      %2436 = vst.msk [vmem:[#allocation3 + $0x59] sm:$0x1] %vm779, 0.0
      %2437 = vst.msk [vmem:[#allocation3 + $0x71] sm:$0x1] %vm779, 0.0
      %2438 = vst.msk [vmem:[#allocation3 + $0x89] sm:$0x1] %vm779, 0.0
      %2439 = vst.msk [vmem:[#allocation3 + $0xa1] sm:$0x1] %vm779, 0.0
      %2440 = vst.msk [vmem:[#allocation3 + $0xb9] sm:$0x1] %vm779, 0.0
      %2441 = vst.msk [vmem:[#allocation3 + $0xd1] sm:$0x1] %vm779, 0.0
      %2442 = vst.msk [vmem:[#allocation3 + $0xe9] sm:$0x1] %vm779, 0.0
      %2443 = vst.msk [vmem:[#allocation3 + $0x1] sm:$0xff] %vm804, %v2403
      %2444 = vst.msk [vmem:[#allocation3 + $0x9] sm:$0xff] %vm804, %v2404
      %2445 = vst.msk [vmem:[#allocation3 + $0x19] sm:$0xff] %vm804, %v2405
      %2446 = vst.msk [vmem:[#allocation3 + $0x21] sm:$0xff] %vm804, %v2406
      %2447 = vst.msk [vmem:[#allocation3 + $0x31] sm:$0xff] %vm804, %v2407
      %2448 = vst.msk [vmem:[#allocation3 + $0x39] sm:$0xff] %vm804, %v2408
      %2449 = vst.msk [vmem:[#allocation3 + $0x49] sm:$0xff] %vm804, %v2409
      %2450 = vst.msk [vmem:[#allocation3 + $0x51] sm:$0xff] %vm804, %v2410
      %2451 = vst.msk [vmem:[#allocation3 + $0x61] sm:$0xff] %vm804, %v2411
      %2452 = vst.msk [vmem:[#allocation3 + $0x69] sm:$0xff] %vm804, %v2412
      %2453 = vst.msk [vmem:[#allocation3 + $0x79] sm:$0xff] %vm804, %v2413
      %2454 = vst.msk [vmem:[#allocation3 + $0x81] sm:$0xff] %vm804, %v2414
      %2455 = vst.msk [vmem:[#allocation3 + $0x91] sm:$0xff] %vm804, %v2415
      %2456 = vst.msk [vmem:[#allocation3 + $0x99] sm:$0xff] %vm804, %v2416
      %2457 = vst.msk [vmem:[#allocation3 + $0xa9] sm:$0xff] %vm804, %v2417
      %2458 = vst.msk [vmem:[#allocation3 + $0xb1] sm:$0xff] %vm804, %v2418
      %2459 = vst.msk [vmem:[#allocation3 + $0xc1] sm:$0xff] %vm804, %v2419
      %2460 = vst.msk [vmem:[#allocation3 + $0xc9] sm:$0xff] %vm804, %v2420
      %2461 = vst.msk [vmem:[#allocation3 + $0xd9] sm:$0xff] %vm804, %v2421
      %2462 = vst.msk [vmem:[#allocation3 + $0xe1] sm:$0xff] %vm804, %v2422
      %v2463 = vld [vmem:[#allocation3] sm:$0xff]
      %v2464 = vld [vmem:[#allocation3 + $0x8] sm:$0xff]
      %v2465 = vld [vmem:[#allocation3 + $0x18] sm:$0xff]
      %v2466 = vld [vmem:[#allocation3 + $0x20] sm:$0xff]
      %v2467 = vld [vmem:[#allocation3 + $0x30] sm:$0xff]
      %v2468 = vld [vmem:[#allocation3 + $0x38] sm:$0xff]
      %v2469 = vld [vmem:[#allocation3 + $0x48] sm:$0xff]
      %v2470 = vld [vmem:[#allocation3 + $0x50] sm:$0xff]
      %v2471 = vld [vmem:[#allocation3 + $0x60] sm:$0xff]
      %v2472 = vld [vmem:[#allocation3 + $0x68] sm:$0xff]
      %v2473 = vld [vmem:[#allocation3 + $0x78] sm:$0xff]
      %v2474 = vld [vmem:[#allocation3 + $0x80] sm:$0xff]
      %v2475 = vld [vmem:[#allocation3 + $0x90] sm:$0xff]
      %v2476 = vld [vmem:[#allocation3 + $0x98] sm:$0xff]
      %v2477 = vld [vmem:[#allocation3 + $0xa8] sm:$0xff]
      %v2478 = vld [vmem:[#allocation3 + $0xb0] sm:$0xff]
      %v2479 = vld [vmem:[#allocation3 + $0x1] sm:$0xff]
      %v2480 = vld [vmem:[#allocation3 + $0x9] sm:$0xff]
      %v2481 = vld [vmem:[#allocation3 + $0x19] sm:$0xff]
      %v2482 = vld [vmem:[#allocation3 + $0x21] sm:$0xff]
      %v2483 = vld [vmem:[#allocation3 + $0x31] sm:$0xff]
      %v2484 = vld [vmem:[#allocation3 + $0x39] sm:$0xff]
      %v2485 = vld [vmem:[#allocation3 + $0x49] sm:$0xff]
      %v2486 = vld [vmem:[#allocation3 + $0x51] sm:$0xff]
      %v2487 = vld [vmem:[#allocation3 + $0x61] sm:$0xff]
      %v2488 = vld [vmem:[#allocation3 + $0x69] sm:$0xff]
      %v2489 = vld [vmem:[#allocation3 + $0x79] sm:$0xff]
      %v2490 = vld [vmem:[#allocation3 + $0x81] sm:$0xff]
      %v2491 = vld [vmem:[#allocation3 + $0x91] sm:$0xff]
      %v2492 = vld [vmem:[#allocation3 + $0x99] sm:$0xff]
      %v2493 = vld [vmem:[#allocation3 + $0xa9] sm:$0xff]
      %v2494 = vld [vmem:[#allocation3 + $0xb1] sm:$0xff]
      %v2495 = vld [vmem:[#allocation3 + $0x2] sm:$0xff]
      %v2496 = vld [vmem:[#allocation3 + $0xa] sm:$0xff]
      %v2497 = vld [vmem:[#allocation3 + $0x1a] sm:$0xff]
      %v2498 = vld [vmem:[#allocation3 + $0x22] sm:$0xff]
      %v2499 = vld [vmem:[#allocation3 + $0x32] sm:$0xff]
      %v2500 = vld [vmem:[#allocation3 + $0x3a] sm:$0xff]
      %v2501 = vld [vmem:[#allocation3 + $0x4a] sm:$0xff]
      %v2502 = vld [vmem:[#allocation3 + $0x52] sm:$0xff]
      %v2503 = vld [vmem:[#allocation3 + $0x62] sm:$0xff]
      %v2504 = vld [vmem:[#allocation3 + $0x6a] sm:$0xff]
      %v2505 = vld [vmem:[#allocation3 + $0x7a] sm:$0xff]
      %v2506 = vld [vmem:[#allocation3 + $0x82] sm:$0xff]
      %v2507 = vld [vmem:[#allocation3 + $0x92] sm:$0xff]
      %v2508 = vld [vmem:[#allocation3 + $0x9a] sm:$0xff]
      %v2509 = vld [vmem:[#allocation3 + $0xaa] sm:$0xff]
      %v2510 = vld [vmem:[#allocation3 + $0xb2] sm:$0xff]
      %2527 = vrot.lane.b32.xlu0 %v2479, 8
      %v2528 = vpop.permute.xlu0 %2527
      %2529 = vrot.lane.b32.xlu0 %v2480, 8
      %v2530 = vpop.permute.xlu0 %2529
      %2531 = vrot.lane.b32.xlu0 %v2481, 8
      %v2532 = vpop.permute.xlu0 %2531
      %2533 = vrot.lane.b32.xlu0 %v2482, 8
      %v2534 = vpop.permute.xlu0 %2533
      %2535 = vrot.lane.b32.xlu0 %v2483, 8
      %v2536 = vpop.permute.xlu0 %2535
      %2537 = vrot.lane.b32.xlu0 %v2484, 8
      %v2538 = vpop.permute.xlu0 %2537
      %2539 = vrot.lane.b32.xlu0 %v2485, 8
      %v2540 = vpop.permute.xlu0 %2539
      %2541 = vrot.lane.b32.xlu0 %v2486, 8
      %v2542 = vpop.permute.xlu0 %2541
      %2543 = vrot.lane.b32.xlu0 %v2487, 8
      %v2544 = vpop.permute.xlu0 %2543
      %2545 = vrot.lane.b32.xlu0 %v2488, 8
      %v2546 = vpop.permute.xlu0 %2545
      %2547 = vrot.lane.b32.xlu0 %v2489, 8
      %v2548 = vpop.permute.xlu0 %2547
      %2549 = vrot.lane.b32.xlu0 %v2490, 8
      %v2550 = vpop.permute.xlu0 %2549
      %2551 = vrot.lane.b32.xlu0 %v2491, 8
      %v2552 = vpop.permute.xlu0 %2551
      %2553 = vrot.lane.b32.xlu0 %v2492, 8
      %v2554 = vpop.permute.xlu0 %2553
      %2555 = vrot.lane.b32.xlu0 %v2493, 8
      %v2556 = vpop.permute.xlu0 %2555
      %2557 = vrot.lane.b32.xlu0 %v2494, 8
      %v2558 = vpop.permute.xlu0 %2557
      %2591 = vrot.lane.b32.xlu0 %v2495, 16
      %v2592 = vpop.permute.xlu0 %2591
      %2593 = vrot.lane.b32.xlu0 %v2496, 16
      %v2594 = vpop.permute.xlu0 %2593
      %2595 = vrot.lane.b32.xlu0 %v2497, 16
      %v2596 = vpop.permute.xlu0 %2595
      %2597 = vrot.lane.b32.xlu0 %v2498, 16
      %v2598 = vpop.permute.xlu0 %2597
      %2599 = vrot.lane.b32.xlu0 %v2499, 16
      %v2600 = vpop.permute.xlu0 %2599
      %2601 = vrot.lane.b32.xlu0 %v2500, 16
      %v2602 = vpop.permute.xlu0 %2601
      %2603 = vrot.lane.b32.xlu0 %v2501, 16
      %v2604 = vpop.permute.xlu0 %2603
      %2605 = vrot.lane.b32.xlu0 %v2502, 16
      %v2606 = vpop.permute.xlu0 %2605
      %2607 = vrot.lane.b32.xlu0 %v2503, 16
      %v2608 = vpop.permute.xlu0 %2607
      %2609 = vrot.lane.b32.xlu0 %v2504, 16
      %v2610 = vpop.permute.xlu0 %2609
      %2611 = vrot.lane.b32.xlu0 %v2505, 16
      %v2612 = vpop.permute.xlu0 %2611
      %2613 = vrot.lane.b32.xlu0 %v2506, 16
      %v2614 = vpop.permute.xlu0 %2613
      %2615 = vrot.lane.b32.xlu0 %v2507, 16
      %v2616 = vpop.permute.xlu0 %2615
      %2617 = vrot.lane.b32.xlu0 %v2508, 16
      %v2618 = vpop.permute.xlu0 %2617
      %2619 = vrot.lane.b32.xlu0 %v2509, 16
      %v2620 = vpop.permute.xlu0 %2619
      %2621 = vrot.lane.b32.xlu0 %v2510, 16
      %v2622 = vpop.permute.xlu0 %2621
      %v2639 = vsel %vm804, %v2463, %v2528
      %v2640 = vsel %vm804, %v2464, %v2530
      %v2641 = vsel %vm804, %v2465, %v2532
      %v2642 = vsel %vm804, %v2466, %v2534
      %v2643 = vsel %vm804, %v2467, %v2536
      %v2644 = vsel %vm804, %v2468, %v2538
      %v2645 = vsel %vm804, %v2469, %v2540
      %v2646 = vsel %vm804, %v2470, %v2542
      %v2647 = vsel %vm804, %v2471, %v2544
      %v2648 = vsel %vm804, %v2472, %v2546
      %v2649 = vsel %vm804, %v2473, %v2548
      %v2650 = vsel %vm804, %v2474, %v2550
      %v2651 = vsel %vm804, %v2475, %v2552
      %v2652 = vsel %vm804, %v2476, %v2554
      %v2653 = vsel %vm804, %v2477, %v2556
      %v2654 = vsel %vm804, %v2478, %v2558
      %v2655 = vsel %vm1069, %v2639, %v2592
      %v2656 = vsel %vm1069, %v2640, %v2594
      %v2657 = vsel %vm1069, %v2641, %v2596
      %v2658 = vsel %vm1069, %v2642, %v2598
      %v2659 = vsel %vm1069, %v2643, %v2600
      %v2660 = vsel %vm1069, %v2644, %v2602
      %v2661 = vsel %vm1069, %v2645, %v2604
      %v2662 = vsel %vm1069, %v2646, %v2606
      %v2663 = vsel %vm1069, %v2647, %v2608
      %v2664 = vsel %vm1069, %v2648, %v2610
      %v2665 = vsel %vm1069, %v2649, %v2612
      %v2666 = vsel %vm1069, %v2650, %v2614
      %v2667 = vsel %vm1069, %v2651, %v2616
      %v2668 = vsel %vm1069, %v2652, %v2618
      %v2669 = vsel %vm1069, %v2653, %v2620
      %v2670 = vsel %vm1069, %v2654, %v2622
      %v2671 = vld [vmem:[%s7] sm:$0xff]
      %v2672 = vld [vmem:[%s7 + $0x8] sm:$0xff]
      %v2673 = vld [vmem:[%s7 + $0x10] sm:$0xff]
      %s2674 = scalar_lea.vmem [#allocation3], 24
      %v2675 = vld [vmem:[%s2674] sm:$0xff]
      %v2676 = vld [vmem:[%s2674 + $0x8] sm:$0xff]
      %v2677 = vld [vmem:[%s2674 + $0x18] sm:$0xff]
      %v2678 = vld [vmem:[%s2674 + $0x20] sm:$0xff]
      %v2679 = vld [vmem:[%s2674 + $0x30] sm:$0xff]
      %v2680 = vld [vmem:[%s2674 + $0x38] sm:$0xff]
      %v2681 = vld [vmem:[%s2674 + $0x48] sm:$0xff]
      %v2682 = vld [vmem:[%s2674 + $0x50] sm:$0xff]
      %v2683 = vld [vmem:[%s2674 + $0x60] sm:$0xff]
      %v2684 = vld [vmem:[%s2674 + $0x68] sm:$0xff]
      %v2685 = vld [vmem:[%s2674 + $0x78] sm:$0xff]
      %v2686 = vld [vmem:[%s2674 + $0x80] sm:$0xff]
      %v2687 = vld [vmem:[%s2674 + $0x90] sm:$0xff]
      %v2688 = vld [vmem:[%s2674 + $0x98] sm:$0xff]
      %v2689 = vld [vmem:[%s2674 + $0xa8] sm:$0xff]
      %v2690 = vld [vmem:[%s2674 + $0xb0] sm:$0xff]
      %v2691 = vld [vmem:[%s2674 + $0x1] sm:$0xff]
      %v2692 = vld [vmem:[%s2674 + $0x9] sm:$0xff]
      %v2693 = vld [vmem:[%s2674 + $0x19] sm:$0xff]
      %v2694 = vld [vmem:[%s2674 + $0x21] sm:$0xff]
      %v2695 = vld [vmem:[%s2674 + $0x31] sm:$0xff]
      %v2696 = vld [vmem:[%s2674 + $0x39] sm:$0xff]
      %v2697 = vld [vmem:[%s2674 + $0x49] sm:$0xff]
      %v2698 = vld [vmem:[%s2674 + $0x51] sm:$0xff]
      %v2699 = vld [vmem:[%s2674 + $0x61] sm:$0xff]
      %v2700 = vld [vmem:[%s2674 + $0x69] sm:$0xff]
      %v2701 = vld [vmem:[%s2674 + $0x79] sm:$0xff]
      %v2702 = vld [vmem:[%s2674 + $0x81] sm:$0xff]
      %v2703 = vld [vmem:[%s2674 + $0x91] sm:$0xff]
      %v2704 = vld [vmem:[%s2674 + $0x99] sm:$0xff]
      %v2705 = vld [vmem:[%s2674 + $0xa9] sm:$0xff]
      %v2706 = vld [vmem:[%s2674 + $0xb1] sm:$0xff]
      %v2707 = vld [vmem:[%s2674 + $0x2] sm:$0xff]
      %v2708 = vld [vmem:[%s2674 + $0xa] sm:$0xff]
      %v2709 = vld [vmem:[%s2674 + $0x1a] sm:$0xff]
      %v2710 = vld [vmem:[%s2674 + $0x22] sm:$0xff]
      %v2711 = vld [vmem:[%s2674 + $0x32] sm:$0xff]
      %v2712 = vld [vmem:[%s2674 + $0x3a] sm:$0xff]
      %v2713 = vld [vmem:[%s2674 + $0x4a] sm:$0xff]
      %v2714 = vld [vmem:[%s2674 + $0x52] sm:$0xff]
      %v2715 = vld [vmem:[%s2674 + $0x62] sm:$0xff]
      %v2716 = vld [vmem:[%s2674 + $0x6a] sm:$0xff]
      %v2717 = vld [vmem:[%s2674 + $0x7a] sm:$0xff]
      %v2718 = vld [vmem:[%s2674 + $0x82] sm:$0xff]
      %v2719 = vld [vmem:[%s2674 + $0x92] sm:$0xff]
      %v2720 = vld [vmem:[%s2674 + $0x9a] sm:$0xff]
      %v2721 = vld [vmem:[%s2674 + $0xaa] sm:$0xff]
      %v2722 = vld [vmem:[%s2674 + $0xb2] sm:$0xff]
      %2739 = vrot.lane.b32.xlu0 %v2691, 8
      %v2740 = vpop.permute.xlu0 %2739
      %2741 = vrot.lane.b32.xlu0 %v2692, 8
      %v2742 = vpop.permute.xlu0 %2741
      %2743 = vrot.lane.b32.xlu0 %v2693, 8
      %v2744 = vpop.permute.xlu0 %2743
      %2745 = vrot.lane.b32.xlu0 %v2694, 8
      %v2746 = vpop.permute.xlu0 %2745
      %2747 = vrot.lane.b32.xlu0 %v2695, 8
      %v2748 = vpop.permute.xlu0 %2747
      %2749 = vrot.lane.b32.xlu0 %v2696, 8
      %v2750 = vpop.permute.xlu0 %2749
      %2751 = vrot.lane.b32.xlu0 %v2697, 8
      %v2752 = vpop.permute.xlu0 %2751
      %2753 = vrot.lane.b32.xlu0 %v2698, 8
      %v2754 = vpop.permute.xlu0 %2753
      %2755 = vrot.lane.b32.xlu0 %v2699, 8
      %v2756 = vpop.permute.xlu0 %2755
      %2757 = vrot.lane.b32.xlu0 %v2700, 8
      %v2758 = vpop.permute.xlu0 %2757
      %2759 = vrot.lane.b32.xlu0 %v2701, 8
      %v2760 = vpop.permute.xlu0 %2759
      %2761 = vrot.lane.b32.xlu0 %v2702, 8
      %v2762 = vpop.permute.xlu0 %2761
      %2763 = vrot.lane.b32.xlu0 %v2703, 8
      %v2764 = vpop.permute.xlu0 %2763
      %2765 = vrot.lane.b32.xlu0 %v2704, 8
      %v2766 = vpop.permute.xlu0 %2765
      %2767 = vrot.lane.b32.xlu0 %v2705, 8
      %v2768 = vpop.permute.xlu0 %2767
      %2769 = vrot.lane.b32.xlu0 %v2706, 8
      %v2770 = vpop.permute.xlu0 %2769
      %2803 = vrot.lane.b32.xlu0 %v2707, 16
      %v2804 = vpop.permute.xlu0 %2803
      %2805 = vrot.lane.b32.xlu0 %v2708, 16
      %v2806 = vpop.permute.xlu0 %2805
      %2807 = vrot.lane.b32.xlu0 %v2709, 16
      %v2808 = vpop.permute.xlu0 %2807
      %2809 = vrot.lane.b32.xlu0 %v2710, 16
      %v2810 = vpop.permute.xlu0 %2809
      %2811 = vrot.lane.b32.xlu0 %v2711, 16
      %v2812 = vpop.permute.xlu0 %2811
      %2813 = vrot.lane.b32.xlu0 %v2712, 16
      %v2814 = vpop.permute.xlu0 %2813
      %2815 = vrot.lane.b32.xlu0 %v2713, 16
      %v2816 = vpop.permute.xlu0 %2815
      %2817 = vrot.lane.b32.xlu0 %v2714, 16
      %v2818 = vpop.permute.xlu0 %2817
      %2819 = vrot.lane.b32.xlu0 %v2715, 16
      %v2820 = vpop.permute.xlu0 %2819
      %2821 = vrot.lane.b32.xlu0 %v2716, 16
      %v2822 = vpop.permute.xlu0 %2821
      %2823 = vrot.lane.b32.xlu0 %v2717, 16
      %v2824 = vpop.permute.xlu0 %2823
      %2825 = vrot.lane.b32.xlu0 %v2718, 16
      %v2826 = vpop.permute.xlu0 %2825
      %2827 = vrot.lane.b32.xlu0 %v2719, 16
      %v2828 = vpop.permute.xlu0 %2827
      %2829 = vrot.lane.b32.xlu0 %v2720, 16
      %v2830 = vpop.permute.xlu0 %2829
      %2831 = vrot.lane.b32.xlu0 %v2721, 16
      %v2832 = vpop.permute.xlu0 %2831
      %2833 = vrot.lane.b32.xlu0 %v2722, 16
      %v2834 = vpop.permute.xlu0 %2833
      %v2851 = vsel %vm804, %v2675, %v2740
      %v2852 = vsel %vm804, %v2676, %v2742
      %v2853 = vsel %vm804, %v2677, %v2744
      %v2854 = vsel %vm804, %v2678, %v2746
      %v2855 = vsel %vm804, %v2679, %v2748
      %v2856 = vsel %vm804, %v2680, %v2750
      %v2857 = vsel %vm804, %v2681, %v2752
      %v2858 = vsel %vm804, %v2682, %v2754
      %v2859 = vsel %vm804, %v2683, %v2756
      %v2860 = vsel %vm804, %v2684, %v2758
      %v2861 = vsel %vm804, %v2685, %v2760
      %v2862 = vsel %vm804, %v2686, %v2762
      %v2863 = vsel %vm804, %v2687, %v2764
      %v2864 = vsel %vm804, %v2688, %v2766
      %v2865 = vsel %vm804, %v2689, %v2768
      %v2866 = vsel %vm804, %v2690, %v2770
      %v2867 = vsel %vm1069, %v2851, %v2804
      %v2868 = vsel %vm1069, %v2852, %v2806
      %v2869 = vsel %vm1069, %v2853, %v2808
      %v2870 = vsel %vm1069, %v2854, %v2810
      %v2871 = vsel %vm1069, %v2855, %v2812
      %v2872 = vsel %vm1069, %v2856, %v2814
      %v2873 = vsel %vm1069, %v2857, %v2816
      %v2874 = vsel %vm1069, %v2858, %v2818
      %v2875 = vsel %vm1069, %v2859, %v2820
      %v2876 = vsel %vm1069, %v2860, %v2822
      %v2877 = vsel %vm1069, %v2861, %v2824
      %v2878 = vsel %vm1069, %v2862, %v2826
      %v2879 = vsel %vm1069, %v2863, %v2828
      %v2880 = vsel %vm1069, %v2864, %v2830
      %v2881 = vsel %vm1069, %v2865, %v2832
      %v2882 = vsel %vm1069, %v2866, %v2834
      %s2883 = scalar_lea.vmem %s7, 24
      %v2884 = vld [vmem:[%s2883] sm:$0xff]
      %v2885 = vld [vmem:[%s2883 + $0x8] sm:$0xff]
      %v2886 = vld [vmem:[%s2883 + $0x10] sm:$0xff]
      %v2888 = vsel %vm1358, %v2867, 0
      %v2891 = vsel %vm1358, %v2868, 0
      %v2894 = vsel %vm1358, %v2869, 0
      %v2897 = vsel %vm1358, %v2870, 0
      %v2900 = vsel %vm1358, %v2871, 0
      %v2903 = vsel %vm1358, %v2872, 0
      %v2906 = vsel %vm1358, %v2873, 0
      %v2909 = vsel %vm1358, %v2874, 0
      %v2912 = vsel %vm1358, %v2875, 0
      %v2915 = vsel %vm1358, %v2876, 0
      %v2918 = vsel %vm1358, %v2877, 0
      %v2921 = vsel %vm1358, %v2878, 0
      %v2924 = vsel %vm1358, %v2879, 0
      %v2927 = vsel %vm1358, %v2880, 0
      %v2930 = vsel %vm1358, %v2881, 0
      %v2933 = vsel %vm1358, %v2882, 0
      %2935 = vmatpush.msra.mxu0 0.0
      %2936 = vmatpush.msra.mxu0 0.0
      %2937 = vmatpush.msra.mxu0 0.0
      %2938 = vmatpush.msra.mxu0 0.0
      %2939 = vmatpush.msra.mxu0 0.0
      %2940 = vmatpush.msra.mxu0 0.0
      %2941 = vmatpush.msra.mxu0 0.0
      %2942 = vmatpush.msra.mxu0 0.0
      %2943 = vmatpush.msra.mxu0 0.0
      %2944 = vmatpush.msra.mxu0 0.0
      %2945 = vmatpush.msra.mxu0 0.0
      %2946 = vmatpush.msra.mxu0 0.0
      %2947 = vmatpush.msra.mxu0 0.0
      %2948 = vmatpush.msra.mxu0 %v2886
      %2949 = vmatpush.msra.mxu0 %v2885
      %2950 = vmatpush.msra.mxu0 %v2884
      %2951 = vmatmul.f32.gmra.mxu0 %v2888
      %v2952 = vpop.f32.mrf.mxu0
      %v2953 = vadd.f32 0.0, %v2952
      %2954 = vmatmul.f32.gmra.mxu0 %v2891
      %v2955 = vpop.f32.mrf.mxu0
      %v2956 = vadd.f32 0.0, %v2955
      %2957 = vmatmul.f32.gmra.mxu0 %v2894
      %v2958 = vpop.f32.mrf.mxu0
      %v2959 = vadd.f32 0.0, %v2958
      %2960 = vmatmul.f32.gmra.mxu0 %v2897
      %v2961 = vpop.f32.mrf.mxu0
      %v2962 = vadd.f32 0.0, %v2961
      %2963 = vmatmul.f32.gmra.mxu0 %v2900
      %v2964 = vpop.f32.mrf.mxu0
      %v2965 = vadd.f32 0.0, %v2964
      %2966 = vmatmul.f32.gmra.mxu0 %v2903
      %v2967 = vpop.f32.mrf.mxu0
      %v2968 = vadd.f32 0.0, %v2967
      %2969 = vmatmul.f32.gmra.mxu0 %v2906
      %v2970 = vpop.f32.mrf.mxu0
      %v2971 = vadd.f32 0.0, %v2970
      %2972 = vmatmul.f32.gmra.mxu0 %v2909
      %v2973 = vpop.f32.mrf.mxu0
      %v2974 = vadd.f32 0.0, %v2973
      %2975 = vmatmul.f32.gmra.mxu0 %v2912
      %v2976 = vpop.f32.mrf.mxu0
      %v2977 = vadd.f32 0.0, %v2976
      %2978 = vmatmul.f32.gmra.mxu0 %v2915
      %v2979 = vpop.f32.mrf.mxu0
      %v2980 = vadd.f32 0.0, %v2979
      %2981 = vmatmul.f32.gmra.mxu0 %v2918
      %v2982 = vpop.f32.mrf.mxu0
      %v2983 = vadd.f32 0.0, %v2982
      %2984 = vmatmul.f32.gmra.mxu0 %v2921
      %v2985 = vpop.f32.mrf.mxu0
      %v2986 = vadd.f32 0.0, %v2985
      %2987 = vmatmul.f32.gmra.mxu0 %v2924
      %v2988 = vpop.f32.mrf.mxu0
      %v2989 = vadd.f32 0.0, %v2988
      %2990 = vmatmul.f32.gmra.mxu0 %v2927
      %v2991 = vpop.f32.mrf.mxu0
      %v2992 = vadd.f32 0.0, %v2991
      %2993 = vmatmul.f32.gmra.mxu0 %v2930
      %v2994 = vpop.f32.mrf.mxu0
      %v2995 = vadd.f32 0.0, %v2994
      %2996 = vmatmul.f32.gmra.mxu0 %v2933
      %v2997 = vpop.f32.mrf.mxu0
      %v2998 = vadd.f32 0.0, %v2997
      %2999 = vdwg.mxu0
      %v3001 = vsel %vm1358, %v2655, 0
      %v3004 = vsel %vm1358, %v2656, 0
      %v3007 = vsel %vm1358, %v2657, 0
      %v3010 = vsel %vm1358, %v2658, 0
      %v3013 = vsel %vm1358, %v2659, 0
      %v3016 = vsel %vm1358, %v2660, 0
      %v3019 = vsel %vm1358, %v2661, 0
      %v3022 = vsel %vm1358, %v2662, 0
      %v3025 = vsel %vm1358, %v2663, 0
      %v3028 = vsel %vm1358, %v2664, 0
      %v3031 = vsel %vm1358, %v2665, 0
      %v3034 = vsel %vm1358, %v2666, 0
      %v3037 = vsel %vm1358, %v2667, 0
      %v3040 = vsel %vm1358, %v2668, 0
      %v3043 = vsel %vm1358, %v2669, 0
      %v3046 = vsel %vm1358, %v2670, 0
      %3048 = vmatpush.msra.mxu0 0.0
      %3049 = vmatpush.msra.mxu0 0.0
      %3050 = vmatpush.msra.mxu0 0.0
      %3051 = vmatpush.msra.mxu0 0.0
      %3052 = vmatpush.msra.mxu0 0.0
      %3053 = vmatpush.msra.mxu0 0.0
      %3054 = vmatpush.msra.mxu0 0.0
      %3055 = vmatpush.msra.mxu0 0.0
      %3056 = vmatpush.msra.mxu0 0.0
      %3057 = vmatpush.msra.mxu0 0.0
      %3058 = vmatpush.msra.mxu0 0.0
      %3059 = vmatpush.msra.mxu0 0.0
      %3060 = vmatpush.msra.mxu0 0.0
      %3061 = vmatpush.msra.mxu0 %v2673
      %3062 = vmatpush.msra.mxu0 %v2672
      %3063 = vmatpush.msra.mxu0 %v2671
      %3064 = vmatmul.f32.gmra.mxu0 %v3001
      %v3065 = vpop.f32.mrf.mxu0
      %v3066 = vadd.f32 %v2953, %v3065
      %3067 = vmatmul.f32.gmra.mxu0 %v3004
      %v3068 = vpop.f32.mrf.mxu0
      %v3069 = vadd.f32 %v2956, %v3068
      %3070 = vmatmul.f32.gmra.mxu0 %v3007
      %v3071 = vpop.f32.mrf.mxu0
      %v3072 = vadd.f32 %v2959, %v3071
      %3073 = vmatmul.f32.gmra.mxu0 %v3010
      %v3074 = vpop.f32.mrf.mxu0
      %v3075 = vadd.f32 %v2962, %v3074
      %3076 = vmatmul.f32.gmra.mxu0 %v3013
      %v3077 = vpop.f32.mrf.mxu0
      %v3078 = vadd.f32 %v2965, %v3077
      %3079 = vmatmul.f32.gmra.mxu0 %v3016
      %v3080 = vpop.f32.mrf.mxu0
      %v3081 = vadd.f32 %v2968, %v3080
      %3082 = vmatmul.f32.gmra.mxu0 %v3019
      %v3083 = vpop.f32.mrf.mxu0
      %v3084 = vadd.f32 %v2971, %v3083
      %3085 = vmatmul.f32.gmra.mxu0 %v3022
      %v3086 = vpop.f32.mrf.mxu0
      %v3087 = vadd.f32 %v2974, %v3086
      %3088 = vmatmul.f32.gmra.mxu0 %v3025
      %v3089 = vpop.f32.mrf.mxu0
      %v3090 = vadd.f32 %v2977, %v3089
      %3091 = vmatmul.f32.gmra.mxu0 %v3028
      %v3092 = vpop.f32.mrf.mxu0
      %v3093 = vadd.f32 %v2980, %v3092
      %3094 = vmatmul.f32.gmra.mxu0 %v3031
      %v3095 = vpop.f32.mrf.mxu0
      %v3096 = vadd.f32 %v2983, %v3095
      %3097 = vmatmul.f32.gmra.mxu0 %v3034
      %v3098 = vpop.f32.mrf.mxu0
      %v3099 = vadd.f32 %v2986, %v3098
      %3100 = vmatmul.f32.gmra.mxu0 %v3037
      %v3101 = vpop.f32.mrf.mxu0
      %v3102 = vadd.f32 %v2989, %v3101
      %3103 = vmatmul.f32.gmra.mxu0 %v3040
      %v3104 = vpop.f32.mrf.mxu0
      %v3105 = vadd.f32 %v2992, %v3104
      %3106 = vmatmul.f32.gmra.mxu0 %v3043
      %v3107 = vpop.f32.mrf.mxu0
      %v3108 = vadd.f32 %v2995, %v3107
      %3109 = vmatmul.f32.gmra.mxu0 %v3046
      %v3110 = vpop.f32.mrf.mxu0
      %v3111 = vadd.f32 %v2998, %v3110
      %3112 = vdwg.mxu0
      %s3113 = scalar_lea.vmem [#allocation3], 48
      %v3114 = vld [vmem:[%s3113] sm:$0xff]
      %v3115 = vld [vmem:[%s3113 + $0x8] sm:$0xff]
      %v3116 = vld [vmem:[%s3113 + $0x18] sm:$0xff]
      %v3117 = vld [vmem:[%s3113 + $0x20] sm:$0xff]
      %v3118 = vld [vmem:[%s3113 + $0x30] sm:$0xff]
      %v3119 = vld [vmem:[%s3113 + $0x38] sm:$0xff]
      %v3120 = vld [vmem:[%s3113 + $0x48] sm:$0xff]
      %v3121 = vld [vmem:[%s3113 + $0x50] sm:$0xff]
      %v3122 = vld [vmem:[%s3113 + $0x60] sm:$0xff]
      %v3123 = vld [vmem:[%s3113 + $0x68] sm:$0xff]
      %v3124 = vld [vmem:[%s3113 + $0x78] sm:$0xff]
      %v3125 = vld [vmem:[%s3113 + $0x80] sm:$0xff]
      %v3126 = vld [vmem:[%s3113 + $0x90] sm:$0xff]
      %v3127 = vld [vmem:[%s3113 + $0x98] sm:$0xff]
      %v3128 = vld [vmem:[%s3113 + $0xa8] sm:$0xff]
      %v3129 = vld [vmem:[%s3113 + $0xb0] sm:$0xff]
      %v3130 = vld [vmem:[%s3113 + $0x1] sm:$0xff]
      %v3131 = vld [vmem:[%s3113 + $0x9] sm:$0xff]
      %v3132 = vld [vmem:[%s3113 + $0x19] sm:$0xff]
      %v3133 = vld [vmem:[%s3113 + $0x21] sm:$0xff]
      %v3134 = vld [vmem:[%s3113 + $0x31] sm:$0xff]
      %v3135 = vld [vmem:[%s3113 + $0x39] sm:$0xff]
      %v3136 = vld [vmem:[%s3113 + $0x49] sm:$0xff]
      %v3137 = vld [vmem:[%s3113 + $0x51] sm:$0xff]
      %v3138 = vld [vmem:[%s3113 + $0x61] sm:$0xff]
      %v3139 = vld [vmem:[%s3113 + $0x69] sm:$0xff]
      %v3140 = vld [vmem:[%s3113 + $0x79] sm:$0xff]
      %v3141 = vld [vmem:[%s3113 + $0x81] sm:$0xff]
      %v3142 = vld [vmem:[%s3113 + $0x91] sm:$0xff]
      %v3143 = vld [vmem:[%s3113 + $0x99] sm:$0xff]
      %v3144 = vld [vmem:[%s3113 + $0xa9] sm:$0xff]
      %v3145 = vld [vmem:[%s3113 + $0xb1] sm:$0xff]
      %v3146 = vld [vmem:[%s3113 + $0x2] sm:$0xff]
      %v3147 = vld [vmem:[%s3113 + $0xa] sm:$0xff]
      %v3148 = vld [vmem:[%s3113 + $0x1a] sm:$0xff]
      %v3149 = vld [vmem:[%s3113 + $0x22] sm:$0xff]
      %v3150 = vld [vmem:[%s3113 + $0x32] sm:$0xff]
      %v3151 = vld [vmem:[%s3113 + $0x3a] sm:$0xff]
      %v3152 = vld [vmem:[%s3113 + $0x4a] sm:$0xff]
      %v3153 = vld [vmem:[%s3113 + $0x52] sm:$0xff]
      %v3154 = vld [vmem:[%s3113 + $0x62] sm:$0xff]
      %v3155 = vld [vmem:[%s3113 + $0x6a] sm:$0xff]
      %v3156 = vld [vmem:[%s3113 + $0x7a] sm:$0xff]
      %v3157 = vld [vmem:[%s3113 + $0x82] sm:$0xff]
      %v3158 = vld [vmem:[%s3113 + $0x92] sm:$0xff]
      %v3159 = vld [vmem:[%s3113 + $0x9a] sm:$0xff]
      %v3160 = vld [vmem:[%s3113 + $0xaa] sm:$0xff]
      %v3161 = vld [vmem:[%s3113 + $0xb2] sm:$0xff]
      %3178 = vrot.lane.b32.xlu0 %v3130, 8
      %v3179 = vpop.permute.xlu0 %3178
      %3180 = vrot.lane.b32.xlu0 %v3131, 8
      %v3181 = vpop.permute.xlu0 %3180
      %3182 = vrot.lane.b32.xlu0 %v3132, 8
      %v3183 = vpop.permute.xlu0 %3182
      %3184 = vrot.lane.b32.xlu0 %v3133, 8
      %v3185 = vpop.permute.xlu0 %3184
      %3186 = vrot.lane.b32.xlu0 %v3134, 8
      %v3187 = vpop.permute.xlu0 %3186
      %3188 = vrot.lane.b32.xlu0 %v3135, 8
      %v3189 = vpop.permute.xlu0 %3188
      %3190 = vrot.lane.b32.xlu0 %v3136, 8
      %v3191 = vpop.permute.xlu0 %3190
      %3192 = vrot.lane.b32.xlu0 %v3137, 8
      %v3193 = vpop.permute.xlu0 %3192
      %3194 = vrot.lane.b32.xlu0 %v3138, 8
      %v3195 = vpop.permute.xlu0 %3194
      %3196 = vrot.lane.b32.xlu0 %v3139, 8
      %v3197 = vpop.permute.xlu0 %3196
      %3198 = vrot.lane.b32.xlu0 %v3140, 8
      %v3199 = vpop.permute.xlu0 %3198
      %3200 = vrot.lane.b32.xlu0 %v3141, 8
      %v3201 = vpop.permute.xlu0 %3200
      %3202 = vrot.lane.b32.xlu0 %v3142, 8
      %v3203 = vpop.permute.xlu0 %3202
      %3204 = vrot.lane.b32.xlu0 %v3143, 8
      %v3205 = vpop.permute.xlu0 %3204
      %3206 = vrot.lane.b32.xlu0 %v3144, 8
      %v3207 = vpop.permute.xlu0 %3206
      %3208 = vrot.lane.b32.xlu0 %v3145, 8
      %v3209 = vpop.permute.xlu0 %3208
      %3242 = vrot.lane.b32.xlu0 %v3146, 16
      %v3243 = vpop.permute.xlu0 %3242
      %3244 = vrot.lane.b32.xlu0 %v3147, 16
      %v3245 = vpop.permute.xlu0 %3244
      %3246 = vrot.lane.b32.xlu0 %v3148, 16
      %v3247 = vpop.permute.xlu0 %3246
      %3248 = vrot.lane.b32.xlu0 %v3149, 16
      %v3249 = vpop.permute.xlu0 %3248
      %3250 = vrot.lane.b32.xlu0 %v3150, 16
      %v3251 = vpop.permute.xlu0 %3250
      %3252 = vrot.lane.b32.xlu0 %v3151, 16
      %v3253 = vpop.permute.xlu0 %3252
      %3254 = vrot.lane.b32.xlu0 %v3152, 16
      %v3255 = vpop.permute.xlu0 %3254
      %3256 = vrot.lane.b32.xlu0 %v3153, 16
      %v3257 = vpop.permute.xlu0 %3256
      %3258 = vrot.lane.b32.xlu0 %v3154, 16
      %v3259 = vpop.permute.xlu0 %3258
      %3260 = vrot.lane.b32.xlu0 %v3155, 16
      %v3261 = vpop.permute.xlu0 %3260
      %3262 = vrot.lane.b32.xlu0 %v3156, 16
      %v3263 = vpop.permute.xlu0 %3262
      %3264 = vrot.lane.b32.xlu0 %v3157, 16
      %v3265 = vpop.permute.xlu0 %3264
      %3266 = vrot.lane.b32.xlu0 %v3158, 16
      %v3267 = vpop.permute.xlu0 %3266
      %3268 = vrot.lane.b32.xlu0 %v3159, 16
      %v3269 = vpop.permute.xlu0 %3268
      %3270 = vrot.lane.b32.xlu0 %v3160, 16
      %v3271 = vpop.permute.xlu0 %3270
      %3272 = vrot.lane.b32.xlu0 %v3161, 16
      %v3273 = vpop.permute.xlu0 %3272
      %v3290 = vsel %vm804, %v3114, %v3179
      %v3291 = vsel %vm804, %v3115, %v3181
      %v3292 = vsel %vm804, %v3116, %v3183
      %v3293 = vsel %vm804, %v3117, %v3185
      %v3294 = vsel %vm804, %v3118, %v3187
      %v3295 = vsel %vm804, %v3119, %v3189
      %v3296 = vsel %vm804, %v3120, %v3191
      %v3297 = vsel %vm804, %v3121, %v3193
      %v3298 = vsel %vm804, %v3122, %v3195
      %v3299 = vsel %vm804, %v3123, %v3197
      %v3300 = vsel %vm804, %v3124, %v3199
      %v3301 = vsel %vm804, %v3125, %v3201
      %v3302 = vsel %vm804, %v3126, %v3203
      %v3303 = vsel %vm804, %v3127, %v3205
      %v3304 = vsel %vm804, %v3128, %v3207
      %v3305 = vsel %vm804, %v3129, %v3209
      %v3306 = vsel %vm1069, %v3290, %v3243
      %v3307 = vsel %vm1069, %v3291, %v3245
      %v3308 = vsel %vm1069, %v3292, %v3247
      %v3309 = vsel %vm1069, %v3293, %v3249
      %v3310 = vsel %vm1069, %v3294, %v3251
      %v3311 = vsel %vm1069, %v3295, %v3253
      %v3312 = vsel %vm1069, %v3296, %v3255
      %v3313 = vsel %vm1069, %v3297, %v3257
      %v3314 = vsel %vm1069, %v3298, %v3259
      %v3315 = vsel %vm1069, %v3299, %v3261
      %v3316 = vsel %vm1069, %v3300, %v3263
      %v3317 = vsel %vm1069, %v3301, %v3265
      %v3318 = vsel %vm1069, %v3302, %v3267
      %v3319 = vsel %vm1069, %v3303, %v3269
      %v3320 = vsel %vm1069, %v3304, %v3271
      %v3321 = vsel %vm1069, %v3305, %v3273
      %s3322 = scalar_lea.vmem %s7, 48
      %v3323 = vld [vmem:[%s3322] sm:$0xff]
      %v3324 = vld [vmem:[%s3322 + $0x8] sm:$0xff]
      %v3325 = vld [vmem:[%s3322 + $0x10] sm:$0xff]
      %v3327 = vsel %vm1358, %v3306, 0
      %v3330 = vsel %vm1358, %v3307, 0
      %v3333 = vsel %vm1358, %v3308, 0
      %v3336 = vsel %vm1358, %v3309, 0
      %v3339 = vsel %vm1358, %v3310, 0
      %v3342 = vsel %vm1358, %v3311, 0
      %v3345 = vsel %vm1358, %v3312, 0
      %v3348 = vsel %vm1358, %v3313, 0
      %v3351 = vsel %vm1358, %v3314, 0
      %v3354 = vsel %vm1358, %v3315, 0
      %v3357 = vsel %vm1358, %v3316, 0
      %v3360 = vsel %vm1358, %v3317, 0
      %v3363 = vsel %vm1358, %v3318, 0
      %v3366 = vsel %vm1358, %v3319, 0
      %v3369 = vsel %vm1358, %v3320, 0
      %v3372 = vsel %vm1358, %v3321, 0
      %3374 = vmatpush.msra.mxu0 0.0
      %3375 = vmatpush.msra.mxu0 0.0
      %3376 = vmatpush.msra.mxu0 0.0
      %3377 = vmatpush.msra.mxu0 0.0
      %3378 = vmatpush.msra.mxu0 0.0
      %3379 = vmatpush.msra.mxu0 0.0
      %3380 = vmatpush.msra.mxu0 0.0
      %3381 = vmatpush.msra.mxu0 0.0
      %3382 = vmatpush.msra.mxu0 0.0
      %3383 = vmatpush.msra.mxu0 0.0
      %3384 = vmatpush.msra.mxu0 0.0
      %3385 = vmatpush.msra.mxu0 0.0
      %3386 = vmatpush.msra.mxu0 0.0
      %3387 = vmatpush.msra.mxu0 %v3325
      %3388 = vmatpush.msra.mxu0 %v3324
      %3389 = vmatpush.msra.mxu0 %v3323
      %3390 = vmatmul.f32.gmra.mxu0 %v3327
      %v3391 = vpop.f32.mrf.mxu0
      %v3392 = vadd.f32 0.0, %v3391
      %3393 = vmatmul.f32.gmra.mxu0 %v3330
      %v3394 = vpop.f32.mrf.mxu0
      %v3395 = vadd.f32 0.0, %v3394
      %3396 = vmatmul.f32.gmra.mxu0 %v3333
      %v3397 = vpop.f32.mrf.mxu0
      %v3398 = vadd.f32 0.0, %v3397
      %3399 = vmatmul.f32.gmra.mxu0 %v3336
      %v3400 = vpop.f32.mrf.mxu0
      %v3401 = vadd.f32 0.0, %v3400
      %3402 = vmatmul.f32.gmra.mxu0 %v3339
      %v3403 = vpop.f32.mrf.mxu0
      %v3404 = vadd.f32 0.0, %v3403
      %3405 = vmatmul.f32.gmra.mxu0 %v3342
      %v3406 = vpop.f32.mrf.mxu0
      %v3407 = vadd.f32 0.0, %v3406
      %3408 = vmatmul.f32.gmra.mxu0 %v3345
      %v3409 = vpop.f32.mrf.mxu0
      %v3410 = vadd.f32 0.0, %v3409
      %3411 = vmatmul.f32.gmra.mxu0 %v3348
      %v3412 = vpop.f32.mrf.mxu0
      %v3413 = vadd.f32 0.0, %v3412
      %3414 = vmatmul.f32.gmra.mxu0 %v3351
      %v3415 = vpop.f32.mrf.mxu0
      %v3416 = vadd.f32 0.0, %v3415
      %3417 = vmatmul.f32.gmra.mxu0 %v3354
      %v3418 = vpop.f32.mrf.mxu0
      %v3419 = vadd.f32 0.0, %v3418
      %3420 = vmatmul.f32.gmra.mxu0 %v3357
      %v3421 = vpop.f32.mrf.mxu0
      %v3422 = vadd.f32 0.0, %v3421
      %3423 = vmatmul.f32.gmra.mxu0 %v3360
      %v3424 = vpop.f32.mrf.mxu0
      %v3425 = vadd.f32 0.0, %v3424
      %3426 = vmatmul.f32.gmra.mxu0 %v3363
      %v3427 = vpop.f32.mrf.mxu0
      %v3428 = vadd.f32 0.0, %v3427
      %3429 = vmatmul.f32.gmra.mxu0 %v3366
      %v3430 = vpop.f32.mrf.mxu0
      %v3431 = vadd.f32 0.0, %v3430
      %3432 = vmatmul.f32.gmra.mxu0 %v3369
      %v3433 = vpop.f32.mrf.mxu0
      %v3434 = vadd.f32 0.0, %v3433
      %3435 = vmatmul.f32.gmra.mxu0 %v3372
      %v3436 = vpop.f32.mrf.mxu0
      %v3437 = vadd.f32 0.0, %v3436
      %3438 = vdwg.mxu0
      %v3439 = vadd.f32 %v3066, %v3392
      %v3440 = vadd.f32 %v3069, %v3395
      %v3441 = vadd.f32 %v3072, %v3398
      %v3442 = vadd.f32 %v3075, %v3401
      %v3443 = vadd.f32 %v3078, %v3404
      %v3444 = vadd.f32 %v3081, %v3407
      %v3445 = vadd.f32 %v3084, %v3410
      %v3446 = vadd.f32 %v3087, %v3413
      %v3447 = vadd.f32 %v3090, %v3416
      %v3448 = vadd.f32 %v3093, %v3419
      %v3449 = vadd.f32 %v3096, %v3422
      %v3450 = vadd.f32 %v3099, %v3425
      %v3451 = vadd.f32 %v3102, %v3428
      %v3452 = vadd.f32 %v3105, %v3431
      %v3453 = vadd.f32 %v3108, %v3434
      %v3454 = vadd.f32 %v3111, %v3437
      %v3455 = vld [vmem:[%s8] sm:$0x1]
      %v3457 = vperm.slane %v3455, 0
      %v3459 = vadd.f32 %v3439, %v3457
      %v3460 = vadd.f32 %v3440, %v3457
      %v3461 = vadd.f32 %v3441, %v3457
      %v3462 = vadd.f32 %v3442, %v3457
      %v3463 = vadd.f32 %v3443, %v3457
      %v3464 = vadd.f32 %v3444, %v3457
      %v3465 = vadd.f32 %v3445, %v3457
      %v3466 = vadd.f32 %v3446, %v3457
      %v3467 = vadd.f32 %v3447, %v3457
      %v3468 = vadd.f32 %v3448, %v3457
      %v3469 = vadd.f32 %v3449, %v3457
      %v3470 = vadd.f32 %v3450, %v3457
      %v3471 = vadd.f32 %v3451, %v3457
      %v3472 = vadd.f32 %v3452, %v3457
      %v3473 = vadd.f32 %v3453, %v3457
      %v3474 = vadd.f32 %v3454, %v3457
      %vm3475 = vcmp.gt.f32.partialorder %v3459, 0.0
      %vm3476 = vcmp.gt.f32.partialorder %v3460, 0.0
      %vm3477 = vcmp.gt.f32.partialorder %v3461, 0.0
      %vm3478 = vcmp.gt.f32.partialorder %v3462, 0.0
      %vm3479 = vcmp.gt.f32.partialorder %v3463, 0.0
      %vm3480 = vcmp.gt.f32.partialorder %v3464, 0.0
      %vm3481 = vcmp.gt.f32.partialorder %v3465, 0.0
      %vm3482 = vcmp.gt.f32.partialorder %v3466, 0.0
      %vm3483 = vcmp.gt.f32.partialorder %v3467, 0.0
      %vm3484 = vcmp.gt.f32.partialorder %v3468, 0.0
      %vm3485 = vcmp.gt.f32.partialorder %v3469, 0.0
      %vm3486 = vcmp.gt.f32.partialorder %v3470, 0.0
      %vm3487 = vcmp.gt.f32.partialorder %v3471, 0.0
      %vm3488 = vcmp.gt.f32.partialorder %v3472, 0.0
      %vm3489 = vcmp.gt.f32.partialorder %v3473, 0.0
      %vm3490 = vcmp.gt.f32.partialorder %v3474, 0.0
      %v3491 = vmul.f32 %v3459, 0.01
      %v3492 = vmul.f32 %v3460, 0.01
      %v3493 = vmul.f32 %v3461, 0.01
      %v3494 = vmul.f32 %v3462, 0.01
      %v3495 = vmul.f32 %v3463, 0.01
      %v3496 = vmul.f32 %v3464, 0.01
      %v3497 = vmul.f32 %v3465, 0.01
      %v3498 = vmul.f32 %v3466, 0.01
      %v3499 = vmul.f32 %v3467, 0.01
      %v3500 = vmul.f32 %v3468, 0.01
      %v3501 = vmul.f32 %v3469, 0.01
      %v3502 = vmul.f32 %v3470, 0.01
      %v3503 = vmul.f32 %v3471, 0.01
      %v3504 = vmul.f32 %v3472, 0.01
      %v3505 = vmul.f32 %v3473, 0.01
      %v3506 = vmul.f32 %v3474, 0.01
      %v3507 = vsel %vm3475, %v3459, %v3491
      %v3508 = vsel %vm3476, %v3460, %v3492
      %v3509 = vsel %vm3477, %v3461, %v3493
      %v3510 = vsel %vm3478, %v3462, %v3494
      %v3511 = vsel %vm3479, %v3463, %v3495
      %v3512 = vsel %vm3480, %v3464, %v3496
      %v3513 = vsel %vm3481, %v3465, %v3497
      %v3514 = vsel %vm3482, %v3466, %v3498
      %v3515 = vsel %vm3483, %v3467, %v3499
      %v3516 = vsel %vm3484, %v3468, %v3500
      %v3517 = vsel %vm3485, %v3469, %v3501
      %v3518 = vsel %vm3486, %v3470, %v3502
      %v3519 = vsel %vm3487, %v3471, %v3503
      %v3520 = vsel %vm3488, %v3472, %v3504
      %v3521 = vsel %vm3489, %v3473, %v3505
      %v3522 = vsel %vm3490, %v3474, %v3506
      %v3523 = vld [vmem:[%s9] sm:$0xff]
      %v3524 = vld [vmem:[%s9 + $0x8] sm:$0xff]
      %v3525 = vld [vmem:[%s10] sm:$0x1]
      %v3527 = vperm.slane %v3525, 0
      %v3530 = vsel %vm1069, %v3507, 0
      %v3533 = vsel %vm1069, %v3508, 0
      %v3536 = vsel %vm1069, %v3509, 0
      %v3539 = vsel %vm1069, %v3510, 0
      %v3542 = vsel %vm1069, %v3511, 0
      %v3545 = vsel %vm1069, %v3512, 0
      %v3548 = vsel %vm1069, %v3513, 0
      %v3551 = vsel %vm1069, %v3514, 0
      %v3554 = vsel %vm1069, %v3515, 0
      %v3557 = vsel %vm1069, %v3516, 0
      %v3560 = vsel %vm1069, %v3517, 0
      %v3563 = vsel %vm1069, %v3518, 0
      %v3566 = vsel %vm1069, %v3519, 0
      %v3569 = vsel %vm1069, %v3520, 0
      %v3572 = vsel %vm1069, %v3521, 0
      %v3575 = vsel %vm1069, %v3522, 0
      %3577 = vmatpush.msra.mxu0 0.0
      %3578 = vmatpush.msra.mxu0 0.0
      %3579 = vmatpush.msra.mxu0 0.0
      %3580 = vmatpush.msra.mxu0 0.0
      %3581 = vmatpush.msra.mxu0 0.0
      %3582 = vmatpush.msra.mxu0 0.0
      %3583 = vmatpush.msra.mxu0 0.0
      %3584 = vmatpush.msra.mxu0 0.0
      %3585 = vmatpush.msra.mxu0 0.0
      %3586 = vmatpush.msra.mxu0 0.0
      %3587 = vmatpush.msra.mxu0 0.0
      %3588 = vmatpush.msra.mxu0 0.0
      %3589 = vmatpush.msra.mxu0 0.0
      %3590 = vmatpush.msra.mxu0 0.0
      %3591 = vmatpush.msra.mxu0 %v3524
      %3592 = vmatpush.msra.mxu0 %v3523
      %3593 = vmatmul.f32.gmra.mxu0 %v3530
      %v3594 = vpop.f32.mrf.mxu0
      %v3595 = vadd.f32 %v3527, %v3594
      %3596 = vmatmul.f32.gmra.mxu0 %v3533
      %v3597 = vpop.f32.mrf.mxu0
      %v3598 = vadd.f32 %v3527, %v3597
      %3599 = vmatmul.f32.gmra.mxu0 %v3536
      %v3600 = vpop.f32.mrf.mxu0
      %v3601 = vadd.f32 %v3527, %v3600
      %3602 = vmatmul.f32.gmra.mxu0 %v3539
      %v3603 = vpop.f32.mrf.mxu0
      %v3604 = vadd.f32 %v3527, %v3603
      %3605 = vmatmul.f32.gmra.mxu0 %v3542
      %v3606 = vpop.f32.mrf.mxu0
      %v3607 = vadd.f32 %v3527, %v3606
      %3608 = vmatmul.f32.gmra.mxu0 %v3545
      %v3609 = vpop.f32.mrf.mxu0
      %v3610 = vadd.f32 %v3527, %v3609
      %3611 = vmatmul.f32.gmra.mxu0 %v3548
      %v3612 = vpop.f32.mrf.mxu0
      %v3613 = vadd.f32 %v3527, %v3612
      %3614 = vmatmul.f32.gmra.mxu0 %v3551
      %v3615 = vpop.f32.mrf.mxu0
      %v3616 = vadd.f32 %v3527, %v3615
      %3617 = vmatmul.f32.gmra.mxu0 %v3554
      %v3618 = vpop.f32.mrf.mxu0
      %v3619 = vadd.f32 %v3527, %v3618
      %3620 = vmatmul.f32.gmra.mxu0 %v3557
      %v3621 = vpop.f32.mrf.mxu0
      %v3622 = vadd.f32 %v3527, %v3621
      %3623 = vmatmul.f32.gmra.mxu0 %v3560
      %v3624 = vpop.f32.mrf.mxu0
      %v3625 = vadd.f32 %v3527, %v3624
      %3626 = vmatmul.f32.gmra.mxu0 %v3563
      %v3627 = vpop.f32.mrf.mxu0
      %v3628 = vadd.f32 %v3527, %v3627
      %3629 = vmatmul.f32.gmra.mxu0 %v3566
      %v3630 = vpop.f32.mrf.mxu0
      %v3631 = vadd.f32 %v3527, %v3630
      %3632 = vmatmul.f32.gmra.mxu0 %v3569
      %v3633 = vpop.f32.mrf.mxu0
      %v3634 = vadd.f32 %v3527, %v3633
      %3635 = vmatmul.f32.gmra.mxu0 %v3572
      %v3636 = vpop.f32.mrf.mxu0
      %v3637 = vadd.f32 %v3527, %v3636
      %3638 = vmatmul.f32.gmra.mxu0 %v3575
      %v3639 = vpop.f32.mrf.mxu0
      %v3640 = vadd.f32 %v3527, %v3639
      %3641 = vdwg.mxu0
      %vm3642 = vcmp.gt.f32.partialorder %v3595, 0.0
      %vm3643 = vcmp.gt.f32.partialorder %v3598, 0.0
      %vm3644 = vcmp.gt.f32.partialorder %v3601, 0.0
      %vm3645 = vcmp.gt.f32.partialorder %v3604, 0.0
      %vm3646 = vcmp.gt.f32.partialorder %v3607, 0.0
      %vm3647 = vcmp.gt.f32.partialorder %v3610, 0.0
      %vm3648 = vcmp.gt.f32.partialorder %v3613, 0.0
      %vm3649 = vcmp.gt.f32.partialorder %v3616, 0.0
      %vm3650 = vcmp.gt.f32.partialorder %v3619, 0.0
      %vm3651 = vcmp.gt.f32.partialorder %v3622, 0.0
      %vm3652 = vcmp.gt.f32.partialorder %v3625, 0.0
      %vm3653 = vcmp.gt.f32.partialorder %v3628, 0.0
      %vm3654 = vcmp.gt.f32.partialorder %v3631, 0.0
      %vm3655 = vcmp.gt.f32.partialorder %v3634, 0.0
      %vm3656 = vcmp.gt.f32.partialorder %v3637, 0.0
      %vm3657 = vcmp.gt.f32.partialorder %v3640, 0.0
      %v3658 = vmul.f32 %v3595, 0.01
      %v3659 = vmul.f32 %v3598, 0.01
      %v3660 = vmul.f32 %v3601, 0.01
      %v3661 = vmul.f32 %v3604, 0.01
      %v3662 = vmul.f32 %v3607, 0.01
      %v3663 = vmul.f32 %v3610, 0.01
      %v3664 = vmul.f32 %v3613, 0.01
      %v3665 = vmul.f32 %v3616, 0.01
      %v3666 = vmul.f32 %v3619, 0.01
      %v3667 = vmul.f32 %v3622, 0.01
      %v3668 = vmul.f32 %v3625, 0.01
      %v3669 = vmul.f32 %v3628, 0.01
      %v3670 = vmul.f32 %v3631, 0.01
      %v3671 = vmul.f32 %v3634, 0.01
      %v3672 = vmul.f32 %v3637, 0.01
      %v3673 = vmul.f32 %v3640, 0.01
      %v3674 = vsel %vm3642, %v3595, %v3658
      %v3675 = vsel %vm3643, %v3598, %v3659
      %v3676 = vsel %vm3644, %v3601, %v3660
      %v3677 = vsel %vm3645, %v3604, %v3661
      %v3678 = vsel %vm3646, %v3607, %v3662
      %v3679 = vsel %vm3647, %v3610, %v3663
      %v3680 = vsel %vm3648, %v3613, %v3664
      %v3681 = vsel %vm3649, %v3616, %v3665
      %v3682 = vsel %vm3650, %v3619, %v3666
      %v3683 = vsel %vm3651, %v3622, %v3667
      %v3684 = vsel %vm3652, %v3625, %v3668
      %v3685 = vsel %vm3653, %v3628, %v3669
      %v3686 = vsel %vm3654, %v3631, %v3670
      %v3687 = vsel %vm3655, %v3634, %v3671
      %v3688 = vsel %vm3656, %v3637, %v3672
      %v3689 = vsel %vm3657, %v3640, %v3673
      %3690 = vst.msk [vmem:[%s410] sm:$0xff] %vm804, %v3674
      %3691 = vst.msk [vmem:[%s410 + $0x8] sm:$0xff] %vm804, %v3675
      %3692 = vst.msk [vmem:[%s410 + $0x10] sm:$0xff] %vm804, %v3676
      %3693 = vst.msk [vmem:[%s410 + $0x18] sm:$0xff] %vm804, %v3677
      %3694 = vst.msk [vmem:[%s410 + $0x20] sm:$0xff] %vm804, %v3678
      %3695 = vst.msk [vmem:[%s410 + $0x28] sm:$0xff] %vm804, %v3679
      %3696 = vst.msk [vmem:[%s410 + $0x30] sm:$0xff] %vm804, %v3680
      %3697 = vst.msk [vmem:[%s410 + $0x38] sm:$0xff] %vm804, %v3681
      %3698 = vst.msk [vmem:[%s410 + $0x40] sm:$0xff] %vm804, %v3682
      %3699 = vst.msk [vmem:[%s410 + $0x48] sm:$0xff] %vm804, %v3683
      %3700 = vst.msk [vmem:[%s410 + $0x50] sm:$0xff] %vm804, %v3684
      %3701 = vst.msk [vmem:[%s410 + $0x58] sm:$0xff] %vm804, %v3685
      %3702 = vst.msk [vmem:[%s410 + $0x60] sm:$0xff] %vm804, %v3686
      %3703 = vst.msk [vmem:[%s410 + $0x68] sm:$0xff] %vm804, %v3687
      %3704 = vst.msk [vmem:[%s410 + $0x70] sm:$0xff] %vm804, %v3688
      %3705 = vst.msk [vmem:[%s410 + $0x78] sm:$0xff] %vm804, %v3689
      %s3706 = smul.u32 8, %s27
      %p3707 = scmp.lt.s32.totalorder %s26, 1
      %s3708 = scalar_select %p3707, %s26, 1
      %p3709 = scmp.lt.s32.totalorder %s3706, 15
      %s3710 = scalar_select %p3709, %s3706, 15
      %s3711 = smul.addr %s3710, 2
      %s3712 = smul.addr %s3708, 32
      %s3713 = sadd.s32 %s3711, %s3712
      %s3714 = smul.addr %s3713, 8
      %s3715 = scalar_lea.vmem %s11, %s3714
      // Predicated region
      $region65: #{fpn_downsample_forward.1} parent=63 // pred_check
        %p3716 = pneg %p290
      $region66: #{fpn_downsample_forward.1} parent=63 // pred_check_branch
        %3718 = sbr.rel (%p3716) target = $region68
      $region67: #{fpn_downsample_forward.1} parent=63 // pred_region
        %s3719 = smul.u32 8, %s27
      $region68: #{fpn_downsample_forward.1} parent=63 // pred_fallthru
        _
    $region64: #{fpn_downsample_forward.1} parent=5 // pred_fallthru
      _
    %p3720 = scmp.le.s32.totalorder 2, %s17
    // Predicated region
    $region69: #{fpn_downsample_forward.1} parent=5 // pred_check
      %p3721 = pneg %p3720
    $region70: #{fpn_downsample_forward.1} parent=5 // pred_check_branch
      %3723 = sbr.rel (%p3721) target = $region72
    $region71: #{fpn_downsample_forward.1} parent=5 // pred_region
      %s3724 = ssub.s32 %s17, 2
      // Predicated region
      $region73: #{fpn_downsample_forward.1} parent=71 // pred_check
        %p3725 = pneg %p296
      $region74: #{fpn_downsample_forward.1} parent=71 // pred_check_branch
        %3727 = sbr.rel (%p3725) target = $region76
      $region75: #{fpn_downsample_forward.1} parent=71 // pred_region
        %s3728 = smul.u32 8, %s29
        %p3729 = scmp.lt.s32.totalorder %s28, 1
        %s3730 = scalar_select %p3729, %s28, 1
        %p3731 = scmp.lt.s32.totalorder %s3728, 15
        %s3732 = scalar_select %p3731, %s3728, 15
        %s3733 = smul.addr %s3732, 2
        %s3734 = smul.addr %s3730, 32
        %s3735 = sadd.s32 %s3733, %s3734
        %s3736 = smul.addr %s3735, 8
        %s3737 = scalar_lea.vmem %s11, %s3736
      $region76: #{fpn_downsample_forward.1} parent=71 // pred_fallthru
        _
    $region72: #{fpn_downsample_forward.1} parent=5 // pred_fallthru
      _
  $region6: #{fpn_downsample_forward.1} parent=0 // loop_footer
    %s21 = sadd.s32 1, %s17
  $region7: #{fpn_downsample_forward.1} parent=0 // loop_footer_branch
    %16 = sbr.rel target = $region3
  $region8: #{fpn_downsample_forward.1} parent=0 // loop_exit
    _

</llo_original>
